<compile_context>
chip_gen: v5e
topology: v5e:2x2
jax: 0.10.0
libtpu: 0.0.40
codegen_flags: <defaults>
</compile_context>

<pallas_src>
import jax
import jax.numpy as jnp
from jax.experimental import pallas as pl
from jax.experimental.pallas import tpu as pltpu

# Small deterministic config (stand-ins for e_size=6884, r_size=990, dim_size=128).
E_SIZE = 256          # number of entities / nodes
R_SIZE = 8            # number of relations
DIM = 128             # feature dim (real width -> lanes fully utilized)
NUM_BASES = 2         # conv1 basis decomposition
NUM_BLOCKS = 4        # conv2 block-diagonal decomposition
MARGIN = 1.0


# ----------------------------------------------------------------------------
# Encoder kernel 1: RGCN layer with fused basis decomposition.
#   out = relu( X_dst @ root + bias + sum_r (A[r] @ X) @ (sum_b comp[r,b] * basis[b]) )
# Grid: (dst_tiles, R, src_tiles); output block resident across (R, src) -> accumulator.
# ----------------------------------------------------------------------------
def _rgcn_basis_kernel(comp_ref, a_ref, x_src_ref, x_dst_ref, basis_ref, root_ref, bias_ref,
                       o_ref, h_acc):
    r = pl.program_id(1)
    s = pl.program_id(2)
    last_r = pl.num_programs(1) - 1
    last_s = pl.num_programs(2) - 1

    # Root term + bias initialize the resident output block (overlaps later A/W DMAs).
    @pl.when(jnp.logical_and(r == 0, s == 0))
    def _():
        o_ref[...] = (jnp.dot(x_dst_ref[...], root_ref[...],
                              preferred_element_type=jnp.float32) + bias_ref[...])

    @pl.when(s == 0)
    def _():
        h_acc[...] = jnp.zeros_like(h_acc)

    # Mean-aggregated messages for relation r over this src tile (bf16 in, f32 accumulate).
    h_acc[...] += jnp.dot(a_ref[0], x_src_ref[...], preferred_element_type=jnp.float32)

    # Per-relation transform via basis decomposition (comp scalars read from SMEM;
    # dense (R, D, D) w1 is never materialized in HBM).
    @pl.when(s == last_s)
    def _():
        h = h_acc[...].astype(jnp.bfloat16)
        upd = comp_ref[r, 0] * jnp.dot(h, basis_ref[0], preferred_element_type=jnp.float32)
        for b in range(1, NUM_BASES):
            upd += comp_ref[r, b] * jnp.dot(h, basis_ref[b], preferred_element_type=jnp.float32)
        o_ref[...] += upd

    @pl.when(jnp.logical_and(r == last_r, s == last_s))
    def _():
        o_ref[...] = jnp.maximum(o_ref[...], 0.0)     # fused F.relu


def rgcn_basis_layer(adj, x, comp, basis, root, bias, *, tile_dst=128, tile_src=128):
    R, N, _ = adj.shape
    D = root.shape[0]
    tile_dst = tile_dst if N % tile_dst == 0 else N
    tile_src = tile_src if N % tile_src == 0 else N
    grid = (N // tile_dst, R, N // tile_src)
    return pl.pallas_call(
        _rgcn_basis_kernel,
        out_shape=jax.ShapeDtypeStruct((N, D), jnp.float32),
        grid_spec=pltpu.PrefetchScalarGridSpec(
            num_scalar_prefetch=0,
            grid=grid,
            in_specs=[
                pl.BlockSpec(memory_space=pltpu.MemorySpace.SMEM),                 # comp (R,B)
                pl.BlockSpec((1, tile_dst, tile_src), lambda i, r, s: (r, i, s)),  # A tile
                pl.BlockSpec((tile_src, D), lambda i, r, s: (s, 0)),               # X (src rows)
                pl.BlockSpec((tile_dst, D), lambda i, r, s: (i, 0)),               # X (dst rows)
                pl.BlockSpec((NUM_BASES, D, D), lambda i, r, s: (0, 0, 0)),        # basis (resident)
                pl.BlockSpec((D, D), lambda i, r, s: (0, 0)),                      # root (resident)
                pl.BlockSpec((1, D), lambda i, r, s: (0, 0)),                      # bias (resident)
            ],
            out_specs=pl.BlockSpec((tile_dst, D), lambda i, r, s: (i, 0)),
            scratch_shapes=[pltpu.VMEM((tile_dst, D), jnp.float32)],
        ),
        compiler_params=pltpu.CompilerParams(
            dimension_semantics=("parallel", "arbitrary", "arbitrary"),
            vmem_limit_bytes=32 * 1024 * 1024),
    )(comp, adj, x, x, basis, root, bias.reshape(1, D))


# ----------------------------------------------------------------------------
# Encoder kernel 2: RGCN layer with block-diagonal weights (no dense expansion).
#   out = relu( X_dst @ root + bias + sum_r blockdiag_transform(A[r] @ X, blocks[r]) )
# ----------------------------------------------------------------------------
def _rgcn_block_kernel(a_ref, x_src_ref, x_dst_ref, blocks_ref, root_ref, bias_ref,
                       o_ref, h_acc):
    r = pl.program_id(1)
    s = pl.program_id(2)
    last_r = pl.num_programs(1) - 1
    last_s = pl.num_programs(2) - 1

    @pl.when(jnp.logical_and(r == 0, s == 0))
    def _():
        o_ref[...] = (jnp.dot(x_dst_ref[...], root_ref[...],
                              preferred_element_type=jnp.float32) + bias_ref[...])

    @pl.when(s == 0)
    def _():
        h_acc[...] = jnp.zeros_like(h_acc)

    h_acc[...] += jnp.dot(a_ref[0], x_src_ref[...], preferred_element_type=jnp.float32)

    # Block-diagonal per-relation transform: 4 small dots on the (R, 4, 32, 32) blocks.
    @pl.when(s == last_s)
    def _():
        h = h_acc[...].astype(jnp.bfloat16)
        bd = h.shape[1] // NUM_BLOCKS
        parts = [jnp.dot(h[:, b * bd:(b + 1) * bd], blocks_ref[0, b],
                         preferred_element_type=jnp.float32)
                 for b in range(NUM_BLOCKS)]
        o_ref[...] += jnp.concatenate(parts, axis=1)

    @pl.when(jnp.logical_and(r == last_r, s == last_s))
    def _():
        o_ref[...] = jnp.maximum(o_ref[...], 0.0)     # fused F.relu


def rgcn_block_layer(adj, x, blocks, root, bias, *, tile_dst=128, tile_src=128):
    R, N, _ = adj.shape
    D = root.shape[0]
    bd = D // NUM_BLOCKS
    tile_dst = tile_dst if N % tile_dst == 0 else N
    tile_src = tile_src if N % tile_src == 0 else N
    grid = (N // tile_dst, R, N // tile_src)
    return pl.pallas_call(
        _rgcn_block_kernel,
        out_shape=jax.ShapeDtypeStruct((N, D), jnp.float32),
        grid_spec=pltpu.PrefetchScalarGridSpec(
            num_scalar_prefetch=0,
            grid=grid,
            in_specs=[
                pl.BlockSpec((1, tile_dst, tile_src), lambda i, r, s: (r, i, s)),        # A tile
                pl.BlockSpec((tile_src, D), lambda i, r, s: (s, 0)),                     # X (src)
                pl.BlockSpec((tile_dst, D), lambda i, r, s: (i, 0)),                     # X (dst)
                pl.BlockSpec((1, NUM_BLOCKS, bd, bd), lambda i, r, s: (r, 0, 0, 0)),     # blocks[r]
                pl.BlockSpec((D, D), lambda i, r, s: (0, 0)),                            # root
                pl.BlockSpec((1, D), lambda i, r, s: (0, 0)),                            # bias
            ],
            out_specs=pl.BlockSpec((tile_dst, D), lambda i, r, s: (i, 0)),
            scratch_shapes=[pltpu.VMEM((tile_dst, D), jnp.float32)],
        ),
        compiler_params=pltpu.CompilerParams(
            dimension_semantics=("parallel", "arbitrary", "arbitrary"),
            vmem_limit_bytes=32 * 1024 * 1024),
    )(adj, x, x, blocks, root, bias.reshape(1, D))


# ----------------------------------------------------------------------------
# Decoder kernel: fused gather + TransE scoring + MarginRankingLoss(margin=1, target=-1).
# Grid over edge tiles; node/rel tables resident in VMEM; rows gathered via one-hot matmuls
# (MXU); hinge sum accumulated in a (1,1) scratch and divided by E once at the end.
# TODO(synk): at real edge counts replace the one-hot gather with a DMA / dynamic row gather.
# ----------------------------------------------------------------------------
def decoder_margin_loss(node_embs, rel_emb, pos_trip, neg_trip, *, tile_e=128):
    n_edges = pos_trip.shape[1]
    e_pad = ((n_edges + tile_e - 1) // tile_e) * tile_e
    n_tiles = e_pad // tile_e
    N, D = node_embs.shape
    R = rel_emb.shape[0]

    def col(trip, i):
        c = jnp.pad(trip[i].astype(jnp.int32), (0, e_pad - n_edges))
        return c.reshape(e_pad, 1)

    ps, pr, pt = col(pos_trip, 0), col(pos_trip, 1), col(pos_trip, 2)
    ns, nr, nt = col(neg_trip, 0), col(neg_trip, 1), col(neg_trip, 2)

    def kernel(node_ref, rel_ref, ps_ref, pr_ref, pt_ref, ns_ref, nr_ref, nt_ref,
               o_ref, acc_ref):
        t = pl.program_id(0)

        @pl.when(t == 0)
        def _():
            acc_ref[...] = jnp.zeros_like(acc_ref)

        def gather(table_ref, idx_ref):
            m = table_ref.shape[0]
            onehot = (idx_ref[...] ==
                      jax.lax.broadcasted_iota(jnp.int32, (tile_e, m), 1)).astype(jnp.float32)
            return jnp.dot(onehot, table_ref[...], preferred_element_type=jnp.float32)

        dp = gather(node_ref, ps_ref) + gather(rel_ref, pr_ref) - gather(node_ref, pt_ref)
        dn = gather(node_ref, ns_ref) + gather(rel_ref, nr_ref) - gather(node_ref, nt_ref)
        # NOTE: forward-only; if differentiated, add an epsilon inside the sqrt.
        pos_d = jnp.sqrt(jnp.sum(dp * dp, axis=1, keepdims=True))
        neg_d = jnp.sqrt(jnp.sum(dn * dn, axis=1, keepdims=True))

        eid = t * tile_e + jax.lax.broadcasted_iota(jnp.int32, (tile_e, 1), 0)
        valid = (eid < n_edges).astype(jnp.float32)
        hinge = jnp.maximum(pos_d - neg_d + MARGIN, 0.0) * valid
        acc_ref[...] += jnp.sum(hinge, axis=0, keepdims=True)

        @pl.when(t == pl.num_programs(0) - 1)
        def _():
            o_ref[...] = acc_ref[...] * (1.0 / n_edges)

    out = pl.pallas_call(
        kernel,
        out_shape=jax.ShapeDtypeStruct((1, 1), jnp.float32),
        grid_spec=pltpu.PrefetchScalarGridSpec(
            num_scalar_prefetch=0,
            grid=(n_tiles,),
            in_specs=[
                pl.BlockSpec((N, D), lambda t: (0, 0)),   # node embeddings (resident)
                pl.BlockSpec((R, D), lambda t: (0, 0)),   # relation embeddings (resident)
            ] + [pl.BlockSpec((tile_e, 1), lambda t: (t, 0))] * 6,
            out_specs=pl.BlockSpec((1, 1), lambda t: (0, 0)),
            scratch_shapes=[pltpu.VMEM((1, 1), jnp.float32)],
        ),
        compiler_params=pltpu.CompilerParams(dimension_semantics=("arbitrary",)),
    )(node_embs, rel_emb, ps, pr, pt, ns, nr, nt)
    return out[0, 0]


# ----------------------------------------------------------------------------
# Glue (plain JAX): normalized dense adjacency, negative sampling, params, forward.
# ----------------------------------------------------------------------------
def build_norm_adj(edge_index, edge_type, num_nodes, num_rel):
    """A[r, i, j] = (#edges j->i of type r) / max(in-degree_r(i), 1)  -> mean aggregation."""
    src, dst = edge_index[0], edge_index[1]
    counts = jnp.zeros((num_rel, num_nodes, num_nodes), jnp.float32)
    counts = counts.at[edge_type, dst, src].add(1.0)
    deg = jnp.sum(counts, axis=2, keepdims=True)
    return counts / jnp.maximum(deg, 1.0)


def sample_negatives(pos_triplets, key):
    """Replicates Decoder.sampling: corrupt head on first half, tail on second half."""
    # TODO(synk): torch.randint RNG stream differs; replicated with jax.random.
    E = pos_triplets.shape[1]
    split = E // 2
    k0, k2 = jax.random.split(key)
    neg = pos_triplets
    r0 = jax.random.randint(k0, (split,), 0, E_SIZE - 1, dtype=pos_triplets.dtype)
    r0 = r0 + (r0 >= pos_triplets[0, :split]).astype(r0.dtype)
    neg = neg.at[0, :split].set(r0)
    stop = min(2 * split, E)
    r2 = jax.random.randint(k2, (stop - split,), 0, E_SIZE - 1, dtype=pos_triplets.dtype)
    r2 = r2 + (r2 >= pos_triplets[2, split:stop]).astype(r2.dtype)
    neg = neg.at[2, split:stop].set(r2)
    return neg


def init_params(key):
    ks = jax.random.split(key, 8)
    s = 0.1
    bd = DIM // NUM_BLOCKS
    return {
        "emb":     s * jax.random.normal(ks[0], (E_SIZE, DIM), jnp.float32),
        "comp1":   s * jax.random.normal(ks[1], (R_SIZE, NUM_BASES), jnp.float32),
        "basis1":  s * jax.random.normal(ks[2], (NUM_BASES, DIM, DIM), jnp.float32),
        "root1":   s * jax.random.normal(ks[3], (DIM, DIM), jnp.float32),
        "bias1":   jnp.zeros((DIM,), jnp.float32),
        "blocks2": s * jax.random.normal(ks[4], (R_SIZE, NUM_BLOCKS, bd, bd), jnp.float32),
        "root2":   s * jax.random.normal(ks[5], (DIM, DIM), jnp.float32),
        "bias2":   jnp.zeros((DIM,), jnp.float32),
        "rel_emb": s * jax.random.normal(ks[6], (R_SIZE, DIM), jnp.float32),
    }


def net_forward(params, total_index, total_type, edge_index, edge_type, neg_key):
    # ---- Encoder (bf16 streaming, f32 accumulation inside the kernels) ----
    adj = build_norm_adj(total_index, total_type, E_SIZE, R_SIZE).astype(jnp.bfloat16)
    x1 = rgcn_basis_layer(adj, params["emb"].astype(jnp.bfloat16),
                          params["comp1"], params["basis1"].astype(jnp.bfloat16),
                          params["root1"].astype(jnp.bfloat16), params["bias1"])
    x2 = rgcn_block_layer(adj, x1.astype(jnp.bfloat16),
                          params["blocks2"].astype(jnp.bfloat16),
                          params["root2"].astype(jnp.bfloat16), params["bias2"])

    # ---- Decoder ----
    pos_triplets = jnp.stack([edge_index[0], edge_type, edge_index[1]])   # (3, E)
    neg_triplets = sample_negatives(pos_triplets, neg_key)
    return decoder_margin_loss(x2, params["rel_emb"], pos_triplets, neg_triplets)


if __name__ == "__main__":
    key = jax.random.PRNGKey(0)
    k_param, k_src, k_dst, k_typ, k_neg = jax.random.split(key, 5)
    params = init_params(k_param)

    # Encoder graph ("total" edges) and decoder scoring edges.
    N_TOTAL_EDGES = 512
    E_DEC = 256
    total_index = jnp.stack([
        jax.random.randint(k_src, (N_TOTAL_EDGES,), 0, E_SIZE, dtype=jnp.int32),
        jax.random.randint(k_dst, (N_TOTAL_EDGES,), 0, E_SIZE, dtype=jnp.int32),
    ])                                                                     # (2, 512)
    total_type = jax.random.randint(k_typ, (N_TOTAL_EDGES,), 0, R_SIZE, dtype=jnp.int32)
    edge_index = total_index[:, :E_DEC]                                    # (2, 256)
    edge_type = total_type[:E_DEC]                                         # (256,)

    fwd = jax.jit(net_forward)
    score = fwd(params, total_index, total_type, edge_index, edge_type, k_neg)
    score = jax.block_until_ready(score)
    assert score.shape == () and bool(jnp.isfinite(score))
    print("KERNEL_OK")
</pallas_src>

<mosaic_0001>
module attributes {stable_mosaic.version = 11 : i64} {
  func.func @_rgcn_basis_kernel(%arg0: i32, %arg1: i32, %arg2: i32, %arg3: memref<8x2xf32, #tpu.memory_space<smem>>, %arg4: memref<1x128x128xbf16, #tpu.memory_space<vmem>>, %arg5: memref<128x128xbf16, #tpu.memory_space<vmem>>, %arg6: memref<128x128xbf16, #tpu.memory_space<vmem>>, %arg7: memref<2x128x128xbf16, #tpu.memory_space<vmem>>, %arg8: memref<128x128xbf16, #tpu.memory_space<vmem>>, %arg9: memref<1x128xf32, #tpu.memory_space<vmem>>, %arg10: memref<128x128xf32, #tpu.memory_space<vmem>>, %arg11: memref<128x128xf32, #tpu.memory_space<vmem>>) attributes {dimension_semantics = [#tpu.dimension_semantics<parallel>, #tpu.dimension_semantics<arbitrary>, #tpu.dimension_semantics<arbitrary>], iteration_bounds = array<i64: 2, 8, 2>, scalar_prefetch = 0 : i64, scratch_operands = 1 : i64, tpu.core_type = #tpu.core_type<tc>, window_params = [{transform_indices = @transform_0, window_bounds = array<i64: 8, 2>}, {transform_indices = @transform_1, window_bounds = array<i64: 1, 128, 128>}, {transform_indices = @transform_2, window_bounds = array<i64: 128, 128>}, {transform_indices = @transform_3, window_bounds = array<i64: 128, 128>}, {pipeline_mode = #tpu.pipeline_mode<synchronous>, transform_indices = @transform_4, window_bounds = array<i64: 2, 128, 128>}, {pipeline_mode = #tpu.pipeline_mode<synchronous>, transform_indices = @transform_5, window_bounds = array<i64: 128, 128>}, {pipeline_mode = #tpu.pipeline_mode<synchronous>, transform_indices = @transform_6, window_bounds = array<i64: 1, 128>}, {transform_indices = @transform_7, window_bounds = array<i64: 128, 128>}]} {
    %c0_i32 = arith.constant 0 : i32
    %0 = arith.cmpi eq, %arg1, %c0_i32 : i32
    %c0_i32_0 = arith.constant 0 : i32
    %1 = arith.cmpi eq, %arg2, %c0_i32_0 : i32
    %2 = arith.andi %0, %1 : i1
    %3 = arith.extui %2 : i1 to i32
    %c0_i32_1 = arith.constant 0 : i32
    %4 = arith.cmpi ne, %3, %c0_i32_1 : i32
    scf.if %4 {
      %c0_15 = arith.constant 0 : index
      %c0_16 = arith.constant 0 : index
      %23 = vector.load %arg6[%c0_15, %c0_16] : memref<128x128xbf16, #tpu.memory_space<vmem>>, vector<128x128xbf16>
      %c0_17 = arith.constant 0 : index
      %c0_18 = arith.constant 0 : index
      %24 = vector.load %arg8[%c0_17, %c0_18] : memref<128x128xbf16, #tpu.memory_space<vmem>>, vector<128x128xbf16>
      %cst_19 = arith.constant dense<0.000000e+00> : vector<128x128xf32>
      %25 = tpu.matmul %23, %24, %cst_19 {dimension_numbers = #tpu.dot_dimension_numbers<[1], [0], [0], [1], [0, 0, 1, 1], [], []>} : vector<128x128xbf16>, vector<128x128xbf16>, vector<128x128xf32> -> vector<128x128xf32>
      %c0_20 = arith.constant 0 : index
      %c0_21 = arith.constant 0 : index
      %26 = vector.load %arg9[%c0_20, %c0_21] : memref<1x128xf32, #tpu.memory_space<vmem>>, vector<1x128xf32>
      %27 = vector.broadcast %26 : vector<1x128xf32> to vector<128x128xf32>
      %28 = arith.addf %25, %27 : vector<128x128xf32>
      %c0_22 = arith.constant 0 : index
      %c0_23 = arith.constant 0 : index
      %29 = vector.load %arg10[%c0_22, %c0_23] : memref<128x128xf32, #tpu.memory_space<vmem>>, vector<128x128xf32>
      tpu.vector_store %arg10[%c0_22, %c0_23], %28 {strides = array<i32>} : memref<128x128xf32, #tpu.memory_space<vmem>>, vector<128x128xf32>,
    } else {
    }
    %c0_i32_2 = arith.constant 0 : i32
    %5 = arith.cmpi eq, %arg2, %c0_i32_2 : i32
    %6 = arith.extui %5 : i1 to i32
    %c0_i32_3 = arith.constant 0 : i32
    %7 = arith.cmpi ne, %6, %c0_i32_3 : i32
    scf.if %7 {
      %cst_15 = arith.constant 0.000000e+00 : f32
      %23 = vector.broadcast %cst_15 : f32 to vector<128x128xf32>
      %c0_16 = arith.constant 0 : index
      %c0_17 = arith.constant 0 : index
      %24 = vector.load %arg11[%c0_16, %c0_17] : memref<128x128xf32, #tpu.memory_space<vmem>>, vector<128x128xf32>
      tpu.vector_store %arg11[%c0_16, %c0_17], %23 {strides = array<i32>} : memref<128x128xf32, #tpu.memory_space<vmem>>, vector<128x128xf32>,
    } else {
    }
    %c0 = arith.constant 0 : index
    %c0_4 = arith.constant 0 : index
    %8 = vector.load %arg11[%c0, %c0_4] : memref<128x128xf32, #tpu.memory_space<vmem>>, vector<128x128xf32>
    %c0_5 = arith.constant 0 : index
    %c0_6 = arith.constant 0 : index
    %c0_7 = arith.constant 0 : index
    %9 = vector.load %arg4[%c0_5, %c0_6, %c0_7] : memref<1x128x128xbf16, #tpu.memory_space<vmem>>, vector<1x128x128xbf16>
    %10 = vector.shape_cast %9 : vector<1x128x128xbf16> to vector<128x128xbf16>
    %c0_8 = arith.constant 0 : index
    %c0_9 = arith.constant 0 : index
    %11 = vector.load %arg5[%c0_8, %c0_9] : memref<128x128xbf16, #tpu.memory_space<vmem>>, vector<128x128xbf16>
    %cst = arith.constant dense<0.000000e+00> : vector<128x128xf32>
    %12 = tpu.matmul %10, %11, %cst {dimension_numbers = #tpu.dot_dimension_numbers<[1], [0], [0], [1], [0, 0, 1, 1], [], []>} : vector<128x128xbf16>, vector<128x128xbf16>, vector<128x128xf32> -> vector<128x128xf32>
    %13 = arith.addf %8, %12 : vector<128x128xf32>
    %c0_10 = arith.constant 0 : index
    %c0_11 = arith.constant 0 : index
    %14 = vector.load %arg11[%c0_10, %c0_11] : memref<128x128xf32, #tpu.memory_space<vmem>>, vector<128x128xf32>
    tpu.vector_store %arg11[%c0_10, %c0_11], %13 {strides = array<i32>} : memref<128x128xf32, #tpu.memory_space<vmem>>, vector<128x128xf32>,
    %c1_i32 = arith.constant 1 : i32
    %15 = arith.cmpi eq, %arg2, %c1_i32 : i32
    %16 = arith.extui %15 : i1 to i32
    %c0_i32_12 = arith.constant 0 : i32
    %17 = arith.cmpi ne, %16, %c0_i32_12 : i32
    scf.if %17 {
      %c0_15 = arith.constant 0 : index
      %c0_16 = arith.constant 0 : index
      %23 = vector.load %arg11[%c0_15, %c0_16] : memref<128x128xf32, #tpu.memory_space<vmem>>, vector<128x128xf32>
      %24 = arith.truncf %23 : vector<128x128xf32> to vector<128x128xbf16>
      %25 = arith.index_cast %arg1 : i32 to index
      %c0_17 = arith.constant 0 : index
      %26 = memref.load %arg3[%25, %c0_17] : memref<8x2xf32, #tpu.memory_space<smem>>
      %c0_18 = arith.constant 0 : index
      %c0_19 = arith.constant 0 : index
      %c0_20 = arith.constant 0 : index
      %27 = vector.load %arg7[%c0_18, %c0_19, %c0_20] : memref<2x128x128xbf16, #tpu.memory_space<vmem>>, vector<1x128x128xbf16>
      %28 = vector.shape_cast %27 : vector<1x128x128xbf16> to vector<128x128xbf16>
      %cst_21 = arith.constant dense<0.000000e+00> : vector<128x128xf32>
      %29 = tpu.matmul %24, %28, %cst_21 {dimension_numbers = #tpu.dot_dimension_numbers<[1], [0], [0], [1], [0, 0, 1, 1], [], []>} : vector<128x128xbf16>, vector<128x128xbf16>, vector<128x128xf32> -> vector<128x128xf32>
      %30 = vector.broadcast %26 : f32 to vector<128x128xf32>
      %31 = arith.mulf %30, %29 : vector<128x128xf32>
      %32 = arith.index_cast %arg1 : i32 to index
      %c1 = arith.constant 1 : index
      %33 = memref.load %arg3[%32, %c1] : memref<8x2xf32, #tpu.memory_space<smem>>
      %c1_22 = arith.constant 1 : index
      %c0_23 = arith.constant 0 : index
      %c0_24 = arith.constant 0 : index
      %34 = vector.load %arg7[%c1_22, %c0_23, %c0_24] : memref<2x128x128xbf16, #tpu.memory_space<vmem>>, vector<1x128x128xbf16>
      %35 = vector.shape_cast %34 : vector<1x128x128xbf16> to vector<128x128xbf16>
      %cst_25 = arith.constant dense<0.000000e+00> : vector<128x128xf32>
      %36 = tpu.matmul %24, %35, %cst_25 {dimension_numbers = #tpu.dot_dimension_numbers<[1], [0], [0], [1], [0, 0, 1, 1], [], []>} : vector<128x128xbf16>, vector<128x128xbf16>, vector<128x128xf32> -> vector<128x128xf32>
      %37 = vector.broadcast %33 : f32 to vector<128x128xf32>
      %38 = arith.mulf %37, %36 : vector<128x128xf32>
      %39 = arith.addf %31, %38 : vector<128x128xf32>
      %c0_26 = arith.constant 0 : index
      %c0_27 = arith.constant 0 : index
      %40 = vector.load %arg10[%c0_26, %c0_27] : memref<128x128xf32, #tpu.memory_space<vmem>>, vector<128x128xf32>
      %41 = arith.addf %40, %39 : vector<128x128xf32>
      %c0_28 = arith.constant 0 : index
      %c0_29 = arith.constant 0 : index
      %42 = vector.load %arg10[%c0_28, %c0_29] : memref<128x128xf32, #tpu.memory_space<vmem>>, vector<128x128xf32>
      tpu.vector_store %arg10[%c0_28, %c0_29], %41 {strides = array<i32>} : memref<128x128xf32, #tpu.memory_space<vmem>>, vector<128x128xf32>,
    } else {
    }
    %c7_i32 = arith.constant 7 : i32
    %18 = arith.cmpi eq, %arg1, %c7_i32 : i32
    %c1_i32_13 = arith.constant 1 : i32
    %19 = arith.cmpi eq, %arg2, %c1_i32_13 : i32
    %20 = arith.andi %18, %19 : i1
    %21 = arith.extui %20 : i1 to i32
    %c0_i32_14 = arith.constant 0 : i32
    %22 = arith.cmpi ne, %21, %c0_i32_14 : i32
    scf.if %22 {
      %c0_15 = arith.constant 0 : index
      %c0_16 = arith.constant 0 : index
      %23 = vector.load %arg10[%c0_15, %c0_16] : memref<128x128xf32, #tpu.memory_space<vmem>>, vector<128x128xf32>
      %cst_17 = arith.constant 0.000000e+00 : f32
      %24 = vector.broadcast %cst_17 : f32 to vector<128x128xf32>
      %25 = arith.maximumf %23, %24 : vector<128x128xf32>
      %c0_18 = arith.constant 0 : index
      %c0_19 = arith.constant 0 : index
      %26 = vector.load %arg10[%c0_18, %c0_19] : memref<128x128xf32, #tpu.memory_space<vmem>>, vector<128x128xf32>
      tpu.vector_store %arg10[%c0_18, %c0_19], %25 {strides = array<i32>} : memref<128x128xf32, #tpu.memory_space<vmem>>, vector<128x128xf32>,
    } else {
    }
    return
  }
  func.func @transform_0(%arg0: i32, %arg1: i32, %arg2: i32) -> (i32, i32) {
    %c0_i32 = arith.constant 0 : i32
    %c0_i32_0 = arith.constant 0 : i32
    %c0_i32_1 = arith.constant 0 : i32
    return %c0_i32, %c0_i32_0 : i32, i32
  }
  func.func @transform_1(%arg0: i32, %arg1: i32, %arg2: i32) -> (i32, i32, i32) {
    %c0_i32 = arith.constant 0 : i32
    return %arg1, %arg0, %arg2 : i32, i32, i32
  }
  func.func @transform_2(%arg0: i32, %arg1: i32, %arg2: i32) -> (i32, i32) {
    %c0_i32 = arith.constant 0 : i32
    %c0_i32_0 = arith.constant 0 : i32
    return %arg2, %c0_i32 : i32, i32
  }
  func.func @transform_3(%arg0: i32, %arg1: i32, %arg2: i32) -> (i32, i32) {
    %c0_i32 = arith.constant 0 : i32
    %c0_i32_0 = arith.constant 0 : i32
    return %arg0, %c0_i32 : i32, i32
  }
  func.func @transform_4(%arg0: i32, %arg1: i32, %arg2: i32) -> (i32, i32, i32) {
    %c0_i32 = arith.constant 0 : i32
    %c0_i32_0 = arith.constant 0 : i32
    %c0_i32_1 = arith.constant 0 : i32
    %c0_i32_2 = arith.constant 0 : i32
    return %c0_i32, %c0_i32_0, %c0_i32_1 : i32, i32, i32
  }
  func.func @transform_5(%arg0: i32, %arg1: i32, %arg2: i32) -> (i32, i32) {
    %c0_i32 = arith.constant 0 : i32
    %c0_i32_0 = arith.constant 0 : i32
    %c0_i32_1 = arith.constant 0 : i32
    return %c0_i32, %c0_i32_0 : i32, i32
  }
  func.func @transform_6(%arg0: i32, %arg1: i32, %arg2: i32) -> (i32, i32) {
    %c0_i32 = arith.constant 0 : i32
    %c0_i32_0 = arith.constant 0 : i32
    %c0_i32_1 = arith.constant 0 : i32
    return %c0_i32, %c0_i32_0 : i32, i32
  }
  func.func @transform_7(%arg0: i32, %arg1: i32, %arg2: i32) -> (i32, i32) {
    %c0_i32 = arith.constant 0 : i32
    %c0_i32_0 = arith.constant 0 : i32
    return %arg0, %c0_i32 : i32, i32
  }
}

module attributes {stable_mosaic.version = 11 : i64} {
  func.func @_rgcn_block_kernel(%arg0: i32, %arg1: i32, %arg2: i32, %arg3: memref<1x128x128xbf16, #tpu.memory_space<vmem>>, %arg4: memref<128x128xbf16, #tpu.memory_space<vmem>>, %arg5: memref<128x128xbf16, #tpu.memory_space<vmem>>, %arg6: memref<1x4x32x32xbf16, #tpu.memory_space<vmem>>, %arg7: memref<128x128xbf16, #tpu.memory_space<vmem>>, %arg8: memref<1x128xf32, #tpu.memory_space<vmem>>, %arg9: memref<128x128xf32, #tpu.memory_space<vmem>>, %arg10: memref<128x128xf32, #tpu.memory_space<vmem>>) attributes {dimension_semantics = [#tpu.dimension_semantics<parallel>, #tpu.dimension_semantics<arbitrary>, #tpu.dimension_semantics<arbitrary>], iteration_bounds = array<i64: 2, 8, 2>, scalar_prefetch = 0 : i64, scratch_operands = 1 : i64, tpu.core_type = #tpu.core_type<tc>, window_params = [{transform_indices = @transform_0, window_bounds = array<i64: 1, 128, 128>}, {transform_indices = @transform_1, window_bounds = array<i64: 128, 128>}, {transform_indices = @transform_2, window_bounds = array<i64: 128, 128>}, {transform_indices = @transform_3, window_bounds = array<i64: 1, 4, 32, 32>}, {pipeline_mode = #tpu.pipeline_mode<synchronous>, transform_indices = @transform_4, window_bounds = array<i64: 128, 128>}, {pipeline_mode = #tpu.pipeline_mode<synchronous>, transform_indices = @transform_5, window_bounds = array<i64: 1, 128>}, {transform_indices = @transform_6, window_bounds = array<i64: 128, 128>}]} {
    %c0_i32 = arith.constant 0 : i32
    %0 = arith.cmpi eq, %arg1, %c0_i32 : i32
    %c0_i32_0 = arith.constant 0 : i32
    %1 = arith.cmpi eq, %arg2, %c0_i32_0 : i32
    %2 = arith.andi %0, %1 : i1
    %3 = arith.extui %2 : i1 to i32
    %c0_i32_1 = arith.constant 0 : i32
    %4 = arith.cmpi ne, %3, %c0_i32_1 : i32
    scf.if %4 {
      %c0_15 = arith.constant 0 : index
      %c0_16 = arith.constant 0 : index
      %23 = vector.load %arg5[%c0_15, %c0_16] : memref<128x128xbf16, #tpu.memory_space<vmem>>, vector<128x128xbf16>
      %c0_17 = arith.constant 0 : index
      %c0_18 = arith.constant 0 : index
      %24 = vector.load %arg7[%c0_17, %c0_18] : memref<128x128xbf16, #tpu.memory_space<vmem>>, vector<128x128xbf16>
      %cst_19 = arith.constant dense<0.000000e+00> : vector<128x128xf32>
      %25 = tpu.matmul %23, %24, %cst_19 {dimension_numbers = #tpu.dot_dimension_numbers<[1], [0], [0], [1], [0, 0, 1, 1], [], []>} : vector<128x128xbf16>, vector<128x128xbf16>, vector<128x128xf32> -> vector<128x128xf32>
      %c0_20 = arith.constant 0 : index
      %c0_21 = arith.constant 0 : index
      %26 = vector.load %arg8[%c0_20, %c0_21] : memref<1x128xf32, #tpu.memory_space<vmem>>, vector<1x128xf32>
      %27 = vector.broadcast %26 : vector<1x128xf32> to vector<128x128xf32>
      %28 = arith.addf %25, %27 : vector<128x128xf32>
      %c0_22 = arith.constant 0 : index
      %c0_23 = arith.constant 0 : index
      %29 = vector.load %arg9[%c0_22, %c0_23] : memref<128x128xf32, #tpu.memory_space<vmem>>, vector<128x128xf32>
      tpu.vector_store %arg9[%c0_22, %c0_23], %28 {strides = array<i32>} : memref<128x128xf32, #tpu.memory_space<vmem>>, vector<128x128xf32>,
    } else {
    }
    %c0_i32_2 = arith.constant 0 : i32
    %5 = arith.cmpi eq, %arg2, %c0_i32_2 : i32
    %6 = arith.extui %5 : i1 to i32
    %c0_i32_3 = arith.constant 0 : i32
    %7 = arith.cmpi ne, %6, %c0_i32_3 : i32
    scf.if %7 {
      %cst_15 = arith.constant 0.000000e+00 : f32
      %23 = vector.broadcast %cst_15 : f32 to vector<128x128xf32>
      %c0_16 = arith.constant 0 : index
      %c0_17 = arith.constant 0 : index
      %24 = vector.load %arg10[%c0_16, %c0_17] : memref<128x128xf32, #tpu.memory_space<vmem>>, vector<128x128xf32>
      tpu.vector_store %arg10[%c0_16, %c0_17], %23 {strides = array<i32>} : memref<128x128xf32, #tpu.memory_space<vmem>>, vector<128x128xf32>,
    } else {
    }
    %c0 = arith.constant 0 : index
    %c0_4 = arith.constant 0 : index
    %8 = vector.load %arg10[%c0, %c0_4] : memref<128x128xf32, #tpu.memory_space<vmem>>, vector<128x128xf32>
    %c0_5 = arith.constant 0 : index
    %c0_6 = arith.constant 0 : index
    %c0_7 = arith.constant 0 : index
    %9 = vector.load %arg3[%c0_5, %c0_6, %c0_7] : memref<1x128x128xbf16, #tpu.memory_space<vmem>>, vector<1x128x128xbf16>
    %10 = vector.shape_cast %9 : vector<1x128x128xbf16> to vector<128x128xbf16>
    %c0_8 = arith.constant 0 : index
    %c0_9 = arith.constant 0 : index
    %11 = vector.load %arg4[%c0_8, %c0_9] : memref<128x128xbf16, #tpu.memory_space<vmem>>, vector<128x128xbf16>
    %cst = arith.constant dense<0.000000e+00> : vector<128x128xf32>
    %12 = tpu.matmul %10, %11, %cst {dimension_numbers = #tpu.dot_dimension_numbers<[1], [0], [0], [1], [0, 0, 1, 1], [], []>} : vector<128x128xbf16>, vector<128x128xbf16>, vector<128x128xf32> -> vector<128x128xf32>
    %13 = arith.addf %8, %12 : vector<128x128xf32>
    %c0_10 = arith.constant 0 : index
    %c0_11 = arith.constant 0 : index
    %14 = vector.load %arg10[%c0_10, %c0_11] : memref<128x128xf32, #tpu.memory_space<vmem>>, vector<128x128xf32>
    tpu.vector_store %arg10[%c0_10, %c0_11], %13 {strides = array<i32>} : memref<128x128xf32, #tpu.memory_space<vmem>>, vector<128x128xf32>,
    %c1_i32 = arith.constant 1 : i32
    %15 = arith.cmpi eq, %arg2, %c1_i32 : i32
    %16 = arith.extui %15 : i1 to i32
    %c0_i32_12 = arith.constant 0 : i32
    %17 = arith.cmpi ne, %16, %c0_i32_12 : i32
    scf.if %17 {
      %c0_15 = arith.constant 0 : index
      %c0_16 = arith.constant 0 : index
      %23 = vector.load %arg10[%c0_15, %c0_16] : memref<128x128xf32, #tpu.memory_space<vmem>>, vector<128x128xf32>
      %24 = arith.truncf %23 : vector<128x128xf32> to vector<128x128xbf16>
      %25 = vector.extract_strided_slice %24 {offsets = [0, 0], sizes = [128, 32], strides = [1, 1]} : vector<128x128xbf16> to vector<128x32xbf16>
      %c0_17 = arith.constant 0 : index
      %c0_18 = arith.constant 0 : index
      %c0_19 = arith.constant 0 : index
      %c0_20 = arith.constant 0 : index
      %26 = vector.load %arg6[%c0_17, %c0_18, %c0_19, %c0_20] : memref<1x4x32x32xbf16, #tpu.memory_space<vmem>>, vector<1x1x32x32xbf16>
      %27 = vector.shape_cast %26 : vector<1x1x32x32xbf16> to vector<32x32xbf16>
      %cst_21 = arith.constant dense<0.000000e+00> : vector<128x32xf32>
      %28 = tpu.matmul %25, %27, %cst_21 {dimension_numbers = #tpu.dot_dimension_numbers<[1], [0], [0], [1], [0, 0, 1, 1], [], []>} : vector<128x32xbf16>, vector<32x32xbf16>, vector<128x32xf32> -> vector<128x32xf32>
      %29 = vector.extract_strided_slice %24 {offsets = [0, 32], sizes = [128, 32], strides = [1, 1]} : vector<128x128xbf16> to vector<128x32xbf16>
      %c0_22 = arith.constant 0 : index
      %c1 = arith.constant 1 : index
      %c0_23 = arith.constant 0 : index
      %c0_24 = arith.constant 0 : index
      %30 = vector.load %arg6[%c0_22, %c1, %c0_23, %c0_24] : memref<1x4x32x32xbf16, #tpu.memory_space<vmem>>, vector<1x1x32x32xbf16>
      %31 = vector.shape_cast %30 : vector<1x1x32x32xbf16> to vector<32x32xbf16>
      %cst_25 = arith.constant dense<0.000000e+00> : vector<128x32xf32>
      %32 = tpu.matmul %29, %31, %cst_25 {dimension_numbers = #tpu.dot_dimension_numbers<[1], [0], [0], [1], [0, 0, 1, 1], [], []>} : vector<128x32xbf16>, vector<32x32xbf16>, vector<128x32xf32> -> vector<128x32xf32>
      %33 = vector.extract_strided_slice %24 {offsets = [0, 64], sizes = [128, 32], strides = [1, 1]} : vector<128x128xbf16> to vector<128x32xbf16>
      %c0_26 = arith.constant 0 : index
      %c2 = arith.constant 2 : index
      %c0_27 = arith.constant 0 : index
      %c0_28 = arith.constant 0 : index
      %34 = vector.load %arg6[%c0_26, %c2, %c0_27, %c0_28] : memref<1x4x32x32xbf16, #tpu.memory_space<vmem>>, vector<1x1x32x32xbf16>
      %35 = vector.shape_cast %34 : vector<1x1x32x32xbf16> to vector<32x32xbf16>
      %cst_29 = arith.constant dense<0.000000e+00> : vector<128x32xf32>
      %36 = tpu.matmul %33, %35, %cst_29 {dimension_numbers = #tpu.dot_dimension_numbers<[1], [0], [0], [1], [0, 0, 1, 1], [], []>} : vector<128x32xbf16>, vector<32x32xbf16>, vector<128x32xf32> -> vector<128x32xf32>
      %37 = vector.extract_strided_slice %24 {offsets = [0, 96], sizes = [128, 32], strides = [1, 1]} : vector<128x128xbf16> to vector<128x32xbf16>
      %c0_30 = arith.constant 0 : index
      %c3 = arith.constant 3 : index
      %c0_31 = arith.constant 0 : index
      %c0_32 = arith.constant 0 : index
      %38 = vector.load %arg6[%c0_30, %c3, %c0_31, %c0_32] : memref<1x4x32x32xbf16, #tpu.memory_space<vmem>>, vector<1x1x32x32xbf16>
      %39 = vector.shape_cast %38 : vector<1x1x32x32xbf16> to vector<32x32xbf16>
      %cst_33 = arith.constant dense<0.000000e+00> : vector<128x32xf32>
      %40 = tpu.matmul %37, %39, %cst_33 {dimension_numbers = #tpu.dot_dimension_numbers<[1], [0], [0], [1], [0, 0, 1, 1], [], []>} : vector<128x32xbf16>, vector<32x32xbf16>, vector<128x32xf32> -> vector<128x32xf32>
      %c0_34 = arith.constant 0 : index
      %c0_35 = arith.constant 0 : index
      %41 = vector.load %arg9[%c0_34, %c0_35] : memref<128x128xf32, #tpu.memory_space<vmem>>, vector<128x128xf32>
      %42 = tpu.concatenate %28, %32, %36, %40 in 1 : vector<128x32xf32>, vector<128x32xf32>, vector<128x32xf32>, vector<128x32xf32> -> vector<128x128xf32>
      %43 = arith.addf %41, %42 : vector<128x128xf32>
      %c0_36 = arith.constant 0 : index
      %c0_37 = arith.constant 0 : index
      %44 = vector.load %arg9[%c0_36, %c0_37] : memref<128x128xf32, #tpu.memory_space<vmem>>, vector<128x128xf32>
      tpu.vector_store %arg9[%c0_36, %c0_37], %43 {strides = array<i32>} : memref<128x128xf32, #tpu.memory_space<vmem>>, vector<128x128xf32>,
    } else {
    }
    %c7_i32 = arith.constant 7 : i32
    %18 = arith.cmpi eq, %arg1, %c7_i32 : i32
    %c1_i32_13 = arith.constant 1 : i32
    %19 = arith.cmpi eq, %arg2, %c1_i32_13 : i32
    %20 = arith.andi %18, %19 : i1
    %21 = arith.extui %20 : i1 to i32
    %c0_i32_14 = arith.constant 0 : i32
    %22 = arith.cmpi ne, %21, %c0_i32_14 : i32
    scf.if %22 {
      %c0_15 = arith.constant 0 : index
      %c0_16 = arith.constant 0 : index
      %23 = vector.load %arg9[%c0_15, %c0_16] : memref<128x128xf32, #tpu.memory_space<vmem>>, vector<128x128xf32>
      %cst_17 = arith.constant 0.000000e+00 : f32
      %24 = vector.broadcast %cst_17 : f32 to vector<128x128xf32>
      %25 = arith.maximumf %23, %24 : vector<128x128xf32>
      %c0_18 = arith.constant 0 : index
      %c0_19 = arith.constant 0 : index
      %26 = vector.load %arg9[%c0_18, %c0_19] : memref<128x128xf32, #tpu.memory_space<vmem>>, vector<128x128xf32>
      tpu.vector_store %arg9[%c0_18, %c0_19], %25 {strides = array<i32>} : memref<128x128xf32, #tpu.memory_space<vmem>>, vector<128x128xf32>,
    } else {
    }
    return
  }
  func.func @transform_0(%arg0: i32, %arg1: i32, %arg2: i32) -> (i32, i32, i32) {
    %c0_i32 = arith.constant 0 : i32
    return %arg1, %arg0, %arg2 : i32, i32, i32
  }
  func.func @transform_1(%arg0: i32, %arg1: i32, %arg2: i32) -> (i32, i32) {
    %c0_i32 = arith.constant 0 : i32
    %c0_i32_0 = arith.constant 0 : i32
    return %arg2, %c0_i32 : i32, i32
  }
  func.func @transform_2(%arg0: i32, %arg1: i32, %arg2: i32) -> (i32, i32) {
    %c0_i32 = arith.constant 0 : i32
    %c0_i32_0 = arith.constant 0 : i32
    return %arg0, %c0_i32 : i32, i32
  }
  func.func @transform_3(%arg0: i32, %arg1: i32, %arg2: i32) -> (i32, i32, i32, i32) {
    %c0_i32 = arith.constant 0 : i32
    %c0_i32_0 = arith.constant 0 : i32
    %c0_i32_1 = arith.constant 0 : i32
    %c0_i32_2 = arith.constant 0 : i32
    return %arg1, %c0_i32, %c0_i32_0, %c0_i32_1 : i32, i32, i32, i32
  }
  func.func @transform_4(%arg0: i32, %arg1: i32, %arg2: i32) -> (i32, i32) {
    %c0_i32 = arith.constant 0 : i32
    %c0_i32_0 = arith.constant 0 : i32
    %c0_i32_1 = arith.constant 0 : i32
    return %c0_i32, %c0_i32_0 : i32, i32
  }
  func.func @transform_5(%arg0: i32, %arg1: i32, %arg2: i32) -> (i32, i32) {
    %c0_i32 = arith.constant 0 : i32
    %c0_i32_0 = arith.constant 0 : i32
    %c0_i32_1 = arith.constant 0 : i32
    return %c0_i32, %c0_i32_0 : i32, i32
  }
  func.func @transform_6(%arg0: i32, %arg1: i32, %arg2: i32) -> (i32, i32) {
    %c0_i32 = arith.constant 0 : i32
    %c0_i32_0 = arith.constant 0 : i32
    return %arg0, %c0_i32 : i32, i32
  }
}

module attributes {stable_mosaic.version = 11 : i64} {
  func.func @kernel(%arg0: i32, %arg1: memref<256x128xf32, #tpu.memory_space<vmem>>, %arg2: memref<8x128xf32, #tpu.memory_space<vmem>>, %arg3: memref<128x1xi32, #tpu.memory_space<vmem>>, %arg4: memref<128x1xi32, #tpu.memory_space<vmem>>, %arg5: memref<128x1xi32, #tpu.memory_space<vmem>>, %arg6: memref<128x1xi32, #tpu.memory_space<vmem>>, %arg7: memref<128x1xi32, #tpu.memory_space<vmem>>, %arg8: memref<128x1xi32, #tpu.memory_space<vmem>>, %arg9: memref<1x1xf32, #tpu.memory_space<vmem>>, %arg10: memref<1x1xf32, #tpu.memory_space<vmem>>) attributes {dimension_semantics = [#tpu.dimension_semantics<arbitrary>], iteration_bounds = array<i64: 2>, scalar_prefetch = 0 : i64, scratch_operands = 1 : i64, tpu.core_type = #tpu.core_type<tc>, window_params = [{pipeline_mode = #tpu.pipeline_mode<synchronous>, transform_indices = @transform_0, window_bounds = array<i64: 256, 128>}, {pipeline_mode = #tpu.pipeline_mode<synchronous>, transform_indices = @transform_1, window_bounds = array<i64: 8, 128>}, {transform_indices = @transform_2, window_bounds = array<i64: 128, 1>}, {transform_indices = @transform_3, window_bounds = array<i64: 128, 1>}, {transform_indices = @transform_4, window_bounds = array<i64: 128, 1>}, {transform_indices = @transform_5, window_bounds = array<i64: 128, 1>}, {transform_indices = @transform_6, window_bounds = array<i64: 128, 1>}, {transform_indices = @transform_7, window_bounds = array<i64: 128, 1>}, {pipeline_mode = #tpu.pipeline_mode<synchronous>, transform_indices = @transform_8, window_bounds = array<i64: 1, 1>}]} {
    %c0_i32 = arith.constant 0 : i32
    %0 = arith.cmpi eq, %arg0, %c0_i32 : i32
    %1 = arith.extui %0 : i1 to i32
    %c0_i32_0 = arith.constant 0 : i32
    %2 = arith.cmpi ne, %1, %c0_i32_0 : i32
    scf.if %2 {
      %cst_39 = arith.constant 0.000000e+00 : f32
      %85 = vector.broadcast %cst_39 : f32 to vector<1x1xf32>
      %c0_40 = arith.constant 0 : index
      %c0_41 = arith.constant 0 : index
      %86 = vector.load %arg10[%c0_40, %c0_41] : memref<1x1xf32, #tpu.memory_space<vmem>>, vector<1x1xf32>
      tpu.vector_store %arg10[%c0_40, %c0_41], %85 {strides = array<i32>} : memref<1x1xf32, #tpu.memory_space<vmem>>, vector<1x1xf32>,
    } else {
    }
    %c0 = arith.constant 0 : index
    %c0_1 = arith.constant 0 : index
    %3 = vector.load %arg3[%c0, %c0_1] : memref<128x1xi32, #tpu.memory_space<vmem>>, vector<128x1xi32>
    %4 = tpu.iota {dimensions = array<i32: 1>} : vector<128x256xi32>
    %5 = vector.broadcast %3 : vector<128x1xi32> to vector<128x256xi32>
    %6 = arith.cmpi eq, %5, %4 : vector<128x256xi32>
    %7 = arith.extui %6 : vector<128x256xi1> to vector<128x256xi32>
    %8 = arith.sitofp %7 : vector<128x256xi32> to vector<128x256xf32>
    %c0_2 = arith.constant 0 : index
    %c0_3 = arith.constant 0 : index
    %9 = vector.load %arg1[%c0_2, %c0_3] : memref<256x128xf32, #tpu.memory_space<vmem>>, vector<256x128xf32>
    %cst = arith.constant dense<0.000000e+00> : vector<128x128xf32>
    %10 = tpu.matmul %8, %9, %cst {dimension_numbers = #tpu.dot_dimension_numbers<[1], [0], [0], [1], [0, 0, 1, 1], [], []>} : vector<128x256xf32>, vector<256x128xf32>, vector<128x128xf32> -> vector<128x128xf32>
    %c0_4 = arith.constant 0 : index
    %c0_5 = arith.constant 0 : index
    %11 = vector.load %arg4[%c0_4, %c0_5] : memref<128x1xi32, #tpu.memory_space<vmem>>, vector<128x1xi32>
    %12 = tpu.iota {dimensions = array<i32: 1>} : vector<128x8xi32>
    %13 = vector.broadcast %11 : vector<128x1xi32> to vector<128x8xi32>
    %14 = arith.cmpi eq, %13, %12 : vector<128x8xi32>
    %15 = arith.extui %14 : vector<128x8xi1> to vector<128x8xi32>
    %16 = arith.sitofp %15 : vector<128x8xi32> to vector<128x8xf32>
    %c0_6 = arith.constant 0 : index
    %c0_7 = arith.constant 0 : index
    %17 = vector.load %arg2[%c0_6, %c0_7] : memref<8x128xf32, #tpu.memory_space<vmem>>, vector<8x128xf32>
    %cst_8 = arith.constant dense<0.000000e+00> : vector<128x128xf32>
    %18 = tpu.matmul %16, %17, %cst_8 {dimension_numbers = #tpu.dot_dimension_numbers<[1], [0], [0], [1], [0, 0, 1, 1], [], []>} : vector<128x8xf32>, vector<8x128xf32>, vector<128x128xf32> -> vector<128x128xf32>
    %19 = arith.addf %10, %18 : vector<128x128xf32>
    %c0_9 = arith.constant 0 : index
    %c0_10 = arith.constant 0 : index
    %20 = vector.load %arg5[%c0_9, %c0_10] : memref<128x1xi32, #tpu.memory_space<vmem>>, vector<128x1xi32>
    %21 = tpu.iota {dimensions = array<i32: 1>} : vector<128x256xi32>
    %22 = vector.broadcast %20 : vector<128x1xi32> to vector<128x256xi32>
    %23 = arith.cmpi eq, %22, %21 : vector<128x256xi32>
    %24 = arith.extui %23 : vector<128x256xi1> to vector<128x256xi32>
    %25 = arith.sitofp %24 : vector<128x256xi32> to vector<128x256xf32>
    %c0_11 = arith.constant 0 : index
    %c0_12 = arith.constant 0 : index
    %26 = vector.load %arg1[%c0_11, %c0_12] : memref<256x128xf32, #tpu.memory_space<vmem>>, vector<256x128xf32>
    %cst_13 = arith.constant dense<0.000000e+00> : vector<128x128xf32>
    %27 = tpu.matmul %25, %26, %cst_13 {dimension_numbers = #tpu.dot_dimension_numbers<[1], [0], [0], [1], [0, 0, 1, 1], [], []>} : vector<128x256xf32>, vector<256x128xf32>, vector<128x128xf32> -> vector<128x128xf32>
    %28 = arith.subf %19, %27 : vector<128x128xf32>
    %c0_14 = arith.constant 0 : index
    %c0_15 = arith.constant 0 : index
    %29 = vector.load %arg6[%c0_14, %c0_15] : memref<128x1xi32, #tpu.memory_space<vmem>>, vector<128x1xi32>
    %30 = tpu.iota {dimensions = array<i32: 1>} : vector<128x256xi32>
    %31 = vector.broadcast %29 : vector<128x1xi32> to vector<128x256xi32>
    %32 = arith.cmpi eq, %31, %30 : vector<128x256xi32>
    %33 = arith.extui %32 : vector<128x256xi1> to vector<128x256xi32>
    %34 = arith.sitofp %33 : vector<128x256xi32> to vector<128x256xf32>
    %c0_16 = arith.constant 0 : index
    %c0_17 = arith.constant 0 : index
    %35 = vector.load %arg1[%c0_16, %c0_17] : memref<256x128xf32, #tpu.memory_space<vmem>>, vector<256x128xf32>
    %cst_18 = arith.constant dense<0.000000e+00> : vector<128x128xf32>
    %36 = tpu.matmul %34, %35, %cst_18 {dimension_numbers = #tpu.dot_dimension_numbers<[1], [0], [0], [1], [0, 0, 1, 1], [], []>} : vector<128x256xf32>, vector<256x128xf32>, vector<128x128xf32> -> vector<128x128xf32>
    %c0_19 = arith.constant 0 : index
    %c0_20 = arith.constant 0 : index
    %37 = vector.load %arg7[%c0_19, %c0_20] : memref<128x1xi32, #tpu.memory_space<vmem>>, vector<128x1xi32>
    %38 = tpu.iota {dimensions = array<i32: 1>} : vector<128x8xi32>
    %39 = vector.broadcast %37 : vector<128x1xi32> to vector<128x8xi32>
    %40 = arith.cmpi eq, %39, %38 : vector<128x8xi32>
    %41 = arith.extui %40 : vector<128x8xi1> to vector<128x8xi32>
    %42 = arith.sitofp %41 : vector<128x8xi32> to vector<128x8xf32>
    %c0_21 = arith.constant 0 : index
    %c0_22 = arith.constant 0 : index
    %43 = vector.load %arg2[%c0_21, %c0_22] : memref<8x128xf32, #tpu.memory_space<vmem>>, vector<8x128xf32>
    %cst_23 = arith.constant dense<0.000000e+00> : vector<128x128xf32>
    %44 = tpu.matmul %42, %43, %cst_23 {dimension_numbers = #tpu.dot_dimension_numbers<[1], [0], [0], [1], [0, 0, 1, 1], [], []>} : vector<128x8xf32>, vector<8x128xf32>, vector<128x128xf32> -> vector<128x128xf32>
    %45 = arith.addf %36, %44 : vector<128x128xf32>
    %c0_24 = arith.constant 0 : index
    %c0_25 = arith.constant 0 : index
    %46 = vector.load %arg8[%c0_24, %c0_25] : memref<128x1xi32, #tpu.memory_space<vmem>>, vector<128x1xi32>
    %47 = tpu.iota {dimensions = array<i32: 1>} : vector<128x256xi32>
    %48 = vector.broadcast %46 : vector<128x1xi32> to vector<128x256xi32>
    %49 = arith.cmpi eq, %48, %47 : vector<128x256xi32>
    %50 = arith.extui %49 : vector<128x256xi1> to vector<128x256xi32>
    %51 = arith.sitofp %50 : vector<128x256xi32> to vector<128x256xf32>
    %c0_26 = arith.constant 0 : index
    %c0_27 = arith.constant 0 : index
    %52 = vector.load %arg1[%c0_26, %c0_27] : memref<256x128xf32, #tpu.memory_space<vmem>>, vector<256x128xf32>
    %cst_28 = arith.constant dense<0.000000e+00> : vector<128x128xf32>
    %53 = tpu.matmul %51, %52, %cst_28 {dimension_numbers = #tpu.dot_dimension_numbers<[1], [0], [0], [1], [0, 0, 1, 1], [], []>} : vector<128x256xf32>, vector<256x128xf32>, vector<128x128xf32> -> vector<128x128xf32>
    %54 = arith.subf %45, %53 : vector<128x128xf32>
    %55 = arith.mulf %28, %28 : vector<128x128xf32>
    %cst_29 = arith.constant dense<0.000000e+00> : vector<128xf32>
    %56 = vector.multi_reduction <add>, %55, %cst_29 [1] : vector<128x128xf32> to vector<128xf32>
    %57 = vector.shape_cast %56 : vector<128xf32> to vector<128x1xf32>
    %58 = math.sqrt %57 : vector<128x1xf32>
    %59 = arith.mulf %54, %54 : vector<128x128xf32>
    %cst_30 = arith.constant dense<0.000000e+00> : vector<128xf32>
    %60 = vector.multi_reduction <add>, %59, %cst_30 [1] : vector<128x128xf32> to vector<128xf32>
    %61 = vector.shape_cast %60 : vector<128xf32> to vector<128x1xf32>
    %62 = math.sqrt %61 : vector<128x1xf32>
    %c128_i32 = arith.constant 128 : i32
    %63 = arith.muli %arg0, %c128_i32 : i32
    %64 = tpu.iota {dimensions = array<i32: 0>} : vector<128x1xi32>
    %65 = vector.broadcast %63 : i32 to vector<128x1xi32>
    %66 = arith.addi %65, %64 : vector<128x1xi32>
    %c256_i32 = arith.constant 256 : i32
    %67 = vector.broadcast %c256_i32 : i32 to vector<128x1xi32>
    %68 = arith.cmpi slt, %66, %67 : vector<128x1xi32>
    %69 = arith.extui %68 : vector<128x1xi1> to vector<128x1xi32>
    %70 = arith.sitofp %69 : vector<128x1xi32> to vector<128x1xf32>
    %71 = arith.subf %58, %62 : vector<128x1xf32>
    %cst_31 = arith.constant 1.000000e+00 : f32
    %72 = vector.broadcast %cst_31 : f32 to vector<128x1xf32>
    %73 = arith.addf %71, %72 : vector<128x1xf32>
    %cst_32 = arith.constant 0.000000e+00 : f32
    %74 = vector.broadcast %cst_32 : f32 to vector<128x1xf32>
    %75 = arith.maximumf %73, %74 : vector<128x1xf32>
    %76 = arith.mulf %75, %70 : vector<128x1xf32>
    %c0_33 = arith.constant 0 : index
    %c0_34 = arith.constant 0 : index
    %77 = vector.load %arg10[%c0_33, %c0_34] : memref<1x1xf32, #tpu.memory_space<vmem>>, vector<1x1xf32>
    %cst_35 = arith.constant dense<0.000000e+00> : vector<1xf32>
    %78 = vector.multi_reduction <add>, %76, %cst_35 [0] : vector<128x1xf32> to vector<1xf32>
    %79 = vector.shape_cast %78 : vector<1xf32> to vector<1x1xf32>
    %80 = arith.addf %77, %79 : vector<1x1xf32>
    %c0_36 = arith.constant 0 : index
    %c0_37 = arith.constant 0 : index
    %81 = vector.load %arg10[%c0_36, %c0_37] : memref<1x1xf32, #tpu.memory_space<vmem>>, vector<1x1xf32>
    tpu.vector_store %arg10[%c0_36, %c0_37], %80 {strides = array<i32>} : memref<1x1xf32, #tpu.memory_space<vmem>>, vector<1x1xf32>,
    %c1_i32 = arith.constant 1 : i32
    %82 = arith.cmpi eq, %arg0, %c1_i32 : i32
    %83 = arith.extui %82 : i1 to i32
    %c0_i32_38 = arith.constant 0 : i32
    %84 = arith.cmpi ne, %83, %c0_i32_38 : i32
    scf.if %84 {
      %c0_39 = arith.constant 0 : index
      %c0_40 = arith.constant 0 : index
      %85 = vector.load %arg10[%c0_39, %c0_40] : memref<1x1xf32, #tpu.memory_space<vmem>>, vector<1x1xf32>
      %cst_41 = arith.constant 3.906250e-03 : f32
      %86 = vector.broadcast %cst_41 : f32 to vector<1x1xf32>
      %87 = arith.mulf %85, %86 : vector<1x1xf32>
      %c0_42 = arith.constant 0 : index
      %c0_43 = arith.constant 0 : index
      %88 = vector.load %arg9[%c0_42, %c0_43] : memref<1x1xf32, #tpu.memory_space<vmem>>, vector<1x1xf32>
      tpu.vector_store %arg9[%c0_42, %c0_43], %87 {strides = array<i32>} : memref<1x1xf32, #tpu.memory_space<vmem>>, vector<1x1xf32>,
    } else {
    }
    return
  }
  func.func @transform_0(%arg0: i32) -> (i32, i32) {
    %c0_i32 = arith.constant 0 : i32
    %c0_i32_0 = arith.constant 0 : i32
    %c0_i32_1 = arith.constant 0 : i32
    return %c0_i32, %c0_i32_0 : i32, i32
  }
  func.func @transform_1(%arg0: i32) -> (i32, i32) {
    %c0_i32 = arith.constant 0 : i32
    %c0_i32_0 = arith.constant 0 : i32
    %c0_i32_1 = arith.constant 0 : i32
    return %c0_i32, %c0_i32_0 : i32, i32
  }
  func.func @transform_2(%arg0: i32) -> (i32, i32) {
    %c0_i32 = arith.constant 0 : i32
    %c0_i32_0 = arith.constant 0 : i32
    return %arg0, %c0_i32 : i32, i32
  }
  func.func @transform_3(%arg0: i32) -> (i32, i32) {
    %c0_i32 = arith.constant 0 : i32
    %c0_i32_0 = arith.constant 0 : i32
    return %arg0, %c0_i32 : i32, i32
  }
  func.func @transform_4(%arg0: i32) -> (i32, i32) {
    %c0_i32 = arith.constant 0 : i32
    %c0_i32_0 = arith.constant 0 : i32
    return %arg0, %c0_i32 : i32, i32
  }
  func.func @transform_5(%arg0: i32) -> (i32, i32) {
    %c0_i32 = arith.constant 0 : i32
    %c0_i32_0 = arith.constant 0 : i32
    return %arg0, %c0_i32 : i32, i32
  }
  func.func @transform_6(%arg0: i32) -> (i32, i32) {
    %c0_i32 = arith.constant 0 : i32
    %c0_i32_0 = arith.constant 0 : i32
    return %arg0, %c0_i32 : i32, i32
  }
  func.func @transform_7(%arg0: i32) -> (i32, i32) {
    %c0_i32 = arith.constant 0 : i32
    %c0_i32_0 = arith.constant 0 : i32
    return %arg0, %c0_i32 : i32, i32
  }
  func.func @transform_8(%arg0: i32) -> (i32, i32) {
    %c0_i32 = arith.constant 0 : i32
    %c0_i32_0 = arith.constant 0 : i32
    %c0_i32_1 = arith.constant 0 : i32
    return %c0_i32, %c0_i32_0 : i32, i32
  }
}

</mosaic_0001>

<llo_original>
// kernel: net_forward.3
$region0: #{net_forward.3}
  #allocation0 [shape = 'u32[]', space=smem, size = 0x4, offset = 0x4, fixed_abs, tag = 'smem constant byte address 0x4 - core index']
  #allocation1 [shape = 'u32[72,128]{1,0:T(1,128)}', space=vmem, size = 0x9000, scoped, tag = 'internal scratch']
  #allocation2 [shape = 'f32[128,128]{1,0:T(8,128)}', space=vmem, size = 0x10000, scoped, tag = 'scratch operand']
  %s0 = inlined_call_operand.vmem [shape: f32[8,2], index: 0, kind: input, shape index: {}]
  %s1 = inlined_call_operand.vmem [shape: bf16[8,256,256], index: 1, kind: input, shape index: {}]
  %s2 = inlined_call_operand.vmem [shape: bf16[256,128], index: 2, kind: input, shape index: {}, may-alias: {2,3}]
  %s3 = inlined_call_operand.vmem [shape: bf16[256,128], index: 3, kind: input, shape index: {}, may-alias: {2,3}]
  %s4 = inlined_call_operand.vmem [shape: bf16[2,128,128], index: 4, kind: input, shape index: {}]
  %s5 = inlined_call_operand.vmem [shape: bf16[128,128], index: 5, kind: input, shape index: {}]
  %s6 = inlined_call_operand.vmem [shape: f32[1,128], index: 6, kind: input, shape index: {}]
  %s7 = inlined_call_operand.vmem [shape: f32[256,128], index: 7, kind: output, shape index: {}]
  %s8 = sld [smem:[#allocation0]]
  $region122: #{net_forward.3} parent=0
    _
  %s10 = ssub.s32 1, %s8
  %s11 = scalar_select 0, %s10, %s8
  $region1: #{net_forward.3} parent=0
    #allocation3 [shape = 'u8[4096]{0}', space=smem, size = 0x1000, scoped, tag = 'input window, operand 0, single buffered']
    #allocation4 [shape = 's32[2]{0}', space=sflag, size = 0x8, scoped, tag = 'scoped memory for net_forward.3']
    #allocation5 [shape = 'u8[65536]{0}', space=vmem, size = 0x10000, scoped, tag = 'input window, operand 1']
    %12 = vsyncpa [#allocation4], 0
    loop: start=0, step=1, limit=34
    $region2: #{net_forward.3} parent=1 // loop_pre_header
      _
    $region3: #{net_forward.3} parent=1 // loop_header
      %s14 = sphi 0, %s18
      %p15 = scmp.ge.s32.totalorder %s14, 34
      %s21 = sphi 0, %s40
      %s22 = sphi 0, %s36
      %s23 = sphi 0, %s32
      %s24 = sphi 0, %s21
      %s25 = sphi 0, %s22
      %s26 = sphi 0, %s23
      %s27 = sphi 0, %s24
      %s28 = sphi 0, %s25
      %s29 = sphi 0, %s26
      %s41 = sphi 0, %s41
      %s43 = sphi 0, %s41
      %s44 = sphi 0, %s43
      %s58 = sphi 0, %s44
      %s68 = sphi 0, %s70
      %s71 = sphi 0, %s68
      %s72 = sphi 0, %s71
      %s88 = sphi 0, %s72
      %s94 = sphi 0, %s96
      %s97 = sphi 0, %s94
      %s98 = sphi 0, %s97
      %s114 = sphi 0, %s98
      %s120 = sphi 0, %s122
      %s123 = sphi 0, %s120
      %s124 = sphi 0, %s123
      %s140 = sphi 0, %s124
      %s144 = sphi 0, %s144
      %s146 = sphi 0, %s144
      %s147 = sphi 0, %s146
      %s161 = sphi 0, %s147
      %s165 = sphi 0, %s165
      %s167 = sphi 0, %s165
      %s168 = sphi 0, %s167
      %s182 = sphi 0, %s168
      %s186 = sphi 0, %s186
      %s188 = sphi 0, %s186
      %s189 = sphi 0, %s188
      %s203 = sphi 0, %s189
      %s209 = sphi 0, %s211
      %s212 = sphi 0, %s209
      %s213 = sphi 0, %s212
      %s229 = sphi 0, %s213
    $region4: #{net_forward.3} parent=1 // loop_header_branch
      %17 = sbr.rel (%p15) target = $region8
    $region5: #{net_forward.3} parent=1 // loop_body
      %s19 = ssub.s32 %s14, 1
      %s20 = ssub.s32 %s14, 2
      %s30 = sadd.s32 1, %s23
      %p31 = scmp.ge.s32.totalorder %s30, 2
      %s32 = scalar_select %p31, 0, %s30
      %s33 = sadd.s32 1, %s22
      %s34 = scalar_select %p31, %s33, %s22
      %p35 = scmp.ge.s32.totalorder %s34, 8
      %s36 = scalar_select %p35, 0, %s34
      %s37 = sadd.s32 1, %s21
      %s38 = scalar_select %p35, %s37, %s21
      %p39 = scmp.ge.s32.totalorder %s38, 2
      %s40 = scalar_select %p39, 0, %s38
      %s42 = sadd.s32 %s41, 1
      %p45 = scmp.eq.s32.totalorder %s14, 31
      %p46 = scmp.ne.s32.totalorder %s41, %s43
      %p47 = scmp.eq.s32.totalorder %s14, 0
      %p48 = por %p46, %p47
      %p49 = scmp.ne.s32.totalorder %s41, %s43
      %p50 = scmp.eq.s32.totalorder %s19, 31
      %p51 = por %p49, %p50
      %p52 = scmp.ne.s32.totalorder %s43, %s44
      %p53 = scmp.eq.s32.totalorder %s19, 0
      %p54 = por %p52, %p53
      %p55 = scmp.ne.s32.totalorder %s43, %s44
      %p56 = scmp.eq.s32.totalorder %s20, 31
      %p57 = por %p55, %p56
      %p59 = scmp.ne.s32.totalorder %s44, %s58
      %p60 = scmp.eq.s32.totalorder %s20, 0
      %p61 = por %p59, %p60
      %s62 = ssub.s32 %s22, %s36
      %s63 = ssub.s32 %s21, %s40
      %s64 = sor.u32 %s62, %s63
      %s65 = ssub.s32 %s23, %s32
      %s66 = sor.u32 %s64, %s65
      %p67 = scmp.eq.s32.totalorder %s66, 0
      %s69 = sadd.s32 %s68, 1
      %s70 = scalar_select %p67, %s68, %s69
      %p73 = pneg %p67
      %p74 = scmp.eq.s32.totalorder %s14, 31
      %p75 = por %p73, %p74
      %p76 = scmp.ne.s32.totalorder %s68, %s71
      %p77 = scmp.eq.s32.totalorder %s14, 0
      %p78 = por %p76, %p77
      %p79 = scmp.ne.s32.totalorder %s68, %s71
      %p80 = scmp.eq.s32.totalorder %s19, 31
      %p81 = por %p79, %p80
      %p82 = scmp.ne.s32.totalorder %s71, %s72
      %p83 = scmp.eq.s32.totalorder %s19, 0
      %p84 = por %p82, %p83
      %p85 = scmp.ne.s32.totalorder %s71, %s72
      %p86 = scmp.eq.s32.totalorder %s20, 31
      %p87 = por %p85, %p86
      %p89 = scmp.ne.s32.totalorder %s72, %s88
      %p90 = scmp.eq.s32.totalorder %s20, 0
      %p91 = por %p89, %p90
      %s92 = ssub.s32 %s23, %s32
      %p93 = scmp.eq.s32.totalorder %s92, 0
      %s95 = sadd.s32 %s94, 1
      %s96 = scalar_select %p93, %s94, %s95
      %p99 = pneg %p93
      %p100 = scmp.eq.s32.totalorder %s14, 31
      %p101 = por %p99, %p100
      %p102 = scmp.ne.s32.totalorder %s94, %s97
      %p103 = scmp.eq.s32.totalorder %s14, 0
      %p104 = por %p102, %p103
      %p105 = scmp.ne.s32.totalorder %s94, %s97
      %p106 = scmp.eq.s32.totalorder %s19, 31
      %p107 = por %p105, %p106
      %p108 = scmp.ne.s32.totalorder %s97, %s98
      %p109 = scmp.eq.s32.totalorder %s19, 0
      %p110 = por %p108, %p109
      %p111 = scmp.ne.s32.totalorder %s97, %s98
      %p112 = scmp.eq.s32.totalorder %s20, 31
      %p113 = por %p111, %p112
      %p115 = scmp.ne.s32.totalorder %s98, %s114
      %p116 = scmp.eq.s32.totalorder %s20, 0
      %p117 = por %p115, %p116
      %s118 = ssub.s32 %s21, %s40
      %p119 = scmp.eq.s32.totalorder %s118, 0
      %s121 = sadd.s32 %s120, 1
      %s122 = scalar_select %p119, %s120, %s121
      %p125 = pneg %p119
      %p126 = scmp.eq.s32.totalorder %s14, 31
      %p127 = por %p125, %p126
      %p128 = scmp.ne.s32.totalorder %s120, %s123
      %p129 = scmp.eq.s32.totalorder %s14, 0
      %p130 = por %p128, %p129
      %p131 = scmp.ne.s32.totalorder %s120, %s123
      %p132 = scmp.eq.s32.totalorder %s19, 31
      %p133 = por %p131, %p132
      %p134 = scmp.ne.s32.totalorder %s123, %s124
      %p135 = scmp.eq.s32.totalorder %s19, 0
      %p136 = por %p134, %p135
      %p137 = scmp.ne.s32.totalorder %s123, %s124
      %p138 = scmp.eq.s32.totalorder %s20, 31
      %p139 = por %p137, %p138
      %p141 = scmp.ne.s32.totalorder %s124, %s140
      %p142 = scmp.eq.s32.totalorder %s20, 0
      %p143 = por %p141, %p142
      %s145 = sadd.s32 %s144, 1
      %p148 = scmp.eq.s32.totalorder %s14, 31
      %p149 = scmp.ne.s32.totalorder %s144, %s146
      %p150 = scmp.eq.s32.totalorder %s14, 0
      %p151 = por %p149, %p150
      %p152 = scmp.ne.s32.totalorder %s144, %s146
      %p153 = scmp.eq.s32.totalorder %s19, 31
      %p154 = por %p152, %p153
      %p155 = scmp.ne.s32.totalorder %s146, %s147
      %p156 = scmp.eq.s32.totalorder %s19, 0
      %p157 = por %p155, %p156
      %p158 = scmp.ne.s32.totalorder %s146, %s147
      %p159 = scmp.eq.s32.totalorder %s20, 31
      %p160 = por %p158, %p159
      %p162 = scmp.ne.s32.totalorder %s147, %s161
      %p163 = scmp.eq.s32.totalorder %s20, 0
      %p164 = por %p162, %p163
      %s166 = sadd.s32 %s165, 1
      %p169 = scmp.eq.s32.totalorder %s14, 31
      %p170 = scmp.ne.s32.totalorder %s165, %s167
      %p171 = scmp.eq.s32.totalorder %s14, 0
      %p172 = por %p170, %p171
      %p173 = scmp.ne.s32.totalorder %s165, %s167
      %p174 = scmp.eq.s32.totalorder %s19, 31
      %p175 = por %p173, %p174
      %p176 = scmp.ne.s32.totalorder %s167, %s168
      %p177 = scmp.eq.s32.totalorder %s19, 0
      %p178 = por %p176, %p177
      %p179 = scmp.ne.s32.totalorder %s167, %s168
      %p180 = scmp.eq.s32.totalorder %s20, 31
      %p181 = por %p179, %p180
      %p183 = scmp.ne.s32.totalorder %s168, %s182
      %p184 = scmp.eq.s32.totalorder %s20, 0
      %p185 = por %p183, %p184
      %s187 = sadd.s32 %s186, 1
      %p190 = scmp.eq.s32.totalorder %s14, 31
      %p191 = scmp.ne.s32.totalorder %s186, %s188
      %p192 = scmp.eq.s32.totalorder %s14, 0
      %p193 = por %p191, %p192
      %p194 = scmp.ne.s32.totalorder %s186, %s188
      %p195 = scmp.eq.s32.totalorder %s19, 31
      %p196 = por %p194, %p195
      %p197 = scmp.ne.s32.totalorder %s188, %s189
      %p198 = scmp.eq.s32.totalorder %s19, 0
      %p199 = por %p197, %p198
      %p200 = scmp.ne.s32.totalorder %s188, %s189
      %p201 = scmp.eq.s32.totalorder %s20, 31
      %p202 = por %p200, %p201
      %p204 = scmp.ne.s32.totalorder %s189, %s203
      %p205 = scmp.eq.s32.totalorder %s20, 0
      %p206 = por %p204, %p205
      %s207 = ssub.s32 %s21, %s40
      %p208 = scmp.eq.s32.totalorder %s207, 0
      %s210 = sadd.s32 %s209, 1
      %s211 = scalar_select %p208, %s209, %s210
      %p214 = pneg %p208
      %p215 = scmp.eq.s32.totalorder %s14, 31
      %p216 = por %p214, %p215
      %p217 = scmp.ne.s32.totalorder %s209, %s212
      %p218 = scmp.eq.s32.totalorder %s14, 0
      %p219 = por %p217, %p218
      %p220 = scmp.ne.s32.totalorder %s209, %s212
      %p221 = scmp.eq.s32.totalorder %s19, 31
      %p222 = por %p220, %p221
      %p223 = scmp.ne.s32.totalorder %s212, %s213
      %p224 = scmp.eq.s32.totalorder %s19, 0
      %p225 = por %p223, %p224
      %p226 = scmp.ne.s32.totalorder %s212, %s213
      %p227 = scmp.eq.s32.totalorder %s20, 31
      %p228 = por %p226, %p227
      %p230 = scmp.ne.s32.totalorder %s213, %s229
      %p231 = scmp.eq.s32.totalorder %s20, 0
      %p232 = por %p230, %p231
      %p233 = scmp.le.s32.totalorder 1, %s14
      %p234 = scmp.lt.s32.totalorder %s14, 33
      %p235 = pnand %p233, %p234
      %p236 = pneg %p235
      // Predicated region
      $region9: #{net_forward.3} parent=5 // pred_check
        _
      $region10: #{net_forward.3} parent=5 // pred_check_branch
        %238 = sbr.rel (%p235) target = $region12
      $region11: #{net_forward.3} parent=5 // pred_region
        %s239 = ssub.s32 %s14, 1
        // Predicated region
        $region13: #{net_forward.3} parent=11 // pred_check
          %p240 = pneg %p54
        $region14: #{net_forward.3} parent=11 // pred_check_branch
          %242 = sbr.rel (%p240) target = $region16
        $region15: #{net_forward.3} parent=11 // pred_region
          %244 = vsyncadd [#allocation4], 0
          %s246 = sshll.u32 %s0, 4
          %s247 = int_to_ptr.vmem [resolvable:$true] %s246
          %249 = dma.vmem_to_smem %s247, 128, [#allocation3], [#allocation4]
        $region16: #{net_forward.3} parent=11 // pred_fallthru
          _
        // Predicated region
        $region17: #{net_forward.3} parent=11 // pred_check
          %p250 = pneg %p157
        $region18: #{net_forward.3} parent=11 // pred_check_branch
          %252 = sbr.rel (%p250) target = $region20
        $region19: #{net_forward.3} parent=11 // pred_region
          _
        $region20: #{net_forward.3} parent=11 // pred_fallthru
          _
        // Predicated region
        $region21: #{net_forward.3} parent=11 // pred_check
          %p253 = pneg %p178
        $region22: #{net_forward.3} parent=11 // pred_check_branch
          %255 = sbr.rel (%p253) target = $region24
        $region23: #{net_forward.3} parent=11 // pred_region
          _
        $region24: #{net_forward.3} parent=11 // pred_fallthru
          _
        // Predicated region
        $region25: #{net_forward.3} parent=11 // pred_check
          %p256 = pneg %p199
        $region26: #{net_forward.3} parent=11 // pred_check_branch
          %258 = sbr.rel (%p256) target = $region28
        $region27: #{net_forward.3} parent=11 // pred_region
          _
        $region28: #{net_forward.3} parent=11 // pred_fallthru
          _
      $region12: #{net_forward.3} parent=5 // pred_fallthru
        _
      %p259 = scmp.lt.s32.totalorder %s14, 32
      // Predicated region
      $region29: #{net_forward.3} parent=5 // pred_check
        %p260 = pneg %p259
      $region30: #{net_forward.3} parent=5 // pred_check_branch
        %262 = sbr.rel (%p260) target = $region32
      $region31: #{net_forward.3} parent=5 // pred_region
        // Predicated region
        $region33: #{net_forward.3} parent=31 // pred_check
          %p263 = pneg %p78
        $region34: #{net_forward.3} parent=31 // pred_check_branch
          %265 = sbr.rel (%p263) target = $region36
        $region35: #{net_forward.3} parent=31 // pred_region
          %s266 = sand.u32 %s68, 1
          %s267 = sand.u32 %s68, 1
          %s268 = smul.addr %s267, 64
          %s269 = scalar_lea.vmem [#allocation5], %s268
          %s270 = smul.u32 16, %s21
          %s271 = smul.addr %s270, 2
          %s272 = sadd.s32 %s23, %s271
          %s273 = smul.addr %s22, 64
          %s274 = sadd.s32 %s272, %s273
          %s275 = smul.addr %s274, 4
          %s276 = scalar_lea.vmem %s1, %s275
          // Predicated region
          $region37: #{net_forward.3} parent=35 // pred_check
            _
          $region38: #{net_forward.3} parent=35 // pred_check_branch
            %278 = sbr.rel (0) target = $region40
          $region39: #{net_forward.3} parent=35 // pred_region
            // Predicated region
            $region41: #{net_forward.3} parent=39 // pred_check
              _
            $region42: #{net_forward.3} parent=39 // pred_check_branch
              %280 = sbr.rel target = $region44
            $region43: #{net_forward.3} parent=39 // pred_region
              // Predicated region
              $region56: #{net_forward.3} parent=43 // pred_check
                _
              $region57: #{net_forward.3} parent=43 // pred_check_branch
                %326 = sbr.rel (0) target = $region59
              $region58: #{net_forward.3} parent=43 // pred_region
                loop: start=0, step=1, limit=1
                $region60: #{net_forward.3} parent=58 // loop_pre_header
                  _
                $region61: #{net_forward.3} parent=58 // loop_header
                  %s328 = sphi 0, %s332
                  %p329 = scmp.ge.s32.totalorder %s328, 1
                  %s333 = sphi %s276, %s276
                  %s334 = sphi %s269, %s269
                $region62: #{net_forward.3} parent=58 // loop_header_branch
                  %331 = sbr.rel (%p329) target = $region66
                $region63: #{net_forward.3} parent=58 // loop_body
                  _
                $region64: #{net_forward.3} parent=58 // loop_footer
                  %s332 = sadd.s32 1, %s328
                $region65: #{net_forward.3} parent=58 // loop_footer_branch
                  %327 = sbr.rel target = $region61
                $region66: #{net_forward.3} parent=58 // loop_exit
                  _
                %s336 = ssub.s32 16, 1
                loop: start=0, step=1, limit=1
                $region67: #{net_forward.3} parent=58 // loop_pre_header
                  _
                $region68: #{net_forward.3} parent=58 // loop_header
                  %s338 = sphi 0, %s342
                  %p339 = scmp.ge.s32.totalorder %s338, 1
                  %s343 = sphi %s276, %s276
                  %s344 = sphi %s269, %s269
                $region69: #{net_forward.3} parent=58 // loop_header_branch
                  %341 = sbr.rel (%p339) target = $region73
                $region70: #{net_forward.3} parent=58 // loop_body
                  %v345 = vld [vmem:[%s343] sm:%s336]
                  %346 = vst [vmem:[%s344] sm:%s336] %v345
                  %v347 = vld [vmem:[%s343 + $0x8] sm:%s336]
                  %348 = vst [vmem:[%s344 + $0x4] sm:%s336] %v347
                  %v349 = vld [vmem:[%s343 + $0x10] sm:%s336]
                  %350 = vst [vmem:[%s344 + $0x8] sm:%s336] %v349
                  %v351 = vld [vmem:[%s343 + $0x18] sm:%s336]
                  %352 = vst [vmem:[%s344 + $0xc] sm:%s336] %v351
                  %v353 = vld [vmem:[%s343 + $0x20] sm:%s336]
                  %354 = vst [vmem:[%s344 + $0x10] sm:%s336] %v353
                  %v355 = vld [vmem:[%s343 + $0x28] sm:%s336]
                  %356 = vst [vmem:[%s344 + $0x14] sm:%s336] %v355
                  %v357 = vld [vmem:[%s343 + $0x30] sm:%s336]
                  %358 = vst [vmem:[%s344 + $0x18] sm:%s336] %v357
                  %v359 = vld [vmem:[%s343 + $0x38] sm:%s336]
                  %360 = vst [vmem:[%s344 + $0x1c] sm:%s336] %v359
                  %v361 = vld [vmem:[%s343 + $0x40] sm:%s336]
                  %362 = vst [vmem:[%s344 + $0x20] sm:%s336] %v361
                  %v363 = vld [vmem:[%s343 + $0x48] sm:%s336]
                  %364 = vst [vmem:[%s344 + $0x24] sm:%s336] %v363
                  %v365 = vld [vmem:[%s343 + $0x50] sm:%s336]
                  %366 = vst [vmem:[%s344 + $0x28] sm:%s336] %v365
                  %v367 = vld [vmem:[%s343 + $0x58] sm:%s336]
                  %368 = vst [vmem:[%s344 + $0x2c] sm:%s336] %v367
                  %v369 = vld [vmem:[%s343 + $0x60] sm:%s336]
                  %370 = vst [vmem:[%s344 + $0x30] sm:%s336] %v369
                  %v371 = vld [vmem:[%s343 + $0x68] sm:%s336]
                  %372 = vst [vmem:[%s344 + $0x34] sm:%s336] %v371
                  %v373 = vld [vmem:[%s343 + $0x70] sm:%s336]
                  %374 = vst [vmem:[%s344 + $0x38] sm:%s336] %v373
                  %v375 = vld [vmem:[%s343 + $0x78] sm:%s336]
                  %376 = vst [vmem:[%s344 + $0x3c] sm:%s336] %v375
                $region71: #{net_forward.3} parent=58 // loop_footer
                  %s342 = sadd.s32 1, %s338
                $region72: #{net_forward.3} parent=58 // loop_footer_branch
                  %337 = sbr.rel target = $region68
                $region73: #{net_forward.3} parent=58 // loop_exit
                  _
              $region59: #{net_forward.3} parent=43 // pred_fallthru
                _
            $region44: #{net_forward.3} parent=39 // pred_fallthru
              _
            // Predicated region
            $region45: #{net_forward.3} parent=39 // pred_check
              _
            $region46: #{net_forward.3} parent=39 // pred_check_branch
              %282 = sbr.rel (0) target = $region48
            $region47: #{net_forward.3} parent=39 // pred_region
              %s284 = ssub.s32 16, 1
              loop: start=0, step=1, limit=1
              $region49: #{net_forward.3} parent=47 // loop_pre_header
                _
              $region50: #{net_forward.3} parent=47 // loop_header
                %s286 = sphi 0, %s290
                %p287 = scmp.ge.s32.totalorder %s286, 1
                %s291 = sphi %s276, %s276
                %s292 = sphi %s269, %s269
              $region51: #{net_forward.3} parent=47 // loop_header_branch
                %289 = sbr.rel (%p287) target = $region55
              $region52: #{net_forward.3} parent=47 // loop_body
                %v293 = vld [vmem:[%s291] sm:%s284]
                %294 = vst [vmem:[%s292] sm:%s284] %v293
                %v295 = vld [vmem:[%s291 + $0x8] sm:%s284]
                %296 = vst [vmem:[%s292 + $0x4] sm:%s284] %v295
                %v297 = vld [vmem:[%s291 + $0x10] sm:%s284]
                %298 = vst [vmem:[%s292 + $0x8] sm:%s284] %v297
                %v299 = vld [vmem:[%s291 + $0x18] sm:%s284]
                %300 = vst [vmem:[%s292 + $0xc] sm:%s284] %v299
                %v301 = vld [vmem:[%s291 + $0x20] sm:%s284]
                %302 = vst [vmem:[%s292 + $0x10] sm:%s284] %v301
                %v303 = vld [vmem:[%s291 + $0x28] sm:%s284]
                %304 = vst [vmem:[%s292 + $0x14] sm:%s284] %v303
                %v305 = vld [vmem:[%s291 + $0x30] sm:%s284]
                %306 = vst [vmem:[%s292 + $0x18] sm:%s284] %v305
                %v307 = vld [vmem:[%s291 + $0x38] sm:%s284]
                %308 = vst [vmem:[%s292 + $0x1c] sm:%s284] %v307
                %v309 = vld [vmem:[%s291 + $0x40] sm:%s284]
                %310 = vst [vmem:[%s292 + $0x20] sm:%s284] %v309
                %v311 = vld [vmem:[%s291 + $0x48] sm:%s284]
                %312 = vst [vmem:[%s292 + $0x24] sm:%s284] %v311
                %v313 = vld [vmem:[%s291 + $0x50] sm:%s284]
                %314 = vst [vmem:[%s292 + $0x28] sm:%s284] %v313
                %v315 = vld [vmem:[%s291 + $0x58] sm:%s284]
                %316 = vst [vmem:[%s292 + $0x2c] sm:%s284] %v315
                %v317 = vld [vmem:[%s291 + $0x60] sm:%s284]
                %318 = vst [vmem:[%s292 + $0x30] sm:%s284] %v317
                %v319 = vld [vmem:[%s291 + $0x68] sm:%s284]
                %320 = vst [vmem:[%s292 + $0x34] sm:%s284] %v319
                %v321 = vld [vmem:[%s291 + $0x70] sm:%s284]
                %322 = vst [vmem:[%s292 + $0x38] sm:%s284] %v321
                %v323 = vld [vmem:[%s291 + $0x78] sm:%s284]
                %324 = vst [vmem:[%s292 + $0x3c] sm:%s284] %v323
              $region53: #{net_forward.3} parent=47 // loop_footer
                %s290 = sadd.s32 1, %s286
              $region54: #{net_forward.3} parent=47 // loop_footer_branch
                %285 = sbr.rel target = $region50
              $region55: #{net_forward.3} parent=47 // loop_exit
                _
            $region48: #{net_forward.3} parent=39 // pred_fallthru
              _
          $region40: #{net_forward.3} parent=35 // pred_fallthru
            _
          %377 = vnop
        $region36: #{net_forward.3} parent=31 // pred_fallthru
          _
        // Predicated region
        $region74: #{net_forward.3} parent=31 // pred_check
          %p378 = pneg %p104
        $region75: #{net_forward.3} parent=31 // pred_check_branch
          %380 = sbr.rel (%p378) target = $region77
        $region76: #{net_forward.3} parent=31 // pred_region
          %s381 = smul.u32 16, %s23
          %p382 = scmp.lt.s32.totalorder %s381, 31
          %s383 = scalar_select %p382, %s381, 31
          %s384 = smul.addr %s383, 4
          %s385 = scalar_lea.vmem %s2, %s384
          %s386 = smul.u32 16, %s23
        $region77: #{net_forward.3} parent=31 // pred_fallthru
          _
        // Predicated region
        $region78: #{net_forward.3} parent=31 // pred_check
          %p387 = pneg %p130
        $region79: #{net_forward.3} parent=31 // pred_check_branch
          %389 = sbr.rel (%p387) target = $region81
        $region80: #{net_forward.3} parent=31 // pred_region
          %s390 = smul.u32 16, %s21
          %p391 = scmp.lt.s32.totalorder %s390, 31
          %s392 = scalar_select %p391, %s390, 31
          %s393 = smul.addr %s392, 4
          %s394 = scalar_lea.vmem %s3, %s393
          %s395 = smul.u32 16, %s21
        $region81: #{net_forward.3} parent=31 // pred_fallthru
          _
      $region32: #{net_forward.3} parent=5 // pred_fallthru
        _
      %p396 = scmp.le.s32.totalorder 1, %s14
      %p397 = scmp.lt.s32.totalorder %s14, 33
      %p398 = pnand %p396, %p397
      %p399 = pneg %p398
      // Predicated region
      $region82: #{net_forward.3} parent=5 // pred_check
        _
      $region83: #{net_forward.3} parent=5 // pred_check_branch
        %401 = sbr.rel (%p398) target = $region85
      $region84: #{net_forward.3} parent=5 // pred_region
        %s402 = ssub.s32 %s14, 1
        // Predicated region
        $region86: #{net_forward.3} parent=84 // pred_check
          %p403 = pneg %p54
        $region87: #{net_forward.3} parent=84 // pred_check_branch
          %405 = sbr.rel (%p403) target = $region89
        $region88: #{net_forward.3} parent=84 // pred_region
          %407 = dma.done [#allocation4], 128
        $region89: #{net_forward.3} parent=84 // pred_fallthru
          _
        %s408 = sand.u32 %s71, 1
        %s409 = sand.u32 %s71, 1
        %s410 = smul.addr %s409, 64
        %s411 = scalar_lea.vmem [#allocation5], %s410
        // Predicated region
        $region90: #{net_forward.3} parent=84 // pred_check
          %p412 = pneg %p84
        $region91: #{net_forward.3} parent=84 // pred_check_branch
          %414 = sbr.rel (%p412) target = $region93
        $region92: #{net_forward.3} parent=84 // pred_region
          _
        $region93: #{net_forward.3} parent=84 // pred_fallthru
          _
        %415 = sfence
        %p416 = pneg %p54
        %p417 = pneg %p51
        %s418 = sand.u32 %s71, 1
        %s419 = sand.u32 %s71, 1
        %s420 = smul.addr %s419, 64
        %s421 = scalar_lea.vmem [#allocation5], %s420
        %p422 = pneg %p84
        %p423 = pneg %p81
        %s424 = smul.u32 16, %s26
        %p425 = scmp.lt.s32.totalorder %s424, 31
        %s426 = scalar_select %p425, %s424, 31
        %s427 = smul.addr %s426, 4
        %s428 = scalar_lea.vmem %s2, %s427
        %p429 = pneg %p110
        %p430 = pneg %p107
        %s431 = smul.u32 16, %s24
        %p432 = scmp.lt.s32.totalorder %s431, 31
        %s433 = scalar_select %p432, %s431, 31
        %s434 = smul.addr %s433, 4
        %s435 = scalar_lea.vmem %s3, %s434
        %p436 = pneg %p136
        %p437 = pneg %p133
        %p438 = pneg %p157
        %p439 = pneg %p154
        %p440 = pneg %p178
        %p441 = pneg %p175
        %p442 = pneg %p199
        %p443 = pneg %p196
        %p444 = pneg %p225
        %p445 = pneg %p222
        %s446 = smul.u32 16, %s24
        %p447 = scmp.lt.s32.totalorder %s446, 31
        %s448 = scalar_select %p447, %s446, 31
        %s449 = smul.addr %s448, 8
        %s450 = scalar_lea.vmem %s7, %s449
        %s451 = smul.u32 16, %s24
        %s452 = smul.u32 16, %s26
        %p453 = scmp.lt.s32.totalorder %s452, 31
        %s454 = scalar_select %p453, %s452, 31
        %s455 = smul.addr %s454, 4
        %s456 = scalar_lea.vmem %s2, %s455
        %s457 = smul.u32 16, %s26
        %s458 = smul.u32 16, %s24
        %p459 = scmp.lt.s32.totalorder %s458, 31
        %s460 = scalar_select %p459, %s458, 31
        %s461 = smul.addr %s460, 4
        %s462 = scalar_lea.vmem %s3, %s461
        %s463 = smul.u32 16, %s24
        %s464 = smul.u32 16, %s24
        %p465 = scmp.lt.s32.totalorder %s464, 31
        %s466 = scalar_select %p465, %s464, 31
        %s467 = smul.addr %s466, 8
        %s468 = scalar_lea.vmem %s7, %s467
        %s469 = smul.u32 16, %s24
        %p470 = scmp.eq.s32.totalorder %s25, 0
        %p471 = scmp.eq.s32.totalorder %s26, 0
        %p472 = pnand %p470, %p471
        %p473 = pneg %p472
        // Predicated region
        $region94: #{net_forward.3} parent=84 // pred_check
          _
        $region95: #{net_forward.3} parent=84 // pred_check_branch
          %475 = sbr.rel (%p472) target = $region97
        $region96: #{net_forward.3} parent=84 // pred_region
          %v476 = vld [vmem:[%s462] sm:$0xf]
          %v477 = vld [vmem:[%s462 + $0x4] sm:$0xf]
          %v478 = vld [vmem:[%s462 + $0x8] sm:$0xf]
          %v479 = vld [vmem:[%s462 + $0xc] sm:$0xf]
          %v480 = vld [vmem:[%s462 + $0x10] sm:$0xf]
          %v481 = vld [vmem:[%s462 + $0x14] sm:$0xf]
          %v482 = vld [vmem:[%s462 + $0x18] sm:$0xf]
          %v483 = vld [vmem:[%s462 + $0x1c] sm:$0xf]
          %v484 = vld [vmem:[%s462 + $0x20] sm:$0xf]
          %v485 = vld [vmem:[%s462 + $0x24] sm:$0xf]
          %v486 = vld [vmem:[%s462 + $0x28] sm:$0xf]
          %v487 = vld [vmem:[%s462 + $0x2c] sm:$0xf]
          %v488 = vld [vmem:[%s462 + $0x30] sm:$0xf]
          %v489 = vld [vmem:[%s462 + $0x34] sm:$0xf]
          %v490 = vld [vmem:[%s462 + $0x38] sm:$0xf]
          %v491 = vld [vmem:[%s462 + $0x3c] sm:$0xf]
          %v492 = vld [vmem:[%s5] sm:$0xf]
          %v493 = vld [vmem:[%s5 + $0x4] sm:$0xf]
          %v494 = vld [vmem:[%s5 + $0x8] sm:$0xf]
          %v495 = vld [vmem:[%s5 + $0xc] sm:$0xf]
          %v496 = vld [vmem:[%s5 + $0x10] sm:$0xf]
          %v497 = vld [vmem:[%s5 + $0x14] sm:$0xf]
          %v498 = vld [vmem:[%s5 + $0x18] sm:$0xf]
          %v499 = vld [vmem:[%s5 + $0x1c] sm:$0xf]
          %v500 = vld [vmem:[%s5 + $0x20] sm:$0xf]
          %v501 = vld [vmem:[%s5 + $0x24] sm:$0xf]
          %v502 = vld [vmem:[%s5 + $0x28] sm:$0xf]
          %v503 = vld [vmem:[%s5 + $0x2c] sm:$0xf]
          %v504 = vld [vmem:[%s5 + $0x30] sm:$0xf]
          %v505 = vld [vmem:[%s5 + $0x34] sm:$0xf]
          %v506 = vld [vmem:[%s5 + $0x38] sm:$0xf]
          %v507 = vld [vmem:[%s5 + $0x3c] sm:$0xf]
          %v508 = vld [vmem:[%s6] sm:$0x1]
          %v510 = vperm.slane %v508, 0
          %v528 = vunpack.c.l.b16 %v476
          %v529 = vunpack.c.l.b16 %v477
          %v530 = vunpack.c.l.b16 %v478
          %v531 = vunpack.c.l.b16 %v479
          %v532 = vunpack.c.l.b16 %v480
          %v533 = vunpack.c.l.b16 %v481
          %v534 = vunpack.c.l.b16 %v482
          %v535 = vunpack.c.l.b16 %v483
          %v536 = vunpack.c.l.b16 %v484
          %v537 = vunpack.c.l.b16 %v485
          %v538 = vunpack.c.l.b16 %v486
          %v539 = vunpack.c.l.b16 %v487
          %v540 = vunpack.c.l.b16 %v488
          %v541 = vunpack.c.l.b16 %v489
          %v542 = vunpack.c.l.b16 %v490
          %v543 = vunpack.c.l.b16 %v491
          %v544 = vpack.c.b16 %v529, %v528
          %v545 = vpack.c.b16 %v531, %v530
          %v546 = vpack.c.b16 %v533, %v532
          %v547 = vpack.c.b16 %v535, %v534
          %v548 = vpack.c.b16 %v537, %v536
          %v549 = vpack.c.b16 %v539, %v538
          %v550 = vpack.c.b16 %v541, %v540
          %v551 = vpack.c.b16 %v543, %v542
          %v576 = vunpack.c.l.b16 %v492
          %v577 = vunpack.c.l.b16 %v493
          %v578 = vunpack.c.l.b16 %v494
          %v579 = vunpack.c.l.b16 %v495
          %v580 = vunpack.c.l.b16 %v496
          %v581 = vunpack.c.l.b16 %v497
          %v582 = vunpack.c.l.b16 %v498
          %v583 = vunpack.c.l.b16 %v499
          %v584 = vunpack.c.l.b16 %v500
          %v585 = vunpack.c.l.b16 %v501
          %v586 = vunpack.c.l.b16 %v502
          %v587 = vunpack.c.l.b16 %v503
          %v588 = vunpack.c.l.b16 %v504
          %v589 = vunpack.c.l.b16 %v505
          %v590 = vunpack.c.l.b16 %v506
          %v591 = vunpack.c.l.b16 %v507
          %v592 = vpack.c.b16 %v577, %v576
          %v593 = vpack.c.b16 %v579, %v578
          %v594 = vpack.c.b16 %v581, %v580
          %v595 = vpack.c.b16 %v583, %v582
          %v596 = vpack.c.b16 %v585, %v584
          %v597 = vpack.c.b16 %v587, %v586
          %v598 = vpack.c.b16 %v589, %v588
          %v599 = vpack.c.b16 %v591, %v590
          %608 = vmatpush.bf16.msra.mxu0 %v599
          %609 = vmatpush.bf16.msra.mxu0 %v598
          %610 = vmatpush.bf16.msra.mxu0 %v597
          %611 = vmatpush.bf16.msra.mxu0 %v596
          %612 = vmatpush.bf16.msra.mxu0 %v595
          %613 = vmatpush.bf16.msra.mxu0 %v594
          %614 = vmatpush.bf16.msra.mxu0 %v593
          %615 = vmatpush.bf16.msra.mxu0 %v592
          %616 = vmatmul.bf16.gmra.mxu0 %v544
          %v617 = vpop.f32.mrf.mxu0
          %v618 = vadd.f32 %v510, %v617
          %v619 = vpop.f32.mrf.mxu0
          %v620 = vadd.f32 %v510, %v619
          %621 = vmatmul.bf16.gmra.mxu0 %v545
          %v622 = vpop.f32.mrf.mxu0
          %v623 = vadd.f32 %v510, %v622
          %v624 = vpop.f32.mrf.mxu0
          %v625 = vadd.f32 %v510, %v624
          %626 = vmatmul.bf16.gmra.mxu0 %v546
          %v627 = vpop.f32.mrf.mxu0
          %v628 = vadd.f32 %v510, %v627
          %v629 = vpop.f32.mrf.mxu0
          %v630 = vadd.f32 %v510, %v629
          %631 = vmatmul.bf16.gmra.mxu0 %v547
          %v632 = vpop.f32.mrf.mxu0
          %v633 = vadd.f32 %v510, %v632
          %v634 = vpop.f32.mrf.mxu0
          %v635 = vadd.f32 %v510, %v634
          %636 = vmatmul.bf16.gmra.mxu0 %v548
          %v637 = vpop.f32.mrf.mxu0
          %v638 = vadd.f32 %v510, %v637
          %v639 = vpop.f32.mrf.mxu0
          %v640 = vadd.f32 %v510, %v639
          %641 = vmatmul.bf16.gmra.mxu0 %v549
          %v642 = vpop.f32.mrf.mxu0
          %v643 = vadd.f32 %v510, %v642
          %v644 = vpop.f32.mrf.mxu0
          %v645 = vadd.f32 %v510, %v644
          %646 = vmatmul.bf16.gmra.mxu0 %v550
          %v647 = vpop.f32.mrf.mxu0
          %v648 = vadd.f32 %v510, %v647
          %v649 = vpop.f32.mrf.mxu0
          %v650 = vadd.f32 %v510, %v649
          %651 = vmatmul.bf16.gmra.mxu0 %v551
          %v652 = vpop.f32.mrf.mxu0
          %v653 = vadd.f32 %v510, %v652
          %v654 = vpop.f32.mrf.mxu0
          %v655 = vadd.f32 %v510, %v654
          %656 = vdwg.mxu0
          %657 = vst [vmem:[%s468] sm:$0xff] %v618
          %658 = vst [vmem:[%s468 + $0x8] sm:$0xff] %v620
          %659 = vst [vmem:[%s468 + $0x10] sm:$0xff] %v623
          %660 = vst [vmem:[%s468 + $0x18] sm:$0xff] %v625
          %661 = vst [vmem:[%s468 + $0x20] sm:$0xff] %v628
          %662 = vst [vmem:[%s468 + $0x28] sm:$0xff] %v630
          %663 = vst [vmem:[%s468 + $0x30] sm:$0xff] %v633
          %664 = vst [vmem:[%s468 + $0x38] sm:$0xff] %v635
          %665 = vst [vmem:[%s468 + $0x40] sm:$0xff] %v638
          %666 = vst [vmem:[%s468 + $0x48] sm:$0xff] %v640
          %667 = vst [vmem:[%s468 + $0x50] sm:$0xff] %v643
          %668 = vst [vmem:[%s468 + $0x58] sm:$0xff] %v645
          %669 = vst [vmem:[%s468 + $0x60] sm:$0xff] %v648
          %670 = vst [vmem:[%s468 + $0x68] sm:$0xff] %v650
          %671 = vst [vmem:[%s468 + $0x70] sm:$0xff] %v653
          %672 = vst [vmem:[%s468 + $0x78] sm:$0xff] %v655
        $region97: #{net_forward.3} parent=84 // pred_fallthru
          _
        // Predicated region
        $region98: #{net_forward.3} parent=84 // pred_check
          %p673 = pneg %p471
        $region99: #{net_forward.3} parent=84 // pred_check_branch
          %675 = sbr.rel (%p673) target = $region101
        $region100: #{net_forward.3} parent=84 // pred_region
          %676 = vst [vmem:[#allocation2] sm:$0xff] 0.0
          %677 = vst [vmem:[#allocation2 + $0x8] sm:$0xff] 0.0
          %678 = vst [vmem:[#allocation2 + $0x10] sm:$0xff] 0.0
          %679 = vst [vmem:[#allocation2 + $0x18] sm:$0xff] 0.0
          %680 = vst [vmem:[#allocation2 + $0x20] sm:$0xff] 0.0
          %681 = vst [vmem:[#allocation2 + $0x28] sm:$0xff] 0.0
          %682 = vst [vmem:[#allocation2 + $0x30] sm:$0xff] 0.0
          %683 = vst [vmem:[#allocation2 + $0x38] sm:$0xff] 0.0
          %684 = vst [vmem:[#allocation2 + $0x40] sm:$0xff] 0.0
          %685 = vst [vmem:[#allocation2 + $0x48] sm:$0xff] 0.0
          %686 = vst [vmem:[#allocation2 + $0x50] sm:$0xff] 0.0
          %687 = vst [vmem:[#allocation2 + $0x58] sm:$0xff] 0.0
          %688 = vst [vmem:[#allocation2 + $0x60] sm:$0xff] 0.0
          %689 = vst [vmem:[#allocation2 + $0x68] sm:$0xff] 0.0
          %690 = vst [vmem:[#allocation2 + $0x70] sm:$0xff] 0.0
          %691 = vst [vmem:[#allocation2 + $0x78] sm:$0xff] 0.0
        $region101: #{net_forward.3} parent=84 // pred_fallthru
          _
        %v692 = vld [vmem:[#allocation2] sm:$0xff]
        %v693 = vld [vmem:[#allocation2 + $0x8] sm:$0xff]
        %v694 = vld [vmem:[#allocation2 + $0x10] sm:$0xff]
        %v695 = vld [vmem:[#allocation2 + $0x18] sm:$0xff]
        %v696 = vld [vmem:[#allocation2 + $0x20] sm:$0xff]
        %v697 = vld [vmem:[#allocation2 + $0x28] sm:$0xff]
        %v698 = vld [vmem:[#allocation2 + $0x30] sm:$0xff]
        %v699 = vld [vmem:[#allocation2 + $0x38] sm:$0xff]
        %v700 = vld [vmem:[#allocation2 + $0x40] sm:$0xff]
        %v701 = vld [vmem:[#allocation2 + $0x48] sm:$0xff]
        %v702 = vld [vmem:[#allocation2 + $0x50] sm:$0xff]
        %v703 = vld [vmem:[#allocation2 + $0x58] sm:$0xff]
        %v704 = vld [vmem:[#allocation2 + $0x60] sm:$0xff]
        %v705 = vld [vmem:[#allocation2 + $0x68] sm:$0xff]
        %v706 = vld [vmem:[#allocation2 + $0x70] sm:$0xff]
        %v707 = vld [vmem:[#allocation2 + $0x78] sm:$0xff]
        %v708 = vld [vmem:[%s411] sm:$0xf]
        %v709 = vld [vmem:[%s411 + $0x4] sm:$0xf]
        %v710 = vld [vmem:[%s411 + $0x8] sm:$0xf]
        %v711 = vld [vmem:[%s411 + $0xc] sm:$0xf]
        %v712 = vld [vmem:[%s411 + $0x10] sm:$0xf]
        %v713 = vld [vmem:[%s411 + $0x14] sm:$0xf]
        %v714 = vld [vmem:[%s411 + $0x18] sm:$0xf]
        %v715 = vld [vmem:[%s411 + $0x1c] sm:$0xf]
        %v716 = vld [vmem:[%s411 + $0x20] sm:$0xf]
        %v717 = vld [vmem:[%s411 + $0x24] sm:$0xf]
        %v718 = vld [vmem:[%s411 + $0x28] sm:$0xf]
        %v719 = vld [vmem:[%s411 + $0x2c] sm:$0xf]
        %v720 = vld [vmem:[%s411 + $0x30] sm:$0xf]
        %v721 = vld [vmem:[%s411 + $0x34] sm:$0xf]
        %v722 = vld [vmem:[%s411 + $0x38] sm:$0xf]
        %v723 = vld [vmem:[%s411 + $0x3c] sm:$0xf]
        %v724 = vld [vmem:[%s456] sm:$0xf]
        %v725 = vld [vmem:[%s456 + $0x4] sm:$0xf]
        %v726 = vld [vmem:[%s456 + $0x8] sm:$0xf]
        %v727 = vld [vmem:[%s456 + $0xc] sm:$0xf]
        %v728 = vld [vmem:[%s456 + $0x10] sm:$0xf]
        %v729 = vld [vmem:[%s456 + $0x14] sm:$0xf]
        %v730 = vld [vmem:[%s456 + $0x18] sm:$0xf]
        %v731 = vld [vmem:[%s456 + $0x1c] sm:$0xf]
        %v732 = vld [vmem:[%s456 + $0x20] sm:$0xf]
        %v733 = vld [vmem:[%s456 + $0x24] sm:$0xf]
        %v734 = vld [vmem:[%s456 + $0x28] sm:$0xf]
        %v735 = vld [vmem:[%s456 + $0x2c] sm:$0xf]
        %v736 = vld [vmem:[%s456 + $0x30] sm:$0xf]
        %v737 = vld [vmem:[%s456 + $0x34] sm:$0xf]
        %v738 = vld [vmem:[%s456 + $0x38] sm:$0xf]
        %v739 = vld [vmem:[%s456 + $0x3c] sm:$0xf]
        %v756 = vunpack.c.l.b16 %v708
        %v757 = vunpack.c.l.b16 %v709
        %v758 = vunpack.c.l.b16 %v710
        %v759 = vunpack.c.l.b16 %v711
        %v760 = vunpack.c.l.b16 %v712
        %v761 = vunpack.c.l.b16 %v713
        %v762 = vunpack.c.l.b16 %v714
        %v763 = vunpack.c.l.b16 %v715
        %v764 = vunpack.c.l.b16 %v716
        %v765 = vunpack.c.l.b16 %v717
        %v766 = vunpack.c.l.b16 %v718
        %v767 = vunpack.c.l.b16 %v719
        %v768 = vunpack.c.l.b16 %v720
        %v769 = vunpack.c.l.b16 %v721
        %v770 = vunpack.c.l.b16 %v722
        %v771 = vunpack.c.l.b16 %v723
        %v772 = vpack.c.b16 %v757, %v756
        %v773 = vpack.c.b16 %v759, %v758
        %v774 = vpack.c.b16 %v761, %v760
        %v775 = vpack.c.b16 %v763, %v762
        %v776 = vpack.c.b16 %v765, %v764
        %v777 = vpack.c.b16 %v767, %v766
        %v778 = vpack.c.b16 %v769, %v768
        %v779 = vpack.c.b16 %v771, %v770
        %v804 = vunpack.c.l.b16 %v724
        %v805 = vunpack.c.l.b16 %v725
        %v806 = vunpack.c.l.b16 %v726
        %v807 = vunpack.c.l.b16 %v727
        %v808 = vunpack.c.l.b16 %v728
        %v809 = vunpack.c.l.b16 %v729
        %v810 = vunpack.c.l.b16 %v730
        %v811 = vunpack.c.l.b16 %v731
        %v812 = vunpack.c.l.b16 %v732
        %v813 = vunpack.c.l.b16 %v733
        %v814 = vunpack.c.l.b16 %v734
        %v815 = vunpack.c.l.b16 %v735
        %v816 = vunpack.c.l.b16 %v736
        %v817 = vunpack.c.l.b16 %v737
        %v818 = vunpack.c.l.b16 %v738
        %v819 = vunpack.c.l.b16 %v739
        %v820 = vpack.c.b16 %v805, %v804
        %v821 = vpack.c.b16 %v807, %v806
        %v822 = vpack.c.b16 %v809, %v808
        %v823 = vpack.c.b16 %v811, %v810
        %v824 = vpack.c.b16 %v813, %v812
        %v825 = vpack.c.b16 %v815, %v814
        %v826 = vpack.c.b16 %v817, %v816
        %v827 = vpack.c.b16 %v819, %v818
        %836 = vmatpush.bf16.msra.mxu0 %v827
        %837 = vmatpush.bf16.msra.mxu0 %v826
        %838 = vmatpush.bf16.msra.mxu0 %v825
        %839 = vmatpush.bf16.msra.mxu0 %v824
        %840 = vmatpush.bf16.msra.mxu0 %v823
        %841 = vmatpush.bf16.msra.mxu0 %v822
        %842 = vmatpush.bf16.msra.mxu0 %v821
        %843 = vmatpush.bf16.msra.mxu0 %v820
        %844 = vmatmul.bf16.gmra.mxu0 %v772
        %v845 = vpop.f32.mrf.mxu0
        %v846 = vadd.f32 0.0, %v845
        %v847 = vpop.f32.mrf.mxu0
        %v848 = vadd.f32 0.0, %v847
        %849 = vmatmul.bf16.gmra.mxu0 %v773
        %v850 = vpop.f32.mrf.mxu0
        %v851 = vadd.f32 0.0, %v850
        %v852 = vpop.f32.mrf.mxu0
        %v853 = vadd.f32 0.0, %v852
        %854 = vmatmul.bf16.gmra.mxu0 %v774
        %v855 = vpop.f32.mrf.mxu0
        %v856 = vadd.f32 0.0, %v855
        %v857 = vpop.f32.mrf.mxu0
        %v858 = vadd.f32 0.0, %v857
        %859 = vmatmul.bf16.gmra.mxu0 %v775
        %v860 = vpop.f32.mrf.mxu0
        %v861 = vadd.f32 0.0, %v860
        %v862 = vpop.f32.mrf.mxu0
        %v863 = vadd.f32 0.0, %v862
        %864 = vmatmul.bf16.gmra.mxu0 %v776
        %v865 = vpop.f32.mrf.mxu0
        %v866 = vadd.f32 0.0, %v865
        %v867 = vpop.f32.mrf.mxu0
        %v868 = vadd.f32 0.0, %v867
        %869 = vmatmul.bf16.gmra.mxu0 %v777
        %v870 = vpop.f32.mrf.mxu0
        %v871 = vadd.f32 0.0, %v870
        %v872 = vpop.f32.mrf.mxu0
        %v873 = vadd.f32 0.0, %v872
        %874 = vmatmul.bf16.gmra.mxu0 %v778
        %v875 = vpop.f32.mrf.mxu0
        %v876 = vadd.f32 0.0, %v875
        %v877 = vpop.f32.mrf.mxu0
        %v878 = vadd.f32 0.0, %v877
        %879 = vmatmul.bf16.gmra.mxu0 %v779
        %v880 = vpop.f32.mrf.mxu0
        %v881 = vadd.f32 0.0, %v880
        %v882 = vpop.f32.mrf.mxu0
        %v883 = vadd.f32 0.0, %v882
        %884 = vdwg.mxu0
        %v885 = vadd.f32 %v692, %v846
        %v886 = vadd.f32 %v693, %v848
        %v887 = vadd.f32 %v694, %v851
        %v888 = vadd.f32 %v695, %v853
        %v889 = vadd.f32 %v696, %v856
        %v890 = vadd.f32 %v697, %v858
        %v891 = vadd.f32 %v698, %v861
        %v892 = vadd.f32 %v699, %v863
        %v893 = vadd.f32 %v700, %v866
        %v894 = vadd.f32 %v701, %v868
        %v895 = vadd.f32 %v702, %v871
        %v896 = vadd.f32 %v703, %v873
        %v897 = vadd.f32 %v704, %v876
        %v898 = vadd.f32 %v705, %v878
        %v899 = vadd.f32 %v706, %v881
        %v900 = vadd.f32 %v707, %v883
        %901 = vst [vmem:[#allocation2] sm:$0xff] %v885
        %902 = vst [vmem:[#allocation2 + $0x8] sm:$0xff] %v886
        %903 = vst [vmem:[#allocation2 + $0x10] sm:$0xff] %v887
        %904 = vst [vmem:[#allocation2 + $0x18] sm:$0xff] %v888
        %905 = vst [vmem:[#allocation2 + $0x20] sm:$0xff] %v889
        %906 = vst [vmem:[#allocation2 + $0x28] sm:$0xff] %v890
        %907 = vst [vmem:[#allocation2 + $0x30] sm:$0xff] %v891
        %908 = vst [vmem:[#allocation2 + $0x38] sm:$0xff] %v892
        %909 = vst [vmem:[#allocation2 + $0x40] sm:$0xff] %v893
        %910 = vst [vmem:[#allocation2 + $0x48] sm:$0xff] %v894
        %911 = vst [vmem:[#allocation2 + $0x50] sm:$0xff] %v895
        %912 = vst [vmem:[#allocation2 + $0x58] sm:$0xff] %v896
        %913 = vst [vmem:[#allocation2 + $0x60] sm:$0xff] %v897
        %914 = vst [vmem:[#allocation2 + $0x68] sm:$0xff] %v898
        %915 = vst [vmem:[#allocation2 + $0x70] sm:$0xff] %v899
        %916 = vst [vmem:[#allocation2 + $0x78] sm:$0xff] %v900
        %p917 = scmp.eq.s32.totalorder %s26, 1
        // Predicated region
        $region102: #{net_forward.3} parent=84 // pred_check
          %p918 = pneg %p917
        $region103: #{net_forward.3} parent=84 // pred_check_branch
          %920 = sbr.rel (%p918) target = $region105
        $region104: #{net_forward.3} parent=84 // pred_region
          %v921 = vld [vmem:[#allocation2] sm:$0xff]
          %v922 = vld [vmem:[#allocation2 + $0x8] sm:$0xff]
          %v923 = vld [vmem:[#allocation2 + $0x10] sm:$0xff]
          %v924 = vld [vmem:[#allocation2 + $0x18] sm:$0xff]
          %v925 = vld [vmem:[#allocation2 + $0x20] sm:$0xff]
          %v926 = vld [vmem:[#allocation2 + $0x28] sm:$0xff]
          %v927 = vld [vmem:[#allocation2 + $0x30] sm:$0xff]
          %v928 = vld [vmem:[#allocation2 + $0x38] sm:$0xff]
          %v929 = vld [vmem:[#allocation2 + $0x40] sm:$0xff]
          %v930 = vld [vmem:[#allocation2 + $0x48] sm:$0xff]
          %v931 = vld [vmem:[#allocation2 + $0x50] sm:$0xff]
          %v932 = vld [vmem:[#allocation2 + $0x58] sm:$0xff]
          %v933 = vld [vmem:[#allocation2 + $0x60] sm:$0xff]
          %v934 = vld [vmem:[#allocation2 + $0x68] sm:$0xff]
          %v935 = vld [vmem:[#allocation2 + $0x70] sm:$0xff]
          %v936 = vld [vmem:[#allocation2 + $0x78] sm:$0xff]
          %v937 = vpack.c.bf16 %v922, %v921
          %v938 = vpack.c.bf16 %v924, %v923
          %v939 = vpack.c.bf16 %v926, %v925
          %v940 = vpack.c.bf16 %v928, %v927
          %v941 = vpack.c.bf16 %v930, %v929
          %v942 = vpack.c.bf16 %v932, %v931
          %v943 = vpack.c.bf16 %v934, %v933
          %v944 = vpack.c.bf16 %v936, %v935
          %s945 = smul.u32 %s25, 128
          %s946 = sld [smem:[#allocation3 + %s945]]
          %v947 = vld [vmem:[%s4] sm:$0xf]
          %v948 = vld [vmem:[%s4 + $0x4] sm:$0xf]
          %v949 = vld [vmem:[%s4 + $0x8] sm:$0xf]
          %v950 = vld [vmem:[%s4 + $0xc] sm:$0xf]
          %v951 = vld [vmem:[%s4 + $0x10] sm:$0xf]
          %v952 = vld [vmem:[%s4 + $0x14] sm:$0xf]
          %v953 = vld [vmem:[%s4 + $0x18] sm:$0xf]
          %v954 = vld [vmem:[%s4 + $0x1c] sm:$0xf]
          %v955 = vld [vmem:[%s4 + $0x20] sm:$0xf]
          %v956 = vld [vmem:[%s4 + $0x24] sm:$0xf]
          %v957 = vld [vmem:[%s4 + $0x28] sm:$0xf]
          %v958 = vld [vmem:[%s4 + $0x2c] sm:$0xf]
          %v959 = vld [vmem:[%s4 + $0x30] sm:$0xf]
          %v960 = vld [vmem:[%s4 + $0x34] sm:$0xf]
          %v961 = vld [vmem:[%s4 + $0x38] sm:$0xf]
          %v962 = vld [vmem:[%s4 + $0x3c] sm:$0xf]
          %v979 = vunpack.c.l.b16 %v947
          %v980 = vunpack.c.l.b16 %v948
          %v981 = vunpack.c.l.b16 %v949
          %v982 = vunpack.c.l.b16 %v950
          %v983 = vunpack.c.l.b16 %v951
          %v984 = vunpack.c.l.b16 %v952
          %v985 = vunpack.c.l.b16 %v953
          %v986 = vunpack.c.l.b16 %v954
          %v987 = vunpack.c.l.b16 %v955
          %v988 = vunpack.c.l.b16 %v956
          %v989 = vunpack.c.l.b16 %v957
          %v990 = vunpack.c.l.b16 %v958
          %v991 = vunpack.c.l.b16 %v959
          %v992 = vunpack.c.l.b16 %v960
          %v993 = vunpack.c.l.b16 %v961
          %v994 = vunpack.c.l.b16 %v962
          %v995 = vpack.c.b16 %v980, %v979
          %v996 = vpack.c.b16 %v982, %v981
          %v997 = vpack.c.b16 %v984, %v983
          %v998 = vpack.c.b16 %v986, %v985
          %v999 = vpack.c.b16 %v988, %v987
          %v1000 = vpack.c.b16 %v990, %v989
          %v1001 = vpack.c.b16 %v992, %v991
          %v1002 = vpack.c.b16 %v994, %v993
          %1011 = vmatpush.bf16.msra.mxu0 %v1002
          %1012 = vmatpush.bf16.msra.mxu0 %v1001
          %1013 = vmatpush.bf16.msra.mxu0 %v1000
          %1014 = vmatpush.bf16.msra.mxu0 %v999
          %1015 = vmatpush.bf16.msra.mxu0 %v998
          %1016 = vmatpush.bf16.msra.mxu0 %v997
          %1017 = vmatpush.bf16.msra.mxu0 %v996
          %1018 = vmatpush.bf16.msra.mxu0 %v995
          %1019 = vmatmul.bf16.gmra.mxu0 %v937
          %v1020 = vpop.f32.mrf.mxu0
          %v1021 = vadd.f32 0.0, %v1020
          %v1022 = vpop.f32.mrf.mxu0
          %v1023 = vadd.f32 0.0, %v1022
          %1024 = vmatmul.bf16.gmra.mxu0 %v938
          %v1025 = vpop.f32.mrf.mxu0
          %v1026 = vadd.f32 0.0, %v1025
          %v1027 = vpop.f32.mrf.mxu0
          %v1028 = vadd.f32 0.0, %v1027
          %1029 = vmatmul.bf16.gmra.mxu0 %v939
          %v1030 = vpop.f32.mrf.mxu0
          %v1031 = vadd.f32 0.0, %v1030
          %v1032 = vpop.f32.mrf.mxu0
          %v1033 = vadd.f32 0.0, %v1032
          %1034 = vmatmul.bf16.gmra.mxu0 %v940
          %v1035 = vpop.f32.mrf.mxu0
          %v1036 = vadd.f32 0.0, %v1035
          %v1037 = vpop.f32.mrf.mxu0
          %v1038 = vadd.f32 0.0, %v1037
          %1039 = vmatmul.bf16.gmra.mxu0 %v941
          %v1040 = vpop.f32.mrf.mxu0
          %v1041 = vadd.f32 0.0, %v1040
          %v1042 = vpop.f32.mrf.mxu0
          %v1043 = vadd.f32 0.0, %v1042
          %1044 = vmatmul.bf16.gmra.mxu0 %v942
          %v1045 = vpop.f32.mrf.mxu0
          %v1046 = vadd.f32 0.0, %v1045
          %v1047 = vpop.f32.mrf.mxu0
          %v1048 = vadd.f32 0.0, %v1047
          %1049 = vmatmul.bf16.gmra.mxu0 %v943
          %v1050 = vpop.f32.mrf.mxu0
          %v1051 = vadd.f32 0.0, %v1050
          %v1052 = vpop.f32.mrf.mxu0
          %v1053 = vadd.f32 0.0, %v1052
          %1054 = vmatmul.bf16.gmra.mxu0 %v944
          %v1055 = vpop.f32.mrf.mxu0
          %v1056 = vadd.f32 0.0, %v1055
          %v1057 = vpop.f32.mrf.mxu0
          %v1058 = vadd.f32 0.0, %v1057
          %1059 = vdwg.mxu0
          %v1060 = vstv %s946
          %v1061 = vmul.f32 %v1060, %v1021
          %v1062 = vmul.f32 %v1060, %v1023
          %v1063 = vmul.f32 %v1060, %v1026
          %v1064 = vmul.f32 %v1060, %v1028
          %v1065 = vmul.f32 %v1060, %v1031
          %v1066 = vmul.f32 %v1060, %v1033
          %v1067 = vmul.f32 %v1060, %v1036
          %v1068 = vmul.f32 %v1060, %v1038
          %v1069 = vmul.f32 %v1060, %v1041
          %v1070 = vmul.f32 %v1060, %v1043
          %v1071 = vmul.f32 %v1060, %v1046
          %v1072 = vmul.f32 %v1060, %v1048
          %v1073 = vmul.f32 %v1060, %v1051
          %v1074 = vmul.f32 %v1060, %v1053
          %v1075 = vmul.f32 %v1060, %v1056
          %v1076 = vmul.f32 %v1060, %v1058
          %s1077 = sadd.s32 %s945, 1
          %s1078 = sld [smem:[#allocation3 + %s1077]]
          %s1079 = scalar_lea.vmem %s4, 64
          %v1080 = vld [vmem:[%s1079] sm:$0xf]
          %v1081 = vld [vmem:[%s1079 + $0x4] sm:$0xf]
          %v1082 = vld [vmem:[%s1079 + $0x8] sm:$0xf]
          %v1083 = vld [vmem:[%s1079 + $0xc] sm:$0xf]
          %v1084 = vld [vmem:[%s1079 + $0x10] sm:$0xf]
          %v1085 = vld [vmem:[%s1079 + $0x14] sm:$0xf]
          %v1086 = vld [vmem:[%s1079 + $0x18] sm:$0xf]
          %v1087 = vld [vmem:[%s1079 + $0x1c] sm:$0xf]
          %v1088 = vld [vmem:[%s1079 + $0x20] sm:$0xf]
          %v1089 = vld [vmem:[%s1079 + $0x24] sm:$0xf]
          %v1090 = vld [vmem:[%s1079 + $0x28] sm:$0xf]
          %v1091 = vld [vmem:[%s1079 + $0x2c] sm:$0xf]
          %v1092 = vld [vmem:[%s1079 + $0x30] sm:$0xf]
          %v1093 = vld [vmem:[%s1079 + $0x34] sm:$0xf]
          %v1094 = vld [vmem:[%s1079 + $0x38] sm:$0xf]
          %v1095 = vld [vmem:[%s1079 + $0x3c] sm:$0xf]
          %v1112 = vunpack.c.l.b16 %v1080
          %v1113 = vunpack.c.l.b16 %v1081
          %v1114 = vunpack.c.l.b16 %v1082
          %v1115 = vunpack.c.l.b16 %v1083
          %v1116 = vunpack.c.l.b16 %v1084
          %v1117 = vunpack.c.l.b16 %v1085
          %v1118 = vunpack.c.l.b16 %v1086
          %v1119 = vunpack.c.l.b16 %v1087
          %v1120 = vunpack.c.l.b16 %v1088
          %v1121 = vunpack.c.l.b16 %v1089
          %v1122 = vunpack.c.l.b16 %v1090
          %v1123 = vunpack.c.l.b16 %v1091
          %v1124 = vunpack.c.l.b16 %v1092
          %v1125 = vunpack.c.l.b16 %v1093
          %v1126 = vunpack.c.l.b16 %v1094
          %v1127 = vunpack.c.l.b16 %v1095
          %v1128 = vpack.c.b16 %v1113, %v1112
          %v1129 = vpack.c.b16 %v1115, %v1114
          %v1130 = vpack.c.b16 %v1117, %v1116
          %v1131 = vpack.c.b16 %v1119, %v1118
          %v1132 = vpack.c.b16 %v1121, %v1120
          %v1133 = vpack.c.b16 %v1123, %v1122
          %v1134 = vpack.c.b16 %v1125, %v1124
          %v1135 = vpack.c.b16 %v1127, %v1126
          %1144 = vmatpush.bf16.msra.mxu0 %v1135
          %1145 = vmatpush.bf16.msra.mxu0 %v1134
          %1146 = vmatpush.bf16.msra.mxu0 %v1133
          %1147 = vmatpush.bf16.msra.mxu0 %v1132
          %1148 = vmatpush.bf16.msra.mxu0 %v1131
          %1149 = vmatpush.bf16.msra.mxu0 %v1130
          %1150 = vmatpush.bf16.msra.mxu0 %v1129
          %1151 = vmatpush.bf16.msra.mxu0 %v1128
          %1152 = vmatmul.bf16.gmra.mxu0 %v937
          %v1153 = vpop.f32.mrf.mxu0
          %v1154 = vadd.f32 0.0, %v1153
          %v1155 = vpop.f32.mrf.mxu0
          %v1156 = vadd.f32 0.0, %v1155
          %1157 = vmatmul.bf16.gmra.mxu0 %v938
          %v1158 = vpop.f32.mrf.mxu0
          %v1159 = vadd.f32 0.0, %v1158
          %v1160 = vpop.f32.mrf.mxu0
          %v1161 = vadd.f32 0.0, %v1160
          %1162 = vmatmul.bf16.gmra.mxu0 %v939
          %v1163 = vpop.f32.mrf.mxu0
          %v1164 = vadd.f32 0.0, %v1163
          %v1165 = vpop.f32.mrf.mxu0
          %v1166 = vadd.f32 0.0, %v1165
          %1167 = vmatmul.bf16.gmra.mxu0 %v940
          %v1168 = vpop.f32.mrf.mxu0
          %v1169 = vadd.f32 0.0, %v1168
          %v1170 = vpop.f32.mrf.mxu0
          %v1171 = vadd.f32 0.0, %v1170
          %1172 = vmatmul.bf16.gmra.mxu0 %v941
          %v1173 = vpop.f32.mrf.mxu0
          %v1174 = vadd.f32 0.0, %v1173
          %v1175 = vpop.f32.mrf.mxu0
          %v1176 = vadd.f32 0.0, %v1175
          %1177 = vmatmul.bf16.gmra.mxu0 %v942
          %v1178 = vpop.f32.mrf.mxu0
          %v1179 = vadd.f32 0.0, %v1178
          %v1180 = vpop.f32.mrf.mxu0
          %v1181 = vadd.f32 0.0, %v1180
          %1182 = vmatmul.bf16.gmra.mxu0 %v943
          %v1183 = vpop.f32.mrf.mxu0
          %v1184 = vadd.f32 0.0, %v1183
          %v1185 = vpop.f32.mrf.mxu0
          %v1186 = vadd.f32 0.0, %v1185
          %1187 = vmatmul.bf16.gmra.mxu0 %v944
          %v1188 = vpop.f32.mrf.mxu0
          %v1189 = vadd.f32 0.0, %v1188
          %v1190 = vpop.f32.mrf.mxu0
          %v1191 = vadd.f32 0.0, %v1190
          %1192 = vdwg.mxu0
          %v1193 = vstv %s1078
          %v1194 = vmul.f32 %v1193, %v1154
          %v1195 = vmul.f32 %v1193, %v1156
          %v1196 = vmul.f32 %v1193, %v1159
          %v1197 = vmul.f32 %v1193, %v1161
          %v1198 = vmul.f32 %v1193, %v1164
          %v1199 = vmul.f32 %v1193, %v1166
          %v1200 = vmul.f32 %v1193, %v1169
          %v1201 = vmul.f32 %v1193, %v1171
          %v1202 = vmul.f32 %v1193, %v1174
          %v1203 = vmul.f32 %v1193, %v1176
          %v1204 = vmul.f32 %v1193, %v1179
          %v1205 = vmul.f32 %v1193, %v1181
          %v1206 = vmul.f32 %v1193, %v1184
          %v1207 = vmul.f32 %v1193, %v1186
          %v1208 = vmul.f32 %v1193, %v1189
          %v1209 = vmul.f32 %v1193, %v1191
          %v1210 = vadd.f32 %v1061, %v1194
          %v1211 = vadd.f32 %v1062, %v1195
          %v1212 = vadd.f32 %v1063, %v1196
          %v1213 = vadd.f32 %v1064, %v1197
          %v1214 = vadd.f32 %v1065, %v1198
          %v1215 = vadd.f32 %v1066, %v1199
          %v1216 = vadd.f32 %v1067, %v1200
          %v1217 = vadd.f32 %v1068, %v1201
          %v1218 = vadd.f32 %v1069, %v1202
          %v1219 = vadd.f32 %v1070, %v1203
          %v1220 = vadd.f32 %v1071, %v1204
          %v1221 = vadd.f32 %v1072, %v1205
          %v1222 = vadd.f32 %v1073, %v1206
          %v1223 = vadd.f32 %v1074, %v1207
          %v1224 = vadd.f32 %v1075, %v1208
          %v1225 = vadd.f32 %v1076, %v1209
          %v1226 = vld [vmem:[%s468] sm:$0xff]
          %v1227 = vld [vmem:[%s468 + $0x8] sm:$0xff]
          %v1228 = vld [vmem:[%s468 + $0x10] sm:$0xff]
          %v1229 = vld [vmem:[%s468 + $0x18] sm:$0xff]
          %v1230 = vld [vmem:[%s468 + $0x20] sm:$0xff]
          %v1231 = vld [vmem:[%s468 + $0x28] sm:$0xff]
          %v1232 = vld [vmem:[%s468 + $0x30] sm:$0xff]
          %v1233 = vld [vmem:[%s468 + $0x38] sm:$0xff]
          %v1234 = vld [vmem:[%s468 + $0x40] sm:$0xff]
          %v1235 = vld [vmem:[%s468 + $0x48] sm:$0xff]
          %v1236 = vld [vmem:[%s468 + $0x50] sm:$0xff]
          %v1237 = vld [vmem:[%s468 + $0x58] sm:$0xff]
          %v1238 = vld [vmem:[%s468 + $0x60] sm:$0xff]
          %v1239 = vld [vmem:[%s468 + $0x68] sm:$0xff]
          %v1240 = vld [vmem:[%s468 + $0x70] sm:$0xff]
          %v1241 = vld [vmem:[%s468 + $0x78] sm:$0xff]
          %v1242 = vadd.f32 %v1226, %v1210
          %v1243 = vadd.f32 %v1227, %v1211
          %v1244 = vadd.f32 %v1228, %v1212
          %v1245 = vadd.f32 %v1229, %v1213
          %v1246 = vadd.f32 %v1230, %v1214
          %v1247 = vadd.f32 %v1231, %v1215
          %v1248 = vadd.f32 %v1232, %v1216
          %v1249 = vadd.f32 %v1233, %v1217
          %v1250 = vadd.f32 %v1234, %v1218
          %v1251 = vadd.f32 %v1235, %v1219
          %v1252 = vadd.f32 %v1236, %v1220
          %v1253 = vadd.f32 %v1237, %v1221
          %v1254 = vadd.f32 %v1238, %v1222
          %v1255 = vadd.f32 %v1239, %v1223
          %v1256 = vadd.f32 %v1240, %v1224
          %v1257 = vadd.f32 %v1241, %v1225
          %1258 = vst [vmem:[%s468] sm:$0xff] %v1242
          %1259 = vst [vmem:[%s468 + $0x8] sm:$0xff] %v1243
          %1260 = vst [vmem:[%s468 + $0x10] sm:$0xff] %v1244
          %1261 = vst [vmem:[%s468 + $0x18] sm:$0xff] %v1245
          %1262 = vst [vmem:[%s468 + $0x20] sm:$0xff] %v1246
          %1263 = vst [vmem:[%s468 + $0x28] sm:$0xff] %v1247
          %1264 = vst [vmem:[%s468 + $0x30] sm:$0xff] %v1248
          %1265 = vst [vmem:[%s468 + $0x38] sm:$0xff] %v1249
          %1266 = vst [vmem:[%s468 + $0x40] sm:$0xff] %v1250
          %1267 = vst [vmem:[%s468 + $0x48] sm:$0xff] %v1251
          %1268 = vst [vmem:[%s468 + $0x50] sm:$0xff] %v1252
          %1269 = vst [vmem:[%s468 + $0x58] sm:$0xff] %v1253
          %1270 = vst [vmem:[%s468 + $0x60] sm:$0xff] %v1254
          %1271 = vst [vmem:[%s468 + $0x68] sm:$0xff] %v1255
          %1272 = vst [vmem:[%s468 + $0x70] sm:$0xff] %v1256
          %1273 = vst [vmem:[%s468 + $0x78] sm:$0xff] %v1257
        $region105: #{net_forward.3} parent=84 // pred_fallthru
          _
        %p1274 = scmp.eq.s32.totalorder %s25, 7
        %p1275 = pnand %p1274, %p917
        %p1276 = pneg %p1275
        // Predicated region
        $region106: #{net_forward.3} parent=84 // pred_check
          _
        $region107: #{net_forward.3} parent=84 // pred_check_branch
          %1278 = sbr.rel (%p1275) target = $region109
        $region108: #{net_forward.3} parent=84 // pred_region
          %v1279 = vld [vmem:[%s468] sm:$0xff]
          %v1280 = vld [vmem:[%s468 + $0x8] sm:$0xff]
          %v1281 = vld [vmem:[%s468 + $0x10] sm:$0xff]
          %v1282 = vld [vmem:[%s468 + $0x18] sm:$0xff]
          %v1283 = vld [vmem:[%s468 + $0x20] sm:$0xff]
          %v1284 = vld [vmem:[%s468 + $0x28] sm:$0xff]
          %v1285 = vld [vmem:[%s468 + $0x30] sm:$0xff]
          %v1286 = vld [vmem:[%s468 + $0x38] sm:$0xff]
          %v1287 = vld [vmem:[%s468 + $0x40] sm:$0xff]
          %v1288 = vld [vmem:[%s468 + $0x48] sm:$0xff]
          %v1289 = vld [vmem:[%s468 + $0x50] sm:$0xff]
          %v1290 = vld [vmem:[%s468 + $0x58] sm:$0xff]
          %v1291 = vld [vmem:[%s468 + $0x60] sm:$0xff]
          %v1292 = vld [vmem:[%s468 + $0x68] sm:$0xff]
          %v1293 = vld [vmem:[%s468 + $0x70] sm:$0xff]
          %v1294 = vld [vmem:[%s468 + $0x78] sm:$0xff]
          %v1295 = vmax.f32 %v1279, 0.0
          %v1296 = vmax.f32 %v1280, 0.0
          %v1297 = vmax.f32 %v1281, 0.0
          %v1298 = vmax.f32 %v1282, 0.0
          %v1299 = vmax.f32 %v1283, 0.0
          %v1300 = vmax.f32 %v1284, 0.0
          %v1301 = vmax.f32 %v1285, 0.0
          %v1302 = vmax.f32 %v1286, 0.0
          %v1303 = vmax.f32 %v1287, 0.0
          %v1304 = vmax.f32 %v1288, 0.0
          %v1305 = vmax.f32 %v1289, 0.0
          %v1306 = vmax.f32 %v1290, 0.0
          %v1307 = vmax.f32 %v1291, 0.0
          %v1308 = vmax.f32 %v1292, 0.0
          %v1309 = vmax.f32 %v1293, 0.0
          %v1310 = vmax.f32 %v1294, 0.0
          %1311 = vst [vmem:[%s468] sm:$0xff] %v1295
          %1312 = vst [vmem:[%s468 + $0x8] sm:$0xff] %v1296
          %1313 = vst [vmem:[%s468 + $0x10] sm:$0xff] %v1297
          %1314 = vst [vmem:[%s468 + $0x18] sm:$0xff] %v1298
          %1315 = vst [vmem:[%s468 + $0x20] sm:$0xff] %v1299
          %1316 = vst [vmem:[%s468 + $0x28] sm:$0xff] %v1300
          %1317 = vst [vmem:[%s468 + $0x30] sm:$0xff] %v1301
          %1318 = vst [vmem:[%s468 + $0x38] sm:$0xff] %v1302
          %1319 = vst [vmem:[%s468 + $0x40] sm:$0xff] %v1303
          %1320 = vst [vmem:[%s468 + $0x48] sm:$0xff] %v1304
          %1321 = vst [vmem:[%s468 + $0x50] sm:$0xff] %v1305
          %1322 = vst [vmem:[%s468 + $0x58] sm:$0xff] %v1306
          %1323 = vst [vmem:[%s468 + $0x60] sm:$0xff] %v1307
          %1324 = vst [vmem:[%s468 + $0x68] sm:$0xff] %v1308
          %1325 = vst [vmem:[%s468 + $0x70] sm:$0xff] %v1309
          %1326 = vst [vmem:[%s468 + $0x78] sm:$0xff] %v1310
        $region109: #{net_forward.3} parent=84 // pred_fallthru
          _
        %s1327 = smul.u32 16, %s24
        %p1328 = scmp.lt.s32.totalorder %s1327, 31
        %s1329 = scalar_select %p1328, %s1327, 31
        %s1330 = smul.addr %s1329, 8
        %s1331 = scalar_lea.vmem %s7, %s1330
        // Predicated region
        $region110: #{net_forward.3} parent=84 // pred_check
          %p1332 = pneg %p222
        $region111: #{net_forward.3} parent=84 // pred_check_branch
          %1334 = sbr.rel (%p1332) target = $region113
        $region112: #{net_forward.3} parent=84 // pred_region
          %s1335 = smul.u32 16, %s24
        $region113: #{net_forward.3} parent=84 // pred_fallthru
          _
      $region85: #{net_forward.3} parent=5 // pred_fallthru
        _
      %p1336 = scmp.le.s32.totalorder 2, %s14
      // Predicated region
      $region114: #{net_forward.3} parent=5 // pred_check
        %p1337 = pneg %p1336
      $region115: #{net_forward.3} parent=5 // pred_check_branch
        %1339 = sbr.rel (%p1337) target = $region117
      $region116: #{net_forward.3} parent=5 // pred_region
        %s1340 = ssub.s32 %s14, 2
        // Predicated region
        $region118: #{net_forward.3} parent=116 // pred_check
          %p1341 = pneg %p228
        $region119: #{net_forward.3} parent=116 // pred_check_branch
          %1343 = sbr.rel (%p1341) target = $region121
        $region120: #{net_forward.3} parent=116 // pred_region
          %s1344 = smul.u32 16, %s27
          %p1345 = scmp.lt.s32.totalorder %s1344, 31
          %s1346 = scalar_select %p1345, %s1344, 31
          %s1347 = smul.addr %s1346, 8
          %s1348 = scalar_lea.vmem %s7, %s1347
        $region121: #{net_forward.3} parent=116 // pred_fallthru
          _
      $region117: #{net_forward.3} parent=5 // pred_fallthru
        _
    $region6: #{net_forward.3} parent=1 // loop_footer
      %s18 = sadd.s32 1, %s14
    $region7: #{net_forward.3} parent=1 // loop_footer_branch
      %13 = sbr.rel target = $region3
    $region8: #{net_forward.3} parent=1 // loop_exit
      _
    %1349 = vsyncpa [#allocation4], 1
    %s1350 = scalar_lea.sflag [#allocation4], 1
    %1351 = vsyncpa %s1350, 1

// kernel: net_forward.4
$region0: #{net_forward.4}
  #allocation0 [shape = 'u32[]', space=smem, size = 0x4, offset = 0x4, fixed_abs, tag = 'smem constant byte address 0x4 - core index']
  #allocation1 [shape = 'u32[72,128]{1,0:T(1,128)}', space=vmem, size = 0x9000, scoped, tag = 'internal scratch']
  #allocation2 [shape = 'f32[128,128]{1,0:T(8,128)}', space=vmem, size = 0x10000, scoped, tag = 'scratch operand']
  %s0 = inlined_call_operand.vmem [shape: bf16[8,256,256], index: 0, kind: input, shape index: {}]
  %s1 = inlined_call_operand.vmem [shape: bf16[256,128], index: 1, kind: input, shape index: {}, may-alias: {1,2}]
  %s2 = inlined_call_operand.vmem [shape: bf16[256,128], index: 2, kind: input, shape index: {}, may-alias: {1,2}]
  %s3 = inlined_call_operand.vmem [shape: bf16[8,4,32,32], index: 3, kind: input, shape index: {}]
  %s4 = inlined_call_operand.vmem [shape: bf16[128,128], index: 4, kind: input, shape index: {}]
  %s5 = inlined_call_operand.vmem [shape: f32[1,128], index: 5, kind: input, shape index: {}]
  %s6 = inlined_call_operand.vmem [shape: f32[256,128], index: 6, kind: output, shape index: {}]
  %s7 = sld [smem:[#allocation0]]
  $region114: #{net_forward.4} parent=0
    _
  %s9 = ssub.s32 1, %s7
  %s10 = scalar_select 0, %s9, %s7
  $region1: #{net_forward.4} parent=0
    #allocation3 [shape = 'u8[65536]{0}', space=vmem, size = 0x10000, scoped, tag = 'input window, operand 0']
    loop: start=0, step=1, limit=34
    $region2: #{net_forward.4} parent=1 // loop_pre_header
      _
    $region3: #{net_forward.4} parent=1 // loop_header
      %s12 = sphi 0, %s16
      %p13 = scmp.ge.s32.totalorder %s12, 34
      %s19 = sphi 0, %s38
      %s20 = sphi 0, %s34
      %s21 = sphi 0, %s30
      %s22 = sphi 0, %s19
      %s23 = sphi 0, %s20
      %s24 = sphi 0, %s21
      %s25 = sphi 0, %s22
      %s26 = sphi 0, %s23
      %s27 = sphi 0, %s24
      %s45 = sphi 0, %s47
      %s48 = sphi 0, %s45
      %s49 = sphi 0, %s48
      %s65 = sphi 0, %s49
      %s71 = sphi 0, %s73
      %s74 = sphi 0, %s71
      %s75 = sphi 0, %s74
      %s91 = sphi 0, %s75
      %s97 = sphi 0, %s99
      %s100 = sphi 0, %s97
      %s101 = sphi 0, %s100
      %s117 = sphi 0, %s101
      %s123 = sphi 0, %s125
      %s126 = sphi 0, %s123
      %s127 = sphi 0, %s126
      %s143 = sphi 0, %s127
      %s147 = sphi 0, %s147
      %s149 = sphi 0, %s147
      %s150 = sphi 0, %s149
      %s164 = sphi 0, %s150
      %s168 = sphi 0, %s168
      %s170 = sphi 0, %s168
      %s171 = sphi 0, %s170
      %s185 = sphi 0, %s171
      %s191 = sphi 0, %s193
      %s194 = sphi 0, %s191
      %s195 = sphi 0, %s194
      %s211 = sphi 0, %s195
    $region4: #{net_forward.4} parent=1 // loop_header_branch
      %15 = sbr.rel (%p13) target = $region8
    $region5: #{net_forward.4} parent=1 // loop_body
      %s17 = ssub.s32 %s12, 1
      %s18 = ssub.s32 %s12, 2
      %s28 = sadd.s32 1, %s21
      %p29 = scmp.ge.s32.totalorder %s28, 2
      %s30 = scalar_select %p29, 0, %s28
      %s31 = sadd.s32 1, %s20
      %s32 = scalar_select %p29, %s31, %s20
      %p33 = scmp.ge.s32.totalorder %s32, 8
      %s34 = scalar_select %p33, 0, %s32
      %s35 = sadd.s32 1, %s19
      %s36 = scalar_select %p33, %s35, %s19
      %p37 = scmp.ge.s32.totalorder %s36, 2
      %s38 = scalar_select %p37, 0, %s36
      %s39 = ssub.s32 %s20, %s34
      %s40 = ssub.s32 %s19, %s38
      %s41 = sor.u32 %s39, %s40
      %s42 = ssub.s32 %s21, %s30
      %s43 = sor.u32 %s41, %s42
      %p44 = scmp.eq.s32.totalorder %s43, 0
      %s46 = sadd.s32 %s45, 1
      %s47 = scalar_select %p44, %s45, %s46
      %p50 = pneg %p44
      %p51 = scmp.eq.s32.totalorder %s12, 31
      %p52 = por %p50, %p51
      %p53 = scmp.ne.s32.totalorder %s45, %s48
      %p54 = scmp.eq.s32.totalorder %s12, 0
      %p55 = por %p53, %p54
      %p56 = scmp.ne.s32.totalorder %s45, %s48
      %p57 = scmp.eq.s32.totalorder %s17, 31
      %p58 = por %p56, %p57
      %p59 = scmp.ne.s32.totalorder %s48, %s49
      %p60 = scmp.eq.s32.totalorder %s17, 0
      %p61 = por %p59, %p60
      %p62 = scmp.ne.s32.totalorder %s48, %s49
      %p63 = scmp.eq.s32.totalorder %s18, 31
      %p64 = por %p62, %p63
      %p66 = scmp.ne.s32.totalorder %s49, %s65
      %p67 = scmp.eq.s32.totalorder %s18, 0
      %p68 = por %p66, %p67
      %s69 = ssub.s32 %s21, %s30
      %p70 = scmp.eq.s32.totalorder %s69, 0
      %s72 = sadd.s32 %s71, 1
      %s73 = scalar_select %p70, %s71, %s72
      %p76 = pneg %p70
      %p77 = scmp.eq.s32.totalorder %s12, 31
      %p78 = por %p76, %p77
      %p79 = scmp.ne.s32.totalorder %s71, %s74
      %p80 = scmp.eq.s32.totalorder %s12, 0
      %p81 = por %p79, %p80
      %p82 = scmp.ne.s32.totalorder %s71, %s74
      %p83 = scmp.eq.s32.totalorder %s17, 31
      %p84 = por %p82, %p83
      %p85 = scmp.ne.s32.totalorder %s74, %s75
      %p86 = scmp.eq.s32.totalorder %s17, 0
      %p87 = por %p85, %p86
      %p88 = scmp.ne.s32.totalorder %s74, %s75
      %p89 = scmp.eq.s32.totalorder %s18, 31
      %p90 = por %p88, %p89
      %p92 = scmp.ne.s32.totalorder %s75, %s91
      %p93 = scmp.eq.s32.totalorder %s18, 0
      %p94 = por %p92, %p93
      %s95 = ssub.s32 %s19, %s38
      %p96 = scmp.eq.s32.totalorder %s95, 0
      %s98 = sadd.s32 %s97, 1
      %s99 = scalar_select %p96, %s97, %s98
      %p102 = pneg %p96
      %p103 = scmp.eq.s32.totalorder %s12, 31
      %p104 = por %p102, %p103
      %p105 = scmp.ne.s32.totalorder %s97, %s100
      %p106 = scmp.eq.s32.totalorder %s12, 0
      %p107 = por %p105, %p106
      %p108 = scmp.ne.s32.totalorder %s97, %s100
      %p109 = scmp.eq.s32.totalorder %s17, 31
      %p110 = por %p108, %p109
      %p111 = scmp.ne.s32.totalorder %s100, %s101
      %p112 = scmp.eq.s32.totalorder %s17, 0
      %p113 = por %p111, %p112
      %p114 = scmp.ne.s32.totalorder %s100, %s101
      %p115 = scmp.eq.s32.totalorder %s18, 31
      %p116 = por %p114, %p115
      %p118 = scmp.ne.s32.totalorder %s101, %s117
      %p119 = scmp.eq.s32.totalorder %s18, 0
      %p120 = por %p118, %p119
      %s121 = ssub.s32 %s20, %s34
      %p122 = scmp.eq.s32.totalorder %s121, 0
      %s124 = sadd.s32 %s123, 1
      %s125 = scalar_select %p122, %s123, %s124
      %p128 = pneg %p122
      %p129 = scmp.eq.s32.totalorder %s12, 31
      %p130 = por %p128, %p129
      %p131 = scmp.ne.s32.totalorder %s123, %s126
      %p132 = scmp.eq.s32.totalorder %s12, 0
      %p133 = por %p131, %p132
      %p134 = scmp.ne.s32.totalorder %s123, %s126
      %p135 = scmp.eq.s32.totalorder %s17, 31
      %p136 = por %p134, %p135
      %p137 = scmp.ne.s32.totalorder %s126, %s127
      %p138 = scmp.eq.s32.totalorder %s17, 0
      %p139 = por %p137, %p138
      %p140 = scmp.ne.s32.totalorder %s126, %s127
      %p141 = scmp.eq.s32.totalorder %s18, 31
      %p142 = por %p140, %p141
      %p144 = scmp.ne.s32.totalorder %s127, %s143
      %p145 = scmp.eq.s32.totalorder %s18, 0
      %p146 = por %p144, %p145
      %s148 = sadd.s32 %s147, 1
      %p151 = scmp.eq.s32.totalorder %s12, 31
      %p152 = scmp.ne.s32.totalorder %s147, %s149
      %p153 = scmp.eq.s32.totalorder %s12, 0
      %p154 = por %p152, %p153
      %p155 = scmp.ne.s32.totalorder %s147, %s149
      %p156 = scmp.eq.s32.totalorder %s17, 31
      %p157 = por %p155, %p156
      %p158 = scmp.ne.s32.totalorder %s149, %s150
      %p159 = scmp.eq.s32.totalorder %s17, 0
      %p160 = por %p158, %p159
      %p161 = scmp.ne.s32.totalorder %s149, %s150
      %p162 = scmp.eq.s32.totalorder %s18, 31
      %p163 = por %p161, %p162
      %p165 = scmp.ne.s32.totalorder %s150, %s164
      %p166 = scmp.eq.s32.totalorder %s18, 0
      %p167 = por %p165, %p166
      %s169 = sadd.s32 %s168, 1
      %p172 = scmp.eq.s32.totalorder %s12, 31
      %p173 = scmp.ne.s32.totalorder %s168, %s170
      %p174 = scmp.eq.s32.totalorder %s12, 0
      %p175 = por %p173, %p174
      %p176 = scmp.ne.s32.totalorder %s168, %s170
      %p177 = scmp.eq.s32.totalorder %s17, 31
      %p178 = por %p176, %p177
      %p179 = scmp.ne.s32.totalorder %s170, %s171
      %p180 = scmp.eq.s32.totalorder %s17, 0
      %p181 = por %p179, %p180
      %p182 = scmp.ne.s32.totalorder %s170, %s171
      %p183 = scmp.eq.s32.totalorder %s18, 31
      %p184 = por %p182, %p183
      %p186 = scmp.ne.s32.totalorder %s171, %s185
      %p187 = scmp.eq.s32.totalorder %s18, 0
      %p188 = por %p186, %p187
      %s189 = ssub.s32 %s19, %s38
      %p190 = scmp.eq.s32.totalorder %s189, 0
      %s192 = sadd.s32 %s191, 1
      %s193 = scalar_select %p190, %s191, %s192
      %p196 = pneg %p190
      %p197 = scmp.eq.s32.totalorder %s12, 31
      %p198 = por %p196, %p197
      %p199 = scmp.ne.s32.totalorder %s191, %s194
      %p200 = scmp.eq.s32.totalorder %s12, 0
      %p201 = por %p199, %p200
      %p202 = scmp.ne.s32.totalorder %s191, %s194
      %p203 = scmp.eq.s32.totalorder %s17, 31
      %p204 = por %p202, %p203
      %p205 = scmp.ne.s32.totalorder %s194, %s195
      %p206 = scmp.eq.s32.totalorder %s17, 0
      %p207 = por %p205, %p206
      %p208 = scmp.ne.s32.totalorder %s194, %s195
      %p209 = scmp.eq.s32.totalorder %s18, 31
      %p210 = por %p208, %p209
      %p212 = scmp.ne.s32.totalorder %s195, %s211
      %p213 = scmp.eq.s32.totalorder %s18, 0
      %p214 = por %p212, %p213
      %p215 = scmp.le.s32.totalorder 1, %s12
      %p216 = scmp.lt.s32.totalorder %s12, 33
      %p217 = pnand %p215, %p216
      %p218 = pneg %p217
      // Predicated region
      $region9: #{net_forward.4} parent=5 // pred_check
        _
      $region10: #{net_forward.4} parent=5 // pred_check_branch
        %220 = sbr.rel (%p217) target = $region12
      $region11: #{net_forward.4} parent=5 // pred_region
        %s221 = ssub.s32 %s12, 1
        // Predicated region
        $region13: #{net_forward.4} parent=11 // pred_check
          %p222 = pneg %p160
        $region14: #{net_forward.4} parent=11 // pred_check_branch
          %224 = sbr.rel (%p222) target = $region16
        $region15: #{net_forward.4} parent=11 // pred_region
          _
        $region16: #{net_forward.4} parent=11 // pred_fallthru
          _
        // Predicated region
        $region17: #{net_forward.4} parent=11 // pred_check
          %p225 = pneg %p181
        $region18: #{net_forward.4} parent=11 // pred_check_branch
          %227 = sbr.rel (%p225) target = $region20
        $region19: #{net_forward.4} parent=11 // pred_region
          _
        $region20: #{net_forward.4} parent=11 // pred_fallthru
          _
      $region12: #{net_forward.4} parent=5 // pred_fallthru
        _
      %p228 = scmp.lt.s32.totalorder %s12, 32
      // Predicated region
      $region21: #{net_forward.4} parent=5 // pred_check
        %p229 = pneg %p228
      $region22: #{net_forward.4} parent=5 // pred_check_branch
        %231 = sbr.rel (%p229) target = $region24
      $region23: #{net_forward.4} parent=5 // pred_region
        // Predicated region
        $region25: #{net_forward.4} parent=23 // pred_check
          %p232 = pneg %p55
        $region26: #{net_forward.4} parent=23 // pred_check_branch
          %234 = sbr.rel (%p232) target = $region28
        $region27: #{net_forward.4} parent=23 // pred_region
          %s235 = sand.u32 %s45, 1
          %s236 = sand.u32 %s45, 1
          %s237 = smul.addr %s236, 64
          %s238 = scalar_lea.vmem [#allocation3], %s237
          %s239 = smul.u32 16, %s19
          %s240 = smul.addr %s239, 2
          %s241 = sadd.s32 %s21, %s240
          %s242 = smul.addr %s20, 64
          %s243 = sadd.s32 %s241, %s242
          %s244 = smul.addr %s243, 4
          %s245 = scalar_lea.vmem %s0, %s244
          // Predicated region
          $region29: #{net_forward.4} parent=27 // pred_check
            _
          $region30: #{net_forward.4} parent=27 // pred_check_branch
            %247 = sbr.rel (0) target = $region32
          $region31: #{net_forward.4} parent=27 // pred_region
            // Predicated region
            $region33: #{net_forward.4} parent=31 // pred_check
              _
            $region34: #{net_forward.4} parent=31 // pred_check_branch
              %249 = sbr.rel target = $region36
            $region35: #{net_forward.4} parent=31 // pred_region
              // Predicated region
              $region48: #{net_forward.4} parent=35 // pred_check
                _
              $region49: #{net_forward.4} parent=35 // pred_check_branch
                %295 = sbr.rel (0) target = $region51
              $region50: #{net_forward.4} parent=35 // pred_region
                loop: start=0, step=1, limit=1
                $region52: #{net_forward.4} parent=50 // loop_pre_header
                  _
                $region53: #{net_forward.4} parent=50 // loop_header
                  %s297 = sphi 0, %s301
                  %p298 = scmp.ge.s32.totalorder %s297, 1
                  %s302 = sphi %s245, %s245
                  %s303 = sphi %s238, %s238
                $region54: #{net_forward.4} parent=50 // loop_header_branch
                  %300 = sbr.rel (%p298) target = $region58
                $region55: #{net_forward.4} parent=50 // loop_body
                  _
                $region56: #{net_forward.4} parent=50 // loop_footer
                  %s301 = sadd.s32 1, %s297
                $region57: #{net_forward.4} parent=50 // loop_footer_branch
                  %296 = sbr.rel target = $region53
                $region58: #{net_forward.4} parent=50 // loop_exit
                  _
                %s305 = ssub.s32 16, 1
                loop: start=0, step=1, limit=1
                $region59: #{net_forward.4} parent=50 // loop_pre_header
                  _
                $region60: #{net_forward.4} parent=50 // loop_header
                  %s307 = sphi 0, %s311
                  %p308 = scmp.ge.s32.totalorder %s307, 1
                  %s312 = sphi %s245, %s245
                  %s313 = sphi %s238, %s238
                $region61: #{net_forward.4} parent=50 // loop_header_branch
                  %310 = sbr.rel (%p308) target = $region65
                $region62: #{net_forward.4} parent=50 // loop_body
                  %v314 = vld [vmem:[%s312] sm:%s305]
                  %315 = vst [vmem:[%s313] sm:%s305] %v314
                  %v316 = vld [vmem:[%s312 + $0x8] sm:%s305]
                  %317 = vst [vmem:[%s313 + $0x4] sm:%s305] %v316
                  %v318 = vld [vmem:[%s312 + $0x10] sm:%s305]
                  %319 = vst [vmem:[%s313 + $0x8] sm:%s305] %v318
                  %v320 = vld [vmem:[%s312 + $0x18] sm:%s305]
                  %321 = vst [vmem:[%s313 + $0xc] sm:%s305] %v320
                  %v322 = vld [vmem:[%s312 + $0x20] sm:%s305]
                  %323 = vst [vmem:[%s313 + $0x10] sm:%s305] %v322
                  %v324 = vld [vmem:[%s312 + $0x28] sm:%s305]
                  %325 = vst [vmem:[%s313 + $0x14] sm:%s305] %v324
                  %v326 = vld [vmem:[%s312 + $0x30] sm:%s305]
                  %327 = vst [vmem:[%s313 + $0x18] sm:%s305] %v326
                  %v328 = vld [vmem:[%s312 + $0x38] sm:%s305]
                  %329 = vst [vmem:[%s313 + $0x1c] sm:%s305] %v328
                  %v330 = vld [vmem:[%s312 + $0x40] sm:%s305]
                  %331 = vst [vmem:[%s313 + $0x20] sm:%s305] %v330
                  %v332 = vld [vmem:[%s312 + $0x48] sm:%s305]
                  %333 = vst [vmem:[%s313 + $0x24] sm:%s305] %v332
                  %v334 = vld [vmem:[%s312 + $0x50] sm:%s305]
                  %335 = vst [vmem:[%s313 + $0x28] sm:%s305] %v334
                  %v336 = vld [vmem:[%s312 + $0x58] sm:%s305]
                  %337 = vst [vmem:[%s313 + $0x2c] sm:%s305] %v336
                  %v338 = vld [vmem:[%s312 + $0x60] sm:%s305]
                  %339 = vst [vmem:[%s313 + $0x30] sm:%s305] %v338
                  %v340 = vld [vmem:[%s312 + $0x68] sm:%s305]
                  %341 = vst [vmem:[%s313 + $0x34] sm:%s305] %v340
                  %v342 = vld [vmem:[%s312 + $0x70] sm:%s305]
                  %343 = vst [vmem:[%s313 + $0x38] sm:%s305] %v342
                  %v344 = vld [vmem:[%s312 + $0x78] sm:%s305]
                  %345 = vst [vmem:[%s313 + $0x3c] sm:%s305] %v344
                $region63: #{net_forward.4} parent=50 // loop_footer
                  %s311 = sadd.s32 1, %s307
                $region64: #{net_forward.4} parent=50 // loop_footer_branch
                  %306 = sbr.rel target = $region60
                $region65: #{net_forward.4} parent=50 // loop_exit
                  _
              $region51: #{net_forward.4} parent=35 // pred_fallthru
                _
            $region36: #{net_forward.4} parent=31 // pred_fallthru
              _
            // Predicated region
            $region37: #{net_forward.4} parent=31 // pred_check
              _
            $region38: #{net_forward.4} parent=31 // pred_check_branch
              %251 = sbr.rel (0) target = $region40
            $region39: #{net_forward.4} parent=31 // pred_region
              %s253 = ssub.s32 16, 1
              loop: start=0, step=1, limit=1
              $region41: #{net_forward.4} parent=39 // loop_pre_header
                _
              $region42: #{net_forward.4} parent=39 // loop_header
                %s255 = sphi 0, %s259
                %p256 = scmp.ge.s32.totalorder %s255, 1
                %s260 = sphi %s245, %s245
                %s261 = sphi %s238, %s238
              $region43: #{net_forward.4} parent=39 // loop_header_branch
                %258 = sbr.rel (%p256) target = $region47
              $region44: #{net_forward.4} parent=39 // loop_body
                %v262 = vld [vmem:[%s260] sm:%s253]
                %263 = vst [vmem:[%s261] sm:%s253] %v262
                %v264 = vld [vmem:[%s260 + $0x8] sm:%s253]
                %265 = vst [vmem:[%s261 + $0x4] sm:%s253] %v264
                %v266 = vld [vmem:[%s260 + $0x10] sm:%s253]
                %267 = vst [vmem:[%s261 + $0x8] sm:%s253] %v266
                %v268 = vld [vmem:[%s260 + $0x18] sm:%s253]
                %269 = vst [vmem:[%s261 + $0xc] sm:%s253] %v268
                %v270 = vld [vmem:[%s260 + $0x20] sm:%s253]
                %271 = vst [vmem:[%s261 + $0x10] sm:%s253] %v270
                %v272 = vld [vmem:[%s260 + $0x28] sm:%s253]
                %273 = vst [vmem:[%s261 + $0x14] sm:%s253] %v272
                %v274 = vld [vmem:[%s260 + $0x30] sm:%s253]
                %275 = vst [vmem:[%s261 + $0x18] sm:%s253] %v274
                %v276 = vld [vmem:[%s260 + $0x38] sm:%s253]
                %277 = vst [vmem:[%s261 + $0x1c] sm:%s253] %v276
                %v278 = vld [vmem:[%s260 + $0x40] sm:%s253]
                %279 = vst [vmem:[%s261 + $0x20] sm:%s253] %v278
                %v280 = vld [vmem:[%s260 + $0x48] sm:%s253]
                %281 = vst [vmem:[%s261 + $0x24] sm:%s253] %v280
                %v282 = vld [vmem:[%s260 + $0x50] sm:%s253]
                %283 = vst [vmem:[%s261 + $0x28] sm:%s253] %v282
                %v284 = vld [vmem:[%s260 + $0x58] sm:%s253]
                %285 = vst [vmem:[%s261 + $0x2c] sm:%s253] %v284
                %v286 = vld [vmem:[%s260 + $0x60] sm:%s253]
                %287 = vst [vmem:[%s261 + $0x30] sm:%s253] %v286
                %v288 = vld [vmem:[%s260 + $0x68] sm:%s253]
                %289 = vst [vmem:[%s261 + $0x34] sm:%s253] %v288
                %v290 = vld [vmem:[%s260 + $0x70] sm:%s253]
                %291 = vst [vmem:[%s261 + $0x38] sm:%s253] %v290
                %v292 = vld [vmem:[%s260 + $0x78] sm:%s253]
                %293 = vst [vmem:[%s261 + $0x3c] sm:%s253] %v292
              $region45: #{net_forward.4} parent=39 // loop_footer
                %s259 = sadd.s32 1, %s255
              $region46: #{net_forward.4} parent=39 // loop_footer_branch
                %254 = sbr.rel target = $region42
              $region47: #{net_forward.4} parent=39 // loop_exit
                _
            $region40: #{net_forward.4} parent=31 // pred_fallthru
              _
          $region32: #{net_forward.4} parent=27 // pred_fallthru
            _
          %346 = vnop
        $region28: #{net_forward.4} parent=23 // pred_fallthru
          _
        // Predicated region
        $region66: #{net_forward.4} parent=23 // pred_check
          %p347 = pneg %p81
        $region67: #{net_forward.4} parent=23 // pred_check_branch
          %349 = sbr.rel (%p347) target = $region69
        $region68: #{net_forward.4} parent=23 // pred_region
          %s350 = smul.u32 16, %s21
          %p351 = scmp.lt.s32.totalorder %s350, 31
          %s352 = scalar_select %p351, %s350, 31
          %s353 = smul.addr %s352, 4
          %s354 = scalar_lea.vmem %s1, %s353
          %s355 = smul.u32 16, %s21
        $region69: #{net_forward.4} parent=23 // pred_fallthru
          _
        // Predicated region
        $region70: #{net_forward.4} parent=23 // pred_check
          %p356 = pneg %p107
        $region71: #{net_forward.4} parent=23 // pred_check_branch
          %358 = sbr.rel (%p356) target = $region73
        $region72: #{net_forward.4} parent=23 // pred_region
          %s359 = smul.u32 16, %s19
          %p360 = scmp.lt.s32.totalorder %s359, 31
          %s361 = scalar_select %p360, %s359, 31
          %s362 = smul.addr %s361, 4
          %s363 = scalar_lea.vmem %s2, %s362
          %s364 = smul.u32 16, %s19
        $region73: #{net_forward.4} parent=23 // pred_fallthru
          _
        // Predicated region
        $region74: #{net_forward.4} parent=23 // pred_check
          %p365 = pneg %p133
        $region75: #{net_forward.4} parent=23 // pred_check_branch
          %367 = sbr.rel (%p365) target = $region77
        $region76: #{net_forward.4} parent=23 // pred_region
          %p368 = scmp.lt.s32.totalorder %s20, 7
          %s369 = scalar_select %p368, %s20, 7
          %s370 = smul.addr %s369, 16
          %s371 = smul.addr %s370, 4
          %s372 = scalar_lea.vmem %s3, %s371
        $region77: #{net_forward.4} parent=23 // pred_fallthru
          _
      $region24: #{net_forward.4} parent=5 // pred_fallthru
        _
      %p373 = scmp.le.s32.totalorder 1, %s12
      %p374 = scmp.lt.s32.totalorder %s12, 33
      %p375 = pnand %p373, %p374
      %p376 = pneg %p375
      // Predicated region
      $region78: #{net_forward.4} parent=5 // pred_check
        _
      $region79: #{net_forward.4} parent=5 // pred_check_branch
        %378 = sbr.rel (%p375) target = $region81
      $region80: #{net_forward.4} parent=5 // pred_region
        %s379 = ssub.s32 %s12, 1
        %s380 = sand.u32 %s48, 1
        %s381 = sand.u32 %s48, 1
        %s382 = smul.addr %s381, 64
        %s383 = scalar_lea.vmem [#allocation3], %s382
        // Predicated region
        $region82: #{net_forward.4} parent=80 // pred_check
          %p384 = pneg %p61
        $region83: #{net_forward.4} parent=80 // pred_check_branch
          %386 = sbr.rel (%p384) target = $region85
        $region84: #{net_forward.4} parent=80 // pred_region
          _
        $region85: #{net_forward.4} parent=80 // pred_fallthru
          _
        %s387 = sand.u32 %s48, 1
        %s388 = sand.u32 %s48, 1
        %s389 = smul.addr %s388, 64
        %s390 = scalar_lea.vmem [#allocation3], %s389
        %p391 = pneg %p61
        %p392 = pneg %p58
        %s393 = smul.u32 16, %s24
        %p394 = scmp.lt.s32.totalorder %s393, 31
        %s395 = scalar_select %p394, %s393, 31
        %s396 = smul.addr %s395, 4
        %s397 = scalar_lea.vmem %s1, %s396
        %p398 = pneg %p87
        %p399 = pneg %p84
        %s400 = smul.u32 16, %s22
        %p401 = scmp.lt.s32.totalorder %s400, 31
        %s402 = scalar_select %p401, %s400, 31
        %s403 = smul.addr %s402, 4
        %s404 = scalar_lea.vmem %s2, %s403
        %p405 = pneg %p113
        %p406 = pneg %p110
        %p407 = scmp.lt.s32.totalorder %s23, 7
        %s408 = scalar_select %p407, %s23, 7
        %s409 = smul.addr %s408, 16
        %s410 = smul.addr %s409, 4
        %s411 = scalar_lea.vmem %s3, %s410
        %p412 = pneg %p139
        %p413 = pneg %p136
        %p414 = pneg %p160
        %p415 = pneg %p157
        %p416 = pneg %p181
        %p417 = pneg %p178
        %p418 = pneg %p207
        %p419 = pneg %p204
        %s420 = smul.u32 16, %s22
        %p421 = scmp.lt.s32.totalorder %s420, 31
        %s422 = scalar_select %p421, %s420, 31
        %s423 = smul.addr %s422, 8
        %s424 = scalar_lea.vmem %s6, %s423
        %s425 = smul.u32 16, %s22
        %s426 = smul.u32 16, %s24
        %p427 = scmp.lt.s32.totalorder %s426, 31
        %s428 = scalar_select %p427, %s426, 31
        %s429 = smul.addr %s428, 4
        %s430 = scalar_lea.vmem %s1, %s429
        %s431 = smul.u32 16, %s24
        %s432 = smul.u32 16, %s22
        %p433 = scmp.lt.s32.totalorder %s432, 31
        %s434 = scalar_select %p433, %s432, 31
        %s435 = smul.addr %s434, 4
        %s436 = scalar_lea.vmem %s2, %s435
        %s437 = smul.u32 16, %s22
        %p438 = scmp.lt.s32.totalorder %s23, 7
        %s439 = scalar_select %p438, %s23, 7
        %s440 = smul.addr %s439, 16
        %s441 = smul.addr %s440, 4
        %s442 = scalar_lea.vmem %s3, %s441
        %s443 = smul.u32 16, %s22
        %p444 = scmp.lt.s32.totalorder %s443, 31
        %s445 = scalar_select %p444, %s443, 31
        %s446 = smul.addr %s445, 8
        %s447 = scalar_lea.vmem %s6, %s446
        %s448 = smul.u32 16, %s22
        %p450 = scmp.eq.s32.totalorder %s23, 0
        %p451 = scmp.eq.s32.totalorder %s24, 0
        %p452 = pnand %p450, %p451
        %p453 = pneg %p452
        // Predicated region
        $region86: #{net_forward.4} parent=80 // pred_check
          _
        $region87: #{net_forward.4} parent=80 // pred_check_branch
          %455 = sbr.rel (%p452) target = $region89
        $region88: #{net_forward.4} parent=80 // pred_region
          %v456 = vld [vmem:[%s436] sm:$0xf]
          %v457 = vld [vmem:[%s436 + $0x4] sm:$0xf]
          %v458 = vld [vmem:[%s436 + $0x8] sm:$0xf]
          %v459 = vld [vmem:[%s436 + $0xc] sm:$0xf]
          %v460 = vld [vmem:[%s436 + $0x10] sm:$0xf]
          %v461 = vld [vmem:[%s436 + $0x14] sm:$0xf]
          %v462 = vld [vmem:[%s436 + $0x18] sm:$0xf]
          %v463 = vld [vmem:[%s436 + $0x1c] sm:$0xf]
          %v464 = vld [vmem:[%s436 + $0x20] sm:$0xf]
          %v465 = vld [vmem:[%s436 + $0x24] sm:$0xf]
          %v466 = vld [vmem:[%s436 + $0x28] sm:$0xf]
          %v467 = vld [vmem:[%s436 + $0x2c] sm:$0xf]
          %v468 = vld [vmem:[%s436 + $0x30] sm:$0xf]
          %v469 = vld [vmem:[%s436 + $0x34] sm:$0xf]
          %v470 = vld [vmem:[%s436 + $0x38] sm:$0xf]
          %v471 = vld [vmem:[%s436 + $0x3c] sm:$0xf]
          %v472 = vld [vmem:[%s4] sm:$0xf]
          %v473 = vld [vmem:[%s4 + $0x4] sm:$0xf]
          %v474 = vld [vmem:[%s4 + $0x8] sm:$0xf]
          %v475 = vld [vmem:[%s4 + $0xc] sm:$0xf]
          %v476 = vld [vmem:[%s4 + $0x10] sm:$0xf]
          %v477 = vld [vmem:[%s4 + $0x14] sm:$0xf]
          %v478 = vld [vmem:[%s4 + $0x18] sm:$0xf]
          %v479 = vld [vmem:[%s4 + $0x1c] sm:$0xf]
          %v480 = vld [vmem:[%s4 + $0x20] sm:$0xf]
          %v481 = vld [vmem:[%s4 + $0x24] sm:$0xf]
          %v482 = vld [vmem:[%s4 + $0x28] sm:$0xf]
          %v483 = vld [vmem:[%s4 + $0x2c] sm:$0xf]
          %v484 = vld [vmem:[%s4 + $0x30] sm:$0xf]
          %v485 = vld [vmem:[%s4 + $0x34] sm:$0xf]
          %v486 = vld [vmem:[%s4 + $0x38] sm:$0xf]
          %v487 = vld [vmem:[%s4 + $0x3c] sm:$0xf]
          %v488 = vld [vmem:[%s5] sm:$0x1]
          %v490 = vperm.slane %v488, 0
          %v508 = vunpack.c.l.b16 %v456
          %v509 = vunpack.c.l.b16 %v457
          %v510 = vunpack.c.l.b16 %v458
          %v511 = vunpack.c.l.b16 %v459
          %v512 = vunpack.c.l.b16 %v460
          %v513 = vunpack.c.l.b16 %v461
          %v514 = vunpack.c.l.b16 %v462
          %v515 = vunpack.c.l.b16 %v463
          %v516 = vunpack.c.l.b16 %v464
          %v517 = vunpack.c.l.b16 %v465
          %v518 = vunpack.c.l.b16 %v466
          %v519 = vunpack.c.l.b16 %v467
          %v520 = vunpack.c.l.b16 %v468
          %v521 = vunpack.c.l.b16 %v469
          %v522 = vunpack.c.l.b16 %v470
          %v523 = vunpack.c.l.b16 %v471
          %v524 = vpack.c.b16 %v509, %v508
          %v525 = vpack.c.b16 %v511, %v510
          %v526 = vpack.c.b16 %v513, %v512
          %v527 = vpack.c.b16 %v515, %v514
          %v528 = vpack.c.b16 %v517, %v516
          %v529 = vpack.c.b16 %v519, %v518
          %v530 = vpack.c.b16 %v521, %v520
          %v531 = vpack.c.b16 %v523, %v522
          %v556 = vunpack.c.l.b16 %v472
          %v557 = vunpack.c.l.b16 %v473
          %v558 = vunpack.c.l.b16 %v474
          %v559 = vunpack.c.l.b16 %v475
          %v560 = vunpack.c.l.b16 %v476
          %v561 = vunpack.c.l.b16 %v477
          %v562 = vunpack.c.l.b16 %v478
          %v563 = vunpack.c.l.b16 %v479
          %v564 = vunpack.c.l.b16 %v480
          %v565 = vunpack.c.l.b16 %v481
          %v566 = vunpack.c.l.b16 %v482
          %v567 = vunpack.c.l.b16 %v483
          %v568 = vunpack.c.l.b16 %v484
          %v569 = vunpack.c.l.b16 %v485
          %v570 = vunpack.c.l.b16 %v486
          %v571 = vunpack.c.l.b16 %v487
          %v572 = vpack.c.b16 %v557, %v556
          %v573 = vpack.c.b16 %v559, %v558
          %v574 = vpack.c.b16 %v561, %v560
          %v575 = vpack.c.b16 %v563, %v562
          %v576 = vpack.c.b16 %v565, %v564
          %v577 = vpack.c.b16 %v567, %v566
          %v578 = vpack.c.b16 %v569, %v568
          %v579 = vpack.c.b16 %v571, %v570
          %588 = vmatpush.bf16.msra.mxu0 %v579
          %589 = vmatpush.bf16.msra.mxu0 %v578
          %590 = vmatpush.bf16.msra.mxu0 %v577
          %591 = vmatpush.bf16.msra.mxu0 %v576
          %592 = vmatpush.bf16.msra.mxu0 %v575
          %593 = vmatpush.bf16.msra.mxu0 %v574
          %594 = vmatpush.bf16.msra.mxu0 %v573
          %595 = vmatpush.bf16.msra.mxu0 %v572
          %596 = vmatmul.bf16.gmra.mxu0 %v524
          %v597 = vpop.f32.mrf.mxu0
          %v598 = vadd.f32 %v490, %v597
          %v599 = vpop.f32.mrf.mxu0
          %v600 = vadd.f32 %v490, %v599
          %601 = vmatmul.bf16.gmra.mxu0 %v525
          %v602 = vpop.f32.mrf.mxu0
          %v603 = vadd.f32 %v490, %v602
          %v604 = vpop.f32.mrf.mxu0
          %v605 = vadd.f32 %v490, %v604
          %606 = vmatmul.bf16.gmra.mxu0 %v526
          %v607 = vpop.f32.mrf.mxu0
          %v608 = vadd.f32 %v490, %v607
          %v609 = vpop.f32.mrf.mxu0
          %v610 = vadd.f32 %v490, %v609
          %611 = vmatmul.bf16.gmra.mxu0 %v527
          %v612 = vpop.f32.mrf.mxu0
          %v613 = vadd.f32 %v490, %v612
          %v614 = vpop.f32.mrf.mxu0
          %v615 = vadd.f32 %v490, %v614
          %616 = vmatmul.bf16.gmra.mxu0 %v528
          %v617 = vpop.f32.mrf.mxu0
          %v618 = vadd.f32 %v490, %v617
          %v619 = vpop.f32.mrf.mxu0
          %v620 = vadd.f32 %v490, %v619
          %621 = vmatmul.bf16.gmra.mxu0 %v529
          %v622 = vpop.f32.mrf.mxu0
          %v623 = vadd.f32 %v490, %v622
          %v624 = vpop.f32.mrf.mxu0
          %v625 = vadd.f32 %v490, %v624
          %626 = vmatmul.bf16.gmra.mxu0 %v530
          %v627 = vpop.f32.mrf.mxu0
          %v628 = vadd.f32 %v490, %v627
          %v629 = vpop.f32.mrf.mxu0
          %v630 = vadd.f32 %v490, %v629
          %631 = vmatmul.bf16.gmra.mxu0 %v531
          %v632 = vpop.f32.mrf.mxu0
          %v633 = vadd.f32 %v490, %v632
          %v634 = vpop.f32.mrf.mxu0
          %v635 = vadd.f32 %v490, %v634
          %636 = vdwg.mxu0
          %637 = vst [vmem:[%s447] sm:$0xff] %v598
          %638 = vst [vmem:[%s447 + $0x8] sm:$0xff] %v600
          %639 = vst [vmem:[%s447 + $0x10] sm:$0xff] %v603
          %640 = vst [vmem:[%s447 + $0x18] sm:$0xff] %v605
          %641 = vst [vmem:[%s447 + $0x20] sm:$0xff] %v608
          %642 = vst [vmem:[%s447 + $0x28] sm:$0xff] %v610
          %643 = vst [vmem:[%s447 + $0x30] sm:$0xff] %v613
          %644 = vst [vmem:[%s447 + $0x38] sm:$0xff] %v615
          %645 = vst [vmem:[%s447 + $0x40] sm:$0xff] %v618
          %646 = vst [vmem:[%s447 + $0x48] sm:$0xff] %v620
          %647 = vst [vmem:[%s447 + $0x50] sm:$0xff] %v623
          %648 = vst [vmem:[%s447 + $0x58] sm:$0xff] %v625
          %649 = vst [vmem:[%s447 + $0x60] sm:$0xff] %v628
          %650 = vst [vmem:[%s447 + $0x68] sm:$0xff] %v630
          %651 = vst [vmem:[%s447 + $0x70] sm:$0xff] %v633
          %652 = vst [vmem:[%s447 + $0x78] sm:$0xff] %v635
        $region89: #{net_forward.4} parent=80 // pred_fallthru
          _
        // Predicated region
        $region90: #{net_forward.4} parent=80 // pred_check
          %p653 = pneg %p451
        $region91: #{net_forward.4} parent=80 // pred_check_branch
          %655 = sbr.rel (%p653) target = $region93
        $region92: #{net_forward.4} parent=80 // pred_region
          %656 = vst [vmem:[#allocation2] sm:$0xff] 0.0
          %657 = vst [vmem:[#allocation2 + $0x8] sm:$0xff] 0.0
          %658 = vst [vmem:[#allocation2 + $0x10] sm:$0xff] 0.0
          %659 = vst [vmem:[#allocation2 + $0x18] sm:$0xff] 0.0
          %660 = vst [vmem:[#allocation2 + $0x20] sm:$0xff] 0.0
          %661 = vst [vmem:[#allocation2 + $0x28] sm:$0xff] 0.0
          %662 = vst [vmem:[#allocation2 + $0x30] sm:$0xff] 0.0
          %663 = vst [vmem:[#allocation2 + $0x38] sm:$0xff] 0.0
          %664 = vst [vmem:[#allocation2 + $0x40] sm:$0xff] 0.0
          %665 = vst [vmem:[#allocation2 + $0x48] sm:$0xff] 0.0
          %666 = vst [vmem:[#allocation2 + $0x50] sm:$0xff] 0.0
          %667 = vst [vmem:[#allocation2 + $0x58] sm:$0xff] 0.0
          %668 = vst [vmem:[#allocation2 + $0x60] sm:$0xff] 0.0
          %669 = vst [vmem:[#allocation2 + $0x68] sm:$0xff] 0.0
          %670 = vst [vmem:[#allocation2 + $0x70] sm:$0xff] 0.0
          %671 = vst [vmem:[#allocation2 + $0x78] sm:$0xff] 0.0
        $region93: #{net_forward.4} parent=80 // pred_fallthru
          _
        %v672 = vld [vmem:[#allocation2] sm:$0xff]
        %v673 = vld [vmem:[#allocation2 + $0x8] sm:$0xff]
        %v674 = vld [vmem:[#allocation2 + $0x10] sm:$0xff]
        %v675 = vld [vmem:[#allocation2 + $0x18] sm:$0xff]
        %v676 = vld [vmem:[#allocation2 + $0x20] sm:$0xff]
        %v677 = vld [vmem:[#allocation2 + $0x28] sm:$0xff]
        %v678 = vld [vmem:[#allocation2 + $0x30] sm:$0xff]
        %v679 = vld [vmem:[#allocation2 + $0x38] sm:$0xff]
        %v680 = vld [vmem:[#allocation2 + $0x40] sm:$0xff]
        %v681 = vld [vmem:[#allocation2 + $0x48] sm:$0xff]
        %v682 = vld [vmem:[#allocation2 + $0x50] sm:$0xff]
        %v683 = vld [vmem:[#allocation2 + $0x58] sm:$0xff]
        %v684 = vld [vmem:[#allocation2 + $0x60] sm:$0xff]
        %v685 = vld [vmem:[#allocation2 + $0x68] sm:$0xff]
        %v686 = vld [vmem:[#allocation2 + $0x70] sm:$0xff]
        %v687 = vld [vmem:[#allocation2 + $0x78] sm:$0xff]
        %v688 = vld [vmem:[%s383] sm:$0xf]
        %v689 = vld [vmem:[%s383 + $0x4] sm:$0xf]
        %v690 = vld [vmem:[%s383 + $0x8] sm:$0xf]
        %v691 = vld [vmem:[%s383 + $0xc] sm:$0xf]
        %v692 = vld [vmem:[%s383 + $0x10] sm:$0xf]
        %v693 = vld [vmem:[%s383 + $0x14] sm:$0xf]
        %v694 = vld [vmem:[%s383 + $0x18] sm:$0xf]
        %v695 = vld [vmem:[%s383 + $0x1c] sm:$0xf]
        %v696 = vld [vmem:[%s383 + $0x20] sm:$0xf]
        %v697 = vld [vmem:[%s383 + $0x24] sm:$0xf]
        %v698 = vld [vmem:[%s383 + $0x28] sm:$0xf]
        %v699 = vld [vmem:[%s383 + $0x2c] sm:$0xf]
        %v700 = vld [vmem:[%s383 + $0x30] sm:$0xf]
        %v701 = vld [vmem:[%s383 + $0x34] sm:$0xf]
        %v702 = vld [vmem:[%s383 + $0x38] sm:$0xf]
        %v703 = vld [vmem:[%s383 + $0x3c] sm:$0xf]
        %v704 = vld [vmem:[%s430] sm:$0xf]
        %v705 = vld [vmem:[%s430 + $0x4] sm:$0xf]
        %v706 = vld [vmem:[%s430 + $0x8] sm:$0xf]
        %v707 = vld [vmem:[%s430 + $0xc] sm:$0xf]
        %v708 = vld [vmem:[%s430 + $0x10] sm:$0xf]
        %v709 = vld [vmem:[%s430 + $0x14] sm:$0xf]
        %v710 = vld [vmem:[%s430 + $0x18] sm:$0xf]
        %v711 = vld [vmem:[%s430 + $0x1c] sm:$0xf]
        %v712 = vld [vmem:[%s430 + $0x20] sm:$0xf]
        %v713 = vld [vmem:[%s430 + $0x24] sm:$0xf]
        %v714 = vld [vmem:[%s430 + $0x28] sm:$0xf]
        %v715 = vld [vmem:[%s430 + $0x2c] sm:$0xf]
        %v716 = vld [vmem:[%s430 + $0x30] sm:$0xf]
        %v717 = vld [vmem:[%s430 + $0x34] sm:$0xf]
        %v718 = vld [vmem:[%s430 + $0x38] sm:$0xf]
        %v719 = vld [vmem:[%s430 + $0x3c] sm:$0xf]
        %v736 = vunpack.c.l.b16 %v688
        %v737 = vunpack.c.l.b16 %v689
        %v738 = vunpack.c.l.b16 %v690
        %v739 = vunpack.c.l.b16 %v691
        %v740 = vunpack.c.l.b16 %v692
        %v741 = vunpack.c.l.b16 %v693
        %v742 = vunpack.c.l.b16 %v694
        %v743 = vunpack.c.l.b16 %v695
        %v744 = vunpack.c.l.b16 %v696
        %v745 = vunpack.c.l.b16 %v697
        %v746 = vunpack.c.l.b16 %v698
        %v747 = vunpack.c.l.b16 %v699
        %v748 = vunpack.c.l.b16 %v700
        %v749 = vunpack.c.l.b16 %v701
        %v750 = vunpack.c.l.b16 %v702
        %v751 = vunpack.c.l.b16 %v703
        %v752 = vpack.c.b16 %v737, %v736
        %v753 = vpack.c.b16 %v739, %v738
        %v754 = vpack.c.b16 %v741, %v740
        %v755 = vpack.c.b16 %v743, %v742
        %v756 = vpack.c.b16 %v745, %v744
        %v757 = vpack.c.b16 %v747, %v746
        %v758 = vpack.c.b16 %v749, %v748
        %v759 = vpack.c.b16 %v751, %v750
        %v784 = vunpack.c.l.b16 %v704
        %v785 = vunpack.c.l.b16 %v705
        %v786 = vunpack.c.l.b16 %v706
        %v787 = vunpack.c.l.b16 %v707
        %v788 = vunpack.c.l.b16 %v708
        %v789 = vunpack.c.l.b16 %v709
        %v790 = vunpack.c.l.b16 %v710
        %v791 = vunpack.c.l.b16 %v711
        %v792 = vunpack.c.l.b16 %v712
        %v793 = vunpack.c.l.b16 %v713
        %v794 = vunpack.c.l.b16 %v714
        %v795 = vunpack.c.l.b16 %v715
        %v796 = vunpack.c.l.b16 %v716
        %v797 = vunpack.c.l.b16 %v717
        %v798 = vunpack.c.l.b16 %v718
        %v799 = vunpack.c.l.b16 %v719
        %v800 = vpack.c.b16 %v785, %v784
        %v801 = vpack.c.b16 %v787, %v786
        %v802 = vpack.c.b16 %v789, %v788
        %v803 = vpack.c.b16 %v791, %v790
        %v804 = vpack.c.b16 %v793, %v792
        %v805 = vpack.c.b16 %v795, %v794
        %v806 = vpack.c.b16 %v797, %v796
        %v807 = vpack.c.b16 %v799, %v798
        %816 = vmatpush.bf16.msra.mxu0 %v807
        %817 = vmatpush.bf16.msra.mxu0 %v806
        %818 = vmatpush.bf16.msra.mxu0 %v805
        %819 = vmatpush.bf16.msra.mxu0 %v804
        %820 = vmatpush.bf16.msra.mxu0 %v803
        %821 = vmatpush.bf16.msra.mxu0 %v802
        %822 = vmatpush.bf16.msra.mxu0 %v801
        %823 = vmatpush.bf16.msra.mxu0 %v800
        %824 = vmatmul.bf16.gmra.mxu0 %v752
        %v825 = vpop.f32.mrf.mxu0
        %v826 = vadd.f32 0.0, %v825
        %v827 = vpop.f32.mrf.mxu0
        %v828 = vadd.f32 0.0, %v827
        %829 = vmatmul.bf16.gmra.mxu0 %v753
        %v830 = vpop.f32.mrf.mxu0
        %v831 = vadd.f32 0.0, %v830
        %v832 = vpop.f32.mrf.mxu0
        %v833 = vadd.f32 0.0, %v832
        %834 = vmatmul.bf16.gmra.mxu0 %v754
        %v835 = vpop.f32.mrf.mxu0
        %v836 = vadd.f32 0.0, %v835
        %v837 = vpop.f32.mrf.mxu0
        %v838 = vadd.f32 0.0, %v837
        %839 = vmatmul.bf16.gmra.mxu0 %v755
        %v840 = vpop.f32.mrf.mxu0
        %v841 = vadd.f32 0.0, %v840
        %v842 = vpop.f32.mrf.mxu0
        %v843 = vadd.f32 0.0, %v842
        %844 = vmatmul.bf16.gmra.mxu0 %v756
        %v845 = vpop.f32.mrf.mxu0
        %v846 = vadd.f32 0.0, %v845
        %v847 = vpop.f32.mrf.mxu0
        %v848 = vadd.f32 0.0, %v847
        %849 = vmatmul.bf16.gmra.mxu0 %v757
        %v850 = vpop.f32.mrf.mxu0
        %v851 = vadd.f32 0.0, %v850
        %v852 = vpop.f32.mrf.mxu0
        %v853 = vadd.f32 0.0, %v852
        %854 = vmatmul.bf16.gmra.mxu0 %v758
        %v855 = vpop.f32.mrf.mxu0
        %v856 = vadd.f32 0.0, %v855
        %v857 = vpop.f32.mrf.mxu0
        %v858 = vadd.f32 0.0, %v857
        %859 = vmatmul.bf16.gmra.mxu0 %v759
        %v860 = vpop.f32.mrf.mxu0
        %v861 = vadd.f32 0.0, %v860
        %v862 = vpop.f32.mrf.mxu0
        %v863 = vadd.f32 0.0, %v862
        %864 = vdwg.mxu0
        %v865 = vadd.f32 %v672, %v826
        %v866 = vadd.f32 %v673, %v828
        %v867 = vadd.f32 %v674, %v831
        %v868 = vadd.f32 %v675, %v833
        %v869 = vadd.f32 %v676, %v836
        %v870 = vadd.f32 %v677, %v838
        %v871 = vadd.f32 %v678, %v841
        %v872 = vadd.f32 %v679, %v843
        %v873 = vadd.f32 %v680, %v846
        %v874 = vadd.f32 %v681, %v848
        %v875 = vadd.f32 %v682, %v851
        %v876 = vadd.f32 %v683, %v853
        %v877 = vadd.f32 %v684, %v856
        %v878 = vadd.f32 %v685, %v858
        %v879 = vadd.f32 %v686, %v861
        %v880 = vadd.f32 %v687, %v863
        %881 = vst [vmem:[#allocation2] sm:$0xff] %v865
        %882 = vst [vmem:[#allocation2 + $0x8] sm:$0xff] %v866
        %883 = vst [vmem:[#allocation2 + $0x10] sm:$0xff] %v867
        %884 = vst [vmem:[#allocation2 + $0x18] sm:$0xff] %v868
        %885 = vst [vmem:[#allocation2 + $0x20] sm:$0xff] %v869
        %886 = vst [vmem:[#allocation2 + $0x28] sm:$0xff] %v870
        %887 = vst [vmem:[#allocation2 + $0x30] sm:$0xff] %v871
        %888 = vst [vmem:[#allocation2 + $0x38] sm:$0xff] %v872
        %889 = vst [vmem:[#allocation2 + $0x40] sm:$0xff] %v873
        %890 = vst [vmem:[#allocation2 + $0x48] sm:$0xff] %v874
        %891 = vst [vmem:[#allocation2 + $0x50] sm:$0xff] %v875
        %892 = vst [vmem:[#allocation2 + $0x58] sm:$0xff] %v876
        %893 = vst [vmem:[#allocation2 + $0x60] sm:$0xff] %v877
        %894 = vst [vmem:[#allocation2 + $0x68] sm:$0xff] %v878
        %895 = vst [vmem:[#allocation2 + $0x70] sm:$0xff] %v879
        %896 = vst [vmem:[#allocation2 + $0x78] sm:$0xff] %v880
        %p897 = scmp.eq.s32.totalorder %s24, 1
        // Predicated region
        $region94: #{net_forward.4} parent=80 // pred_check
          %p898 = pneg %p897
        $region95: #{net_forward.4} parent=80 // pred_check_branch
          %900 = sbr.rel (%p898) target = $region97
        $region96: #{net_forward.4} parent=80 // pred_region
          %v901 = vld [vmem:[#allocation2] sm:$0xff]
          %v902 = vld [vmem:[#allocation2 + $0x8] sm:$0xff]
          %v903 = vld [vmem:[#allocation2 + $0x10] sm:$0xff]
          %v904 = vld [vmem:[#allocation2 + $0x18] sm:$0xff]
          %v905 = vld [vmem:[#allocation2 + $0x20] sm:$0xff]
          %v906 = vld [vmem:[#allocation2 + $0x28] sm:$0xff]
          %v907 = vld [vmem:[#allocation2 + $0x30] sm:$0xff]
          %v908 = vld [vmem:[#allocation2 + $0x38] sm:$0xff]
          %v909 = vld [vmem:[#allocation2 + $0x40] sm:$0xff]
          %v910 = vld [vmem:[#allocation2 + $0x48] sm:$0xff]
          %v911 = vld [vmem:[#allocation2 + $0x50] sm:$0xff]
          %v912 = vld [vmem:[#allocation2 + $0x58] sm:$0xff]
          %v913 = vld [vmem:[#allocation2 + $0x60] sm:$0xff]
          %v914 = vld [vmem:[#allocation2 + $0x68] sm:$0xff]
          %v915 = vld [vmem:[#allocation2 + $0x70] sm:$0xff]
          %v916 = vld [vmem:[#allocation2 + $0x78] sm:$0xff]
          %v917 = vpack.c.bf16 %v901, %v901
          %v918 = vpack.c.bf16 %v902, %v902
          %v919 = vpack.c.bf16 %v903, %v903
          %v920 = vpack.c.bf16 %v904, %v904
          %v921 = vpack.c.bf16 %v905, %v905
          %v922 = vpack.c.bf16 %v906, %v906
          %v923 = vpack.c.bf16 %v907, %v907
          %v924 = vpack.c.bf16 %v908, %v908
          %v925 = vpack.c.bf16 %v909, %v909
          %v926 = vpack.c.bf16 %v910, %v910
          %v927 = vpack.c.bf16 %v911, %v911
          %v928 = vpack.c.bf16 %v912, %v912
          %v929 = vpack.c.bf16 %v913, %v913
          %v930 = vpack.c.bf16 %v914, %v914
          %v931 = vpack.c.bf16 %v915, %v915
          %v932 = vpack.c.bf16 %v916, %v916
          %v933 = vld [vmem:[%s442] sm:$0xf]
          %v934 = vld [vmem:[%s442 + $0x4] sm:$0xf]
          %v935 = vld [vmem:[%s442 + $0x8] sm:$0xf]
          %v936 = vld [vmem:[%s442 + $0xc] sm:$0xf]
          %v953 = vunpack.c.l.b16 %v917
          %v954 = vunpack.c.l.b16 %v918
          %v955 = vunpack.c.l.b16 %v919
          %v956 = vunpack.c.l.b16 %v920
          %v957 = vunpack.c.l.b16 %v921
          %v958 = vunpack.c.l.b16 %v922
          %v959 = vunpack.c.l.b16 %v923
          %v960 = vunpack.c.l.b16 %v924
          %v961 = vunpack.c.l.b16 %v925
          %v962 = vunpack.c.l.b16 %v926
          %v963 = vunpack.c.l.b16 %v927
          %v964 = vunpack.c.l.b16 %v928
          %v965 = vunpack.c.l.b16 %v929
          %v966 = vunpack.c.l.b16 %v930
          %v967 = vunpack.c.l.b16 %v931
          %v968 = vunpack.c.l.b16 %v932
          %v969 = vpack.c.b16 %v954, %v953
          %v970 = vpack.c.b16 %v956, %v955
          %v971 = vpack.c.b16 %v958, %v957
          %v972 = vpack.c.b16 %v960, %v959
          %v973 = vpack.c.b16 %v962, %v961
          %v974 = vpack.c.b16 %v964, %v963
          %v975 = vpack.c.b16 %v966, %v965
          %v976 = vpack.c.b16 %v968, %v967
          %v981 = vunpack.c.l.b16 %v933
          %v982 = vunpack.c.l.b16 %v934
          %v983 = vunpack.c.l.b16 %v935
          %v984 = vunpack.c.l.b16 %v936
          %v985 = vpack.c.b16 %v982, %v981
          %v986 = vpack.c.b16 %v984, %v983
          %vm989 = vcmask 261120
          %v991 = vsel %vm989, %v969, 0
          %v994 = vsel %vm989, %v970, 0
          %v997 = vsel %vm989, %v971, 0
          %v1000 = vsel %vm989, %v972, 0
          %v1003 = vsel %vm989, %v973, 0
          %v1006 = vsel %vm989, %v974, 0
          %v1009 = vsel %vm989, %v975, 0
          %v1012 = vsel %vm989, %v976, 0
          %1014 = vmatpush.bf16.msra.mxu0 0
          %1015 = vmatpush.bf16.msra.mxu0 0
          %1016 = vmatpush.bf16.msra.mxu0 0
          %1017 = vmatpush.bf16.msra.mxu0 0
          %1018 = vmatpush.bf16.msra.mxu0 0
          %1019 = vmatpush.bf16.msra.mxu0 0
          %1020 = vmatpush.bf16.msra.mxu0 %v986
          %1021 = vmatpush.bf16.msra.mxu0 %v985
          %1022 = vmatmul.bf16.gmra.mxu0 %v991
          %v1023 = vpop.f32.mrf.mxu0
          %v1024 = vadd.f32 0.0, %v1023
          %v1025 = vpop.f32.mrf.mxu0
          %v1026 = vadd.f32 0.0, %v1025
          %1027 = vmatmul.bf16.gmra.mxu0 %v994
          %v1028 = vpop.f32.mrf.mxu0
          %v1029 = vadd.f32 0.0, %v1028
          %v1030 = vpop.f32.mrf.mxu0
          %v1031 = vadd.f32 0.0, %v1030
          %1032 = vmatmul.bf16.gmra.mxu0 %v997
          %v1033 = vpop.f32.mrf.mxu0
          %v1034 = vadd.f32 0.0, %v1033
          %v1035 = vpop.f32.mrf.mxu0
          %v1036 = vadd.f32 0.0, %v1035
          %1037 = vmatmul.bf16.gmra.mxu0 %v1000
          %v1038 = vpop.f32.mrf.mxu0
          %v1039 = vadd.f32 0.0, %v1038
          %v1040 = vpop.f32.mrf.mxu0
          %v1041 = vadd.f32 0.0, %v1040
          %1042 = vmatmul.bf16.gmra.mxu0 %v1003
          %v1043 = vpop.f32.mrf.mxu0
          %v1044 = vadd.f32 0.0, %v1043
          %v1045 = vpop.f32.mrf.mxu0
          %v1046 = vadd.f32 0.0, %v1045
          %1047 = vmatmul.bf16.gmra.mxu0 %v1006
          %v1048 = vpop.f32.mrf.mxu0
          %v1049 = vadd.f32 0.0, %v1048
          %v1050 = vpop.f32.mrf.mxu0
          %v1051 = vadd.f32 0.0, %v1050
          %1052 = vmatmul.bf16.gmra.mxu0 %v1009
          %v1053 = vpop.f32.mrf.mxu0
          %v1054 = vadd.f32 0.0, %v1053
          %v1055 = vpop.f32.mrf.mxu0
          %v1056 = vadd.f32 0.0, %v1055
          %1057 = vmatmul.bf16.gmra.mxu0 %v1012
          %v1058 = vpop.f32.mrf.mxu0
          %v1059 = vadd.f32 0.0, %v1058
          %v1060 = vpop.f32.mrf.mxu0
          %v1061 = vadd.f32 0.0, %v1060
          %1062 = vdwg.mxu0
          %s1063 = scalar_lea.vmem %s442, 16
          %v1064 = vld [vmem:[%s1063] sm:$0xf]
          %v1065 = vld [vmem:[%s1063 + $0x4] sm:$0xf]
          %v1066 = vld [vmem:[%s1063 + $0x8] sm:$0xf]
          %v1067 = vld [vmem:[%s1063 + $0xc] sm:$0xf]
          %1068 = vrot.lane.b32.xlu0 %v969, 96
          %v1069 = vpop.permute.xlu0 %1068
          %1070 = vrot.lane.b32.xlu0 %v970, 96
          %v1071 = vpop.permute.xlu0 %1070
          %1072 = vrot.lane.b32.xlu0 %v971, 96
          %v1073 = vpop.permute.xlu0 %1072
          %1074 = vrot.lane.b32.xlu0 %v972, 96
          %v1075 = vpop.permute.xlu0 %1074
          %1076 = vrot.lane.b32.xlu0 %v973, 96
          %v1077 = vpop.permute.xlu0 %1076
          %1078 = vrot.lane.b32.xlu0 %v974, 96
          %v1079 = vpop.permute.xlu0 %1078
          %1080 = vrot.lane.b32.xlu0 %v975, 96
          %v1081 = vpop.permute.xlu0 %1080
          %1082 = vrot.lane.b32.xlu0 %v976, 96
          %v1083 = vpop.permute.xlu0 %1082
          %v1088 = vunpack.c.l.b16 %v1064
          %v1089 = vunpack.c.l.b16 %v1065
          %v1090 = vunpack.c.l.b16 %v1066
          %v1091 = vunpack.c.l.b16 %v1067
          %v1092 = vpack.c.b16 %v1089, %v1088
          %v1093 = vpack.c.b16 %v1091, %v1090
          %v1097 = vsel %vm989, %v1069, 0
          %v1100 = vsel %vm989, %v1071, 0
          %v1103 = vsel %vm989, %v1073, 0
          %v1106 = vsel %vm989, %v1075, 0
          %v1109 = vsel %vm989, %v1077, 0
          %v1112 = vsel %vm989, %v1079, 0
          %v1115 = vsel %vm989, %v1081, 0
          %v1118 = vsel %vm989, %v1083, 0
          %1120 = vmatpush.bf16.msra.mxu0 0
          %1121 = vmatpush.bf16.msra.mxu0 0
          %1122 = vmatpush.bf16.msra.mxu0 0
          %1123 = vmatpush.bf16.msra.mxu0 0
          %1124 = vmatpush.bf16.msra.mxu0 0
          %1125 = vmatpush.bf16.msra.mxu0 0
          %1126 = vmatpush.bf16.msra.mxu0 %v1093
          %1127 = vmatpush.bf16.msra.mxu0 %v1092
          %1128 = vmatmul.bf16.gmra.mxu0 %v1097
          %v1129 = vpop.f32.mrf.mxu0
          %v1130 = vadd.f32 0.0, %v1129
          %v1131 = vpop.f32.mrf.mxu0
          %v1132 = vadd.f32 0.0, %v1131
          %1133 = vmatmul.bf16.gmra.mxu0 %v1100
          %v1134 = vpop.f32.mrf.mxu0
          %v1135 = vadd.f32 0.0, %v1134
          %v1136 = vpop.f32.mrf.mxu0
          %v1137 = vadd.f32 0.0, %v1136
          %1138 = vmatmul.bf16.gmra.mxu0 %v1103
          %v1139 = vpop.f32.mrf.mxu0
          %v1140 = vadd.f32 0.0, %v1139
          %v1141 = vpop.f32.mrf.mxu0
          %v1142 = vadd.f32 0.0, %v1141
          %1143 = vmatmul.bf16.gmra.mxu0 %v1106
          %v1144 = vpop.f32.mrf.mxu0
          %v1145 = vadd.f32 0.0, %v1144
          %v1146 = vpop.f32.mrf.mxu0
          %v1147 = vadd.f32 0.0, %v1146
          %1148 = vmatmul.bf16.gmra.mxu0 %v1109
          %v1149 = vpop.f32.mrf.mxu0
          %v1150 = vadd.f32 0.0, %v1149
          %v1151 = vpop.f32.mrf.mxu0
          %v1152 = vadd.f32 0.0, %v1151
          %1153 = vmatmul.bf16.gmra.mxu0 %v1112
          %v1154 = vpop.f32.mrf.mxu0
          %v1155 = vadd.f32 0.0, %v1154
          %v1156 = vpop.f32.mrf.mxu0
          %v1157 = vadd.f32 0.0, %v1156
          %1158 = vmatmul.bf16.gmra.mxu0 %v1115
          %v1159 = vpop.f32.mrf.mxu0
          %v1160 = vadd.f32 0.0, %v1159
          %v1161 = vpop.f32.mrf.mxu0
          %v1162 = vadd.f32 0.0, %v1161
          %1163 = vmatmul.bf16.gmra.mxu0 %v1118
          %v1164 = vpop.f32.mrf.mxu0
          %v1165 = vadd.f32 0.0, %v1164
          %v1166 = vpop.f32.mrf.mxu0
          %v1167 = vadd.f32 0.0, %v1166
          %1168 = vdwg.mxu0
          %s1169 = scalar_lea.vmem %s442, 32
          %v1170 = vld [vmem:[%s1169] sm:$0xf]
          %v1171 = vld [vmem:[%s1169 + $0x4] sm:$0xf]
          %v1172 = vld [vmem:[%s1169 + $0x8] sm:$0xf]
          %v1173 = vld [vmem:[%s1169 + $0xc] sm:$0xf]
          %1174 = vrot.lane.b32.xlu0 %v969, 64
          %v1175 = vpop.permute.xlu0 %1174
          %1176 = vrot.lane.b32.xlu0 %v970, 64
          %v1177 = vpop.permute.xlu0 %1176
          %1178 = vrot.lane.b32.xlu0 %v971, 64
          %v1179 = vpop.permute.xlu0 %1178
          %1180 = vrot.lane.b32.xlu0 %v972, 64
          %v1181 = vpop.permute.xlu0 %1180
          %1182 = vrot.lane.b32.xlu0 %v973, 64
          %v1183 = vpop.permute.xlu0 %1182
          %1184 = vrot.lane.b32.xlu0 %v974, 64
          %v1185 = vpop.permute.xlu0 %1184
          %1186 = vrot.lane.b32.xlu0 %v975, 64
          %v1187 = vpop.permute.xlu0 %1186
          %1188 = vrot.lane.b32.xlu0 %v976, 64
          %v1189 = vpop.permute.xlu0 %1188
          %v1194 = vunpack.c.l.b16 %v1170
          %v1195 = vunpack.c.l.b16 %v1171
          %v1196 = vunpack.c.l.b16 %v1172
          %v1197 = vunpack.c.l.b16 %v1173
          %v1198 = vpack.c.b16 %v1195, %v1194
          %v1199 = vpack.c.b16 %v1197, %v1196
          %v1203 = vsel %vm989, %v1175, 0
          %v1206 = vsel %vm989, %v1177, 0
          %v1209 = vsel %vm989, %v1179, 0
          %v1212 = vsel %vm989, %v1181, 0
          %v1215 = vsel %vm989, %v1183, 0
          %v1218 = vsel %vm989, %v1185, 0
          %v1221 = vsel %vm989, %v1187, 0
          %v1224 = vsel %vm989, %v1189, 0
          %1226 = vmatpush.bf16.msra.mxu0 0
          %1227 = vmatpush.bf16.msra.mxu0 0
          %1228 = vmatpush.bf16.msra.mxu0 0
          %1229 = vmatpush.bf16.msra.mxu0 0
          %1230 = vmatpush.bf16.msra.mxu0 0
          %1231 = vmatpush.bf16.msra.mxu0 0
          %1232 = vmatpush.bf16.msra.mxu0 %v1199
          %1233 = vmatpush.bf16.msra.mxu0 %v1198
          %1234 = vmatmul.bf16.gmra.mxu0 %v1203
          %v1235 = vpop.f32.mrf.mxu0
          %v1236 = vadd.f32 0.0, %v1235
          %v1237 = vpop.f32.mrf.mxu0
          %v1238 = vadd.f32 0.0, %v1237
          %1239 = vmatmul.bf16.gmra.mxu0 %v1206
          %v1240 = vpop.f32.mrf.mxu0
          %v1241 = vadd.f32 0.0, %v1240
          %v1242 = vpop.f32.mrf.mxu0
          %v1243 = vadd.f32 0.0, %v1242
          %1244 = vmatmul.bf16.gmra.mxu0 %v1209
          %v1245 = vpop.f32.mrf.mxu0
          %v1246 = vadd.f32 0.0, %v1245
          %v1247 = vpop.f32.mrf.mxu0
          %v1248 = vadd.f32 0.0, %v1247
          %1249 = vmatmul.bf16.gmra.mxu0 %v1212
          %v1250 = vpop.f32.mrf.mxu0
          %v1251 = vadd.f32 0.0, %v1250
          %v1252 = vpop.f32.mrf.mxu0
          %v1253 = vadd.f32 0.0, %v1252
          %1254 = vmatmul.bf16.gmra.mxu0 %v1215
          %v1255 = vpop.f32.mrf.mxu0
          %v1256 = vadd.f32 0.0, %v1255
          %v1257 = vpop.f32.mrf.mxu0
          %v1258 = vadd.f32 0.0, %v1257
          %1259 = vmatmul.bf16.gmra.mxu0 %v1218
          %v1260 = vpop.f32.mrf.mxu0
          %v1261 = vadd.f32 0.0, %v1260
          %v1262 = vpop.f32.mrf.mxu0
          %v1263 = vadd.f32 0.0, %v1262
          %1264 = vmatmul.bf16.gmra.mxu0 %v1221
          %v1265 = vpop.f32.mrf.mxu0
          %v1266 = vadd.f32 0.0, %v1265
          %v1267 = vpop.f32.mrf.mxu0
          %v1268 = vadd.f32 0.0, %v1267
          %1269 = vmatmul.bf16.gmra.mxu0 %v1224
          %v1270 = vpop.f32.mrf.mxu0
          %v1271 = vadd.f32 0.0, %v1270
          %v1272 = vpop.f32.mrf.mxu0
          %v1273 = vadd.f32 0.0, %v1272
          %1274 = vdwg.mxu0
          %s1275 = scalar_lea.vmem %s442, 48
          %v1276 = vld [vmem:[%s1275] sm:$0xf]
          %v1277 = vld [vmem:[%s1275 + $0x4] sm:$0xf]
          %v1278 = vld [vmem:[%s1275 + $0x8] sm:$0xf]
          %v1279 = vld [vmem:[%s1275 + $0xc] sm:$0xf]
          %1280 = vrot.lane.b32.xlu0 %v969, 32
          %v1281 = vpop.permute.xlu0 %1280
          %1282 = vrot.lane.b32.xlu0 %v970, 32
          %v1283 = vpop.permute.xlu0 %1282
          %1284 = vrot.lane.b32.xlu0 %v971, 32
          %v1285 = vpop.permute.xlu0 %1284
          %1286 = vrot.lane.b32.xlu0 %v972, 32
          %v1287 = vpop.permute.xlu0 %1286
          %1288 = vrot.lane.b32.xlu0 %v973, 32
          %v1289 = vpop.permute.xlu0 %1288
          %1290 = vrot.lane.b32.xlu0 %v974, 32
          %v1291 = vpop.permute.xlu0 %1290
          %1292 = vrot.lane.b32.xlu0 %v975, 32
          %v1293 = vpop.permute.xlu0 %1292
          %1294 = vrot.lane.b32.xlu0 %v976, 32
          %v1295 = vpop.permute.xlu0 %1294
          %v1300 = vunpack.c.l.b16 %v1276
          %v1301 = vunpack.c.l.b16 %v1277
          %v1302 = vunpack.c.l.b16 %v1278
          %v1303 = vunpack.c.l.b16 %v1279
          %v1304 = vpack.c.b16 %v1301, %v1300
          %v1305 = vpack.c.b16 %v1303, %v1302
          %v1309 = vsel %vm989, %v1281, 0
          %v1312 = vsel %vm989, %v1283, 0
          %v1315 = vsel %vm989, %v1285, 0
          %v1318 = vsel %vm989, %v1287, 0
          %v1321 = vsel %vm989, %v1289, 0
          %v1324 = vsel %vm989, %v1291, 0
          %v1327 = vsel %vm989, %v1293, 0
          %v1330 = vsel %vm989, %v1295, 0
          %1332 = vmatpush.bf16.msra.mxu0 0
          %1333 = vmatpush.bf16.msra.mxu0 0
          %1334 = vmatpush.bf16.msra.mxu0 0
          %1335 = vmatpush.bf16.msra.mxu0 0
          %1336 = vmatpush.bf16.msra.mxu0 0
          %1337 = vmatpush.bf16.msra.mxu0 0
          %1338 = vmatpush.bf16.msra.mxu0 %v1305
          %1339 = vmatpush.bf16.msra.mxu0 %v1304
          %1340 = vmatmul.bf16.gmra.mxu0 %v1309
          %v1341 = vpop.f32.mrf.mxu0
          %v1342 = vadd.f32 0.0, %v1341
          %v1343 = vpop.f32.mrf.mxu0
          %v1344 = vadd.f32 0.0, %v1343
          %1345 = vmatmul.bf16.gmra.mxu0 %v1312
          %v1346 = vpop.f32.mrf.mxu0
          %v1347 = vadd.f32 0.0, %v1346
          %v1348 = vpop.f32.mrf.mxu0
          %v1349 = vadd.f32 0.0, %v1348
          %1350 = vmatmul.bf16.gmra.mxu0 %v1315
          %v1351 = vpop.f32.mrf.mxu0
          %v1352 = vadd.f32 0.0, %v1351
          %v1353 = vpop.f32.mrf.mxu0
          %v1354 = vadd.f32 0.0, %v1353
          %1355 = vmatmul.bf16.gmra.mxu0 %v1318
          %v1356 = vpop.f32.mrf.mxu0
          %v1357 = vadd.f32 0.0, %v1356
          %v1358 = vpop.f32.mrf.mxu0
          %v1359 = vadd.f32 0.0, %v1358
          %1360 = vmatmul.bf16.gmra.mxu0 %v1321
          %v1361 = vpop.f32.mrf.mxu0
          %v1362 = vadd.f32 0.0, %v1361
          %v1363 = vpop.f32.mrf.mxu0
          %v1364 = vadd.f32 0.0, %v1363
          %1365 = vmatmul.bf16.gmra.mxu0 %v1324
          %v1366 = vpop.f32.mrf.mxu0
          %v1367 = vadd.f32 0.0, %v1366
          %v1368 = vpop.f32.mrf.mxu0
          %v1369 = vadd.f32 0.0, %v1368
          %1370 = vmatmul.bf16.gmra.mxu0 %v1327
          %v1371 = vpop.f32.mrf.mxu0
          %v1372 = vadd.f32 0.0, %v1371
          %v1373 = vpop.f32.mrf.mxu0
          %v1374 = vadd.f32 0.0, %v1373
          %1375 = vmatmul.bf16.gmra.mxu0 %v1330
          %v1376 = vpop.f32.mrf.mxu0
          %v1377 = vadd.f32 0.0, %v1376
          %v1378 = vpop.f32.mrf.mxu0
          %v1379 = vadd.f32 0.0, %v1378
          %1380 = vdwg.mxu0
          %v1381 = vld [vmem:[%s447] sm:$0xff]
          %v1382 = vld [vmem:[%s447 + $0x8] sm:$0xff]
          %v1383 = vld [vmem:[%s447 + $0x10] sm:$0xff]
          %v1384 = vld [vmem:[%s447 + $0x18] sm:$0xff]
          %v1385 = vld [vmem:[%s447 + $0x20] sm:$0xff]
          %v1386 = vld [vmem:[%s447 + $0x28] sm:$0xff]
          %v1387 = vld [vmem:[%s447 + $0x30] sm:$0xff]
          %v1388 = vld [vmem:[%s447 + $0x38] sm:$0xff]
          %v1389 = vld [vmem:[%s447 + $0x40] sm:$0xff]
          %v1390 = vld [vmem:[%s447 + $0x48] sm:$0xff]
          %v1391 = vld [vmem:[%s447 + $0x50] sm:$0xff]
          %v1392 = vld [vmem:[%s447 + $0x58] sm:$0xff]
          %v1393 = vld [vmem:[%s447 + $0x60] sm:$0xff]
          %v1394 = vld [vmem:[%s447 + $0x68] sm:$0xff]
          %v1395 = vld [vmem:[%s447 + $0x70] sm:$0xff]
          %v1396 = vld [vmem:[%s447 + $0x78] sm:$0xff]
          %1413 = vrot.lane.b32.xlu0 %v1130, 32
          %v1414 = vpop.permute.xlu0 %1413
          %1415 = vrot.lane.b32.xlu0 %v1132, 32
          %v1416 = vpop.permute.xlu0 %1415
          %1417 = vrot.lane.b32.xlu0 %v1135, 32
          %v1418 = vpop.permute.xlu0 %1417
          %1419 = vrot.lane.b32.xlu0 %v1137, 32
          %v1420 = vpop.permute.xlu0 %1419
          %1421 = vrot.lane.b32.xlu0 %v1140, 32
          %v1422 = vpop.permute.xlu0 %1421
          %1423 = vrot.lane.b32.xlu0 %v1142, 32
          %v1424 = vpop.permute.xlu0 %1423
          %1425 = vrot.lane.b32.xlu0 %v1145, 32
          %v1426 = vpop.permute.xlu0 %1425
          %1427 = vrot.lane.b32.xlu0 %v1147, 32
          %v1428 = vpop.permute.xlu0 %1427
          %1429 = vrot.lane.b32.xlu0 %v1150, 32
          %v1430 = vpop.permute.xlu0 %1429
          %1431 = vrot.lane.b32.xlu0 %v1152, 32
          %v1432 = vpop.permute.xlu0 %1431
          %1433 = vrot.lane.b32.xlu0 %v1155, 32
          %v1434 = vpop.permute.xlu0 %1433
          %1435 = vrot.lane.b32.xlu0 %v1157, 32
          %v1436 = vpop.permute.xlu0 %1435
          %1437 = vrot.lane.b32.xlu0 %v1160, 32
          %v1438 = vpop.permute.xlu0 %1437
          %1439 = vrot.lane.b32.xlu0 %v1162, 32
          %v1440 = vpop.permute.xlu0 %1439
          %1441 = vrot.lane.b32.xlu0 %v1165, 32
          %v1442 = vpop.permute.xlu0 %1441
          %1443 = vrot.lane.b32.xlu0 %v1167, 32
          %v1444 = vpop.permute.xlu0 %1443
          %1477 = vrot.lane.b32.xlu0 %v1236, 64
          %v1478 = vpop.permute.xlu0 %1477
          %1479 = vrot.lane.b32.xlu0 %v1238, 64
          %v1480 = vpop.permute.xlu0 %1479
          %1481 = vrot.lane.b32.xlu0 %v1241, 64
          %v1482 = vpop.permute.xlu0 %1481
          %1483 = vrot.lane.b32.xlu0 %v1243, 64
          %v1484 = vpop.permute.xlu0 %1483
          %1485 = vrot.lane.b32.xlu0 %v1246, 64
          %v1486 = vpop.permute.xlu0 %1485
          %1487 = vrot.lane.b32.xlu0 %v1248, 64
          %v1488 = vpop.permute.xlu0 %1487
          %1489 = vrot.lane.b32.xlu0 %v1251, 64
          %v1490 = vpop.permute.xlu0 %1489
          %1491 = vrot.lane.b32.xlu0 %v1253, 64
          %v1492 = vpop.permute.xlu0 %1491
          %1493 = vrot.lane.b32.xlu0 %v1256, 64
          %v1494 = vpop.permute.xlu0 %1493
          %1495 = vrot.lane.b32.xlu0 %v1258, 64
          %v1496 = vpop.permute.xlu0 %1495
          %1497 = vrot.lane.b32.xlu0 %v1261, 64
          %v1498 = vpop.permute.xlu0 %1497
          %1499 = vrot.lane.b32.xlu0 %v1263, 64
          %v1500 = vpop.permute.xlu0 %1499
          %1501 = vrot.lane.b32.xlu0 %v1266, 64
          %v1502 = vpop.permute.xlu0 %1501
          %1503 = vrot.lane.b32.xlu0 %v1268, 64
          %v1504 = vpop.permute.xlu0 %1503
          %1505 = vrot.lane.b32.xlu0 %v1271, 64
          %v1506 = vpop.permute.xlu0 %1505
          %1507 = vrot.lane.b32.xlu0 %v1273, 64
          %v1508 = vpop.permute.xlu0 %1507
          %1541 = vrot.lane.b32.xlu0 %v1342, 96
          %v1542 = vpop.permute.xlu0 %1541
          %1543 = vrot.lane.b32.xlu0 %v1344, 96
          %v1544 = vpop.permute.xlu0 %1543
          %1545 = vrot.lane.b32.xlu0 %v1347, 96
          %v1546 = vpop.permute.xlu0 %1545
          %1547 = vrot.lane.b32.xlu0 %v1349, 96
          %v1548 = vpop.permute.xlu0 %1547
          %1549 = vrot.lane.b32.xlu0 %v1352, 96
          %v1550 = vpop.permute.xlu0 %1549
          %1551 = vrot.lane.b32.xlu0 %v1354, 96
          %v1552 = vpop.permute.xlu0 %1551
          %1553 = vrot.lane.b32.xlu0 %v1357, 96
          %v1554 = vpop.permute.xlu0 %1553
          %1555 = vrot.lane.b32.xlu0 %v1359, 96
          %v1556 = vpop.permute.xlu0 %1555
          %1557 = vrot.lane.b32.xlu0 %v1362, 96
          %v1558 = vpop.permute.xlu0 %1557
          %1559 = vrot.lane.b32.xlu0 %v1364, 96
          %v1560 = vpop.permute.xlu0 %1559
          %1561 = vrot.lane.b32.xlu0 %v1367, 96
          %v1562 = vpop.permute.xlu0 %1561
          %1563 = vrot.lane.b32.xlu0 %v1369, 96
          %v1564 = vpop.permute.xlu0 %1563
          %1565 = vrot.lane.b32.xlu0 %v1372, 96
          %v1566 = vpop.permute.xlu0 %1565
          %1567 = vrot.lane.b32.xlu0 %v1374, 96
          %v1568 = vpop.permute.xlu0 %1567
          %1569 = vrot.lane.b32.xlu0 %v1377, 96
          %v1570 = vpop.permute.xlu0 %1569
          %1571 = vrot.lane.b32.xlu0 %v1379, 96
          %v1572 = vpop.permute.xlu0 %1571
          %v1589 = vsel %vm989, %v1024, %v1414
          %v1590 = vsel %vm989, %v1026, %v1416
          %v1591 = vsel %vm989, %v1029, %v1418
          %v1592 = vsel %vm989, %v1031, %v1420
          %v1593 = vsel %vm989, %v1034, %v1422
          %v1594 = vsel %vm989, %v1036, %v1424
          %v1595 = vsel %vm989, %v1039, %v1426
          %v1596 = vsel %vm989, %v1041, %v1428
          %v1597 = vsel %vm989, %v1044, %v1430
          %v1598 = vsel %vm989, %v1046, %v1432
          %v1599 = vsel %vm989, %v1049, %v1434
          %v1600 = vsel %vm989, %v1051, %v1436
          %v1601 = vsel %vm989, %v1054, %v1438
          %v1602 = vsel %vm989, %v1056, %v1440
          %v1603 = vsel %vm989, %v1059, %v1442
          %v1604 = vsel %vm989, %v1061, %v1444
          %vm1605 = vcmask 523264
          %v1606 = vsel %vm1605, %v1589, %v1478
          %v1607 = vsel %vm1605, %v1590, %v1480
          %v1608 = vsel %vm1605, %v1591, %v1482
          %v1609 = vsel %vm1605, %v1592, %v1484
          %v1610 = vsel %vm1605, %v1593, %v1486
          %v1611 = vsel %vm1605, %v1594, %v1488
          %v1612 = vsel %vm1605, %v1595, %v1490
          %v1613 = vsel %vm1605, %v1596, %v1492
          %v1614 = vsel %vm1605, %v1597, %v1494
          %v1615 = vsel %vm1605, %v1598, %v1496
          %v1616 = vsel %vm1605, %v1599, %v1498
          %v1617 = vsel %vm1605, %v1600, %v1500
          %v1618 = vsel %vm1605, %v1601, %v1502
          %v1619 = vsel %vm1605, %v1602, %v1504
          %v1620 = vsel %vm1605, %v1603, %v1506
          %v1621 = vsel %vm1605, %v1604, %v1508
          %vm1622 = vcmask 785408
          %v1623 = vsel %vm1622, %v1606, %v1542
          %v1624 = vsel %vm1622, %v1607, %v1544
          %v1625 = vsel %vm1622, %v1608, %v1546
          %v1626 = vsel %vm1622, %v1609, %v1548
          %v1627 = vsel %vm1622, %v1610, %v1550
          %v1628 = vsel %vm1622, %v1611, %v1552
          %v1629 = vsel %vm1622, %v1612, %v1554
          %v1630 = vsel %vm1622, %v1613, %v1556
          %v1631 = vsel %vm1622, %v1614, %v1558
          %v1632 = vsel %vm1622, %v1615, %v1560
          %v1633 = vsel %vm1622, %v1616, %v1562
          %v1634 = vsel %vm1622, %v1617, %v1564
          %v1635 = vsel %vm1622, %v1618, %v1566
          %v1636 = vsel %vm1622, %v1619, %v1568
          %v1637 = vsel %vm1622, %v1620, %v1570
          %v1638 = vsel %vm1622, %v1621, %v1572
          %v1639 = vadd.f32 %v1381, %v1623
          %v1640 = vadd.f32 %v1382, %v1624
          %v1641 = vadd.f32 %v1383, %v1625
          %v1642 = vadd.f32 %v1384, %v1626
          %v1643 = vadd.f32 %v1385, %v1627
          %v1644 = vadd.f32 %v1386, %v1628
          %v1645 = vadd.f32 %v1387, %v1629
          %v1646 = vadd.f32 %v1388, %v1630
          %v1647 = vadd.f32 %v1389, %v1631
          %v1648 = vadd.f32 %v1390, %v1632
          %v1649 = vadd.f32 %v1391, %v1633
          %v1650 = vadd.f32 %v1392, %v1634
          %v1651 = vadd.f32 %v1393, %v1635
          %v1652 = vadd.f32 %v1394, %v1636
          %v1653 = vadd.f32 %v1395, %v1637
          %v1654 = vadd.f32 %v1396, %v1638
          %1655 = vst [vmem:[%s447] sm:$0xff] %v1639
          %1656 = vst [vmem:[%s447 + $0x8] sm:$0xff] %v1640
          %1657 = vst [vmem:[%s447 + $0x10] sm:$0xff] %v1641
          %1658 = vst [vmem:[%s447 + $0x18] sm:$0xff] %v1642
          %1659 = vst [vmem:[%s447 + $0x20] sm:$0xff] %v1643
          %1660 = vst [vmem:[%s447 + $0x28] sm:$0xff] %v1644
          %1661 = vst [vmem:[%s447 + $0x30] sm:$0xff] %v1645
          %1662 = vst [vmem:[%s447 + $0x38] sm:$0xff] %v1646
          %1663 = vst [vmem:[%s447 + $0x40] sm:$0xff] %v1647
          %1664 = vst [vmem:[%s447 + $0x48] sm:$0xff] %v1648
          %1665 = vst [vmem:[%s447 + $0x50] sm:$0xff] %v1649
          %1666 = vst [vmem:[%s447 + $0x58] sm:$0xff] %v1650
          %1667 = vst [vmem:[%s447 + $0x60] sm:$0xff] %v1651
          %1668 = vst [vmem:[%s447 + $0x68] sm:$0xff] %v1652
          %1669 = vst [vmem:[%s447 + $0x70] sm:$0xff] %v1653
          %1670 = vst [vmem:[%s447 + $0x78] sm:$0xff] %v1654
        $region97: #{net_forward.4} parent=80 // pred_fallthru
          _
        %p1671 = scmp.eq.s32.totalorder %s23, 7
        %p1672 = pnand %p1671, %p897
        %p1673 = pneg %p1672
        // Predicated region
        $region98: #{net_forward.4} parent=80 // pred_check
          _
        $region99: #{net_forward.4} parent=80 // pred_check_branch
          %1675 = sbr.rel (%p1672) target = $region101
        $region100: #{net_forward.4} parent=80 // pred_region
          %v1676 = vld [vmem:[%s447] sm:$0xff]
          %v1677 = vld [vmem:[%s447 + $0x8] sm:$0xff]
          %v1678 = vld [vmem:[%s447 + $0x10] sm:$0xff]
          %v1679 = vld [vmem:[%s447 + $0x18] sm:$0xff]
          %v1680 = vld [vmem:[%s447 + $0x20] sm:$0xff]
          %v1681 = vld [vmem:[%s447 + $0x28] sm:$0xff]
          %v1682 = vld [vmem:[%s447 + $0x30] sm:$0xff]
          %v1683 = vld [vmem:[%s447 + $0x38] sm:$0xff]
          %v1684 = vld [vmem:[%s447 + $0x40] sm:$0xff]
          %v1685 = vld [vmem:[%s447 + $0x48] sm:$0xff]
          %v1686 = vld [vmem:[%s447 + $0x50] sm:$0xff]
          %v1687 = vld [vmem:[%s447 + $0x58] sm:$0xff]
          %v1688 = vld [vmem:[%s447 + $0x60] sm:$0xff]
          %v1689 = vld [vmem:[%s447 + $0x68] sm:$0xff]
          %v1690 = vld [vmem:[%s447 + $0x70] sm:$0xff]
          %v1691 = vld [vmem:[%s447 + $0x78] sm:$0xff]
          %v1692 = vmax.f32 %v1676, 0.0
          %v1693 = vmax.f32 %v1677, 0.0
          %v1694 = vmax.f32 %v1678, 0.0
          %v1695 = vmax.f32 %v1679, 0.0
          %v1696 = vmax.f32 %v1680, 0.0
          %v1697 = vmax.f32 %v1681, 0.0
          %v1698 = vmax.f32 %v1682, 0.0
          %v1699 = vmax.f32 %v1683, 0.0
          %v1700 = vmax.f32 %v1684, 0.0
          %v1701 = vmax.f32 %v1685, 0.0
          %v1702 = vmax.f32 %v1686, 0.0
          %v1703 = vmax.f32 %v1687, 0.0
          %v1704 = vmax.f32 %v1688, 0.0
          %v1705 = vmax.f32 %v1689, 0.0
          %v1706 = vmax.f32 %v1690, 0.0
          %v1707 = vmax.f32 %v1691, 0.0
          %1708 = vst [vmem:[%s447] sm:$0xff] %v1692
          %1709 = vst [vmem:[%s447 + $0x8] sm:$0xff] %v1693
          %1710 = vst [vmem:[%s447 + $0x10] sm:$0xff] %v1694
          %1711 = vst [vmem:[%s447 + $0x18] sm:$0xff] %v1695
          %1712 = vst [vmem:[%s447 + $0x20] sm:$0xff] %v1696
          %1713 = vst [vmem:[%s447 + $0x28] sm:$0xff] %v1697
          %1714 = vst [vmem:[%s447 + $0x30] sm:$0xff] %v1698
          %1715 = vst [vmem:[%s447 + $0x38] sm:$0xff] %v1699
          %1716 = vst [vmem:[%s447 + $0x40] sm:$0xff] %v1700
          %1717 = vst [vmem:[%s447 + $0x48] sm:$0xff] %v1701
          %1718 = vst [vmem:[%s447 + $0x50] sm:$0xff] %v1702
          %1719 = vst [vmem:[%s447 + $0x58] sm:$0xff] %v1703
          %1720 = vst [vmem:[%s447 + $0x60] sm:$0xff] %v1704
          %1721 = vst [vmem:[%s447 + $0x68] sm:$0xff] %v1705
          %1722 = vst [vmem:[%s447 + $0x70] sm:$0xff] %v1706
          %1723 = vst [vmem:[%s447 + $0x78] sm:$0xff] %v1707
        $region101: #{net_forward.4} parent=80 // pred_fallthru
          _
        %s1724 = smul.u32 16, %s22
        %p1725 = scmp.lt.s32.totalorder %s1724, 31
        %s1726 = scalar_select %p1725, %s1724, 31
        %s1727 = smul.addr %s1726, 8
        %s1728 = scalar_lea.vmem %s6, %s1727
        // Predicated region
        $region102: #{net_forward.4} parent=80 // pred_check
          %p1729 = pneg %p204
        $region103: #{net_forward.4} parent=80 // pred_check_branch
          %1731 = sbr.rel (%p1729) target = $region105
        $region104: #{net_forward.4} parent=80 // pred_region
          %s1732 = smul.u32 16, %s22
        $region105: #{net_forward.4} parent=80 // pred_fallthru
          _
      $region81: #{net_forward.4} parent=5 // pred_fallthru
        _
      %p1733 = scmp.le.s32.totalorder 2, %s12
      // Predicated region
      $region106: #{net_forward.4} parent=5 // pred_check
        %p1734 = pneg %p1733
      $region107: #{net_forward.4} parent=5 // pred_check_branch
        %1736 = sbr.rel (%p1734) target = $region109
      $region108: #{net_forward.4} parent=5 // pred_region
        %s1737 = ssub.s32 %s12, 2
        // Predicated region
        $region110: #{net_forward.4} parent=108 // pred_check
          %p1738 = pneg %p210
        $region111: #{net_forward.4} parent=108 // pred_check_branch
          %1740 = sbr.rel (%p1738) target = $region113
        $region112: #{net_forward.4} parent=108 // pred_region
          %s1741 = smul.u32 16, %s25
          %p1742 = scmp.lt.s32.totalorder %s1741, 31
          %s1743 = scalar_select %p1742, %s1741, 31
          %s1744 = smul.addr %s1743, 8
          %s1745 = scalar_lea.vmem %s6, %s1744
        $region113: #{net_forward.4} parent=108 // pred_fallthru
          _
      $region109: #{net_forward.4} parent=5 // pred_fallthru
        _
    $region6: #{net_forward.4} parent=1 // loop_footer
      %s16 = sadd.s32 1, %s12
    $region7: #{net_forward.4} parent=1 // loop_footer_branch
      %11 = sbr.rel target = $region3
    $region8: #{net_forward.4} parent=1 // loop_exit
      _

// kernel: net_forward.5
$region0: #{net_forward.5}
  #allocation0 [shape = 'u32[]', space=smem, size = 0x4, offset = 0x4, fixed_abs, tag = 'smem constant byte address 0x4 - core index']
  #allocation1 [shape = 'u32[72,128]{1,0:T(1,128)}', space=vmem, size = 0x9000, scoped, tag = 'internal scratch']
  #allocation2 [shape = 'f32[1,1]{1,0:T(1,128)}', space=vmem, size = 0x200, scoped, tag = 'scratch operand']
  %s0 = inlined_call_operand.vmem [shape: f32[256,128], index: 0, kind: input, shape index: {}]
  %s1 = inlined_call_operand.vmem [shape: f32[8,128], index: 1, kind: input, shape index: {}]
  %s2 = inlined_call_operand.vmem [shape: s32[256,1], index: 2, kind: input, shape index: {}]
  %s3 = inlined_call_operand.vmem [shape: s32[256,1], index: 3, kind: input, shape index: {}]
  %s4 = inlined_call_operand.vmem [shape: s32[256,1], index: 4, kind: input, shape index: {}]
  %s5 = inlined_call_operand.vmem [shape: s32[256,1], index: 5, kind: input, shape index: {}]
  %s6 = inlined_call_operand.vmem [shape: s32[256,1], index: 6, kind: input, shape index: {}]
  %s7 = inlined_call_operand.vmem [shape: s32[256,1], index: 7, kind: input, shape index: {}]
  %s8 = inlined_call_operand.hbm [shape: f32[1,1], index: 8, kind: output, shape index: {}]
  %s9 = sld [smem:[#allocation0]]
  $region73: #{net_forward.5} parent=0
    _
  %s11 = ssub.s32 1, %s9
  %s12 = scalar_select 0, %s11, %s9
  $region1: #{net_forward.5} parent=0
    #allocation3 [shape = 'u8[512]{0}', space=vmem, size = 0x400, scoped, tag = 'output window, operand 0, single buffered']
    #allocation4 [shape = 's32[2]{0}', space=sflag, size = 0x8, scoped, tag = 'scoped memory for net_forward.5']
    %13 = vsyncpa [#allocation4], 0
    loop: start=0, step=1, limit=4
    $region2: #{net_forward.5} parent=1 // loop_pre_header
      _
    $region3: #{net_forward.5} parent=1 // loop_header
      %s15 = sphi 0, %s19
      %p16 = scmp.ge.s32.totalorder %s15, 4
      %s23 = sphi 0, %s23
      %s25 = sphi 0, %s23
      %s26 = sphi 0, %s25
      %s40 = sphi 0, %s26
      %s44 = sphi 0, %s44
      %s46 = sphi 0, %s44
      %s47 = sphi 0, %s46
      %s61 = sphi 0, %s47
      %s67 = sphi 0, %s69
      %s70 = sphi 0, %s67
      %s71 = sphi 0, %s70
      %s87 = sphi 0, %s71
      %s93 = sphi 0, %s95
      %s96 = sphi 0, %s93
      %s97 = sphi 0, %s96
      %s113 = sphi 0, %s97
      %s119 = sphi 0, %s121
      %s122 = sphi 0, %s119
      %s123 = sphi 0, %s122
      %s139 = sphi 0, %s123
      %s145 = sphi 0, %s147
      %s148 = sphi 0, %s145
      %s149 = sphi 0, %s148
      %s165 = sphi 0, %s149
      %s171 = sphi 0, %s173
      %s174 = sphi 0, %s171
      %s175 = sphi 0, %s174
      %s191 = sphi 0, %s175
      %s197 = sphi 0, %s199
      %s200 = sphi 0, %s197
      %s201 = sphi 0, %s200
      %s217 = sphi 0, %s201
      %s221 = sphi 0, %s221
      %s223 = sphi 0, %s221
      %s224 = sphi 0, %s223
      %s238 = sphi 0, %s224
    $region4: #{net_forward.5} parent=1 // loop_header_branch
      %18 = sbr.rel (%p16) target = $region8
    $region5: #{net_forward.5} parent=1 // loop_body
      %s20 = ssub.s32 %s15, 1
      %s21 = ssub.s32 %s15, 2
      %s22 = sadd.s32 %s15, 1
      %s24 = sadd.s32 %s23, 1
      %p27 = scmp.eq.s32.totalorder %s15, 1
      %p28 = scmp.ne.s32.totalorder %s23, %s25
      %p29 = scmp.eq.s32.totalorder %s15, 0
      %p30 = por %p28, %p29
      %p31 = scmp.ne.s32.totalorder %s23, %s25
      %p32 = scmp.eq.s32.totalorder %s20, 1
      %p33 = por %p31, %p32
      %p34 = scmp.ne.s32.totalorder %s25, %s26
      %p35 = scmp.eq.s32.totalorder %s20, 0
      %p36 = por %p34, %p35
      %p37 = scmp.ne.s32.totalorder %s25, %s26
      %p38 = scmp.eq.s32.totalorder %s21, 1
      %p39 = por %p37, %p38
      %p41 = scmp.ne.s32.totalorder %s26, %s40
      %p42 = scmp.eq.s32.totalorder %s21, 0
      %p43 = por %p41, %p42
      %s45 = sadd.s32 %s44, 1
      %p48 = scmp.eq.s32.totalorder %s15, 1
      %p49 = scmp.ne.s32.totalorder %s44, %s46
      %p50 = scmp.eq.s32.totalorder %s15, 0
      %p51 = por %p49, %p50
      %p52 = scmp.ne.s32.totalorder %s44, %s46
      %p53 = scmp.eq.s32.totalorder %s20, 1
      %p54 = por %p52, %p53
      %p55 = scmp.ne.s32.totalorder %s46, %s47
      %p56 = scmp.eq.s32.totalorder %s20, 0
      %p57 = por %p55, %p56
      %p58 = scmp.ne.s32.totalorder %s46, %s47
      %p59 = scmp.eq.s32.totalorder %s21, 1
      %p60 = por %p58, %p59
      %p62 = scmp.ne.s32.totalorder %s47, %s61
      %p63 = scmp.eq.s32.totalorder %s21, 0
      %p64 = por %p62, %p63
      %s65 = ssub.s32 %s15, %s22
      %p66 = scmp.eq.s32.totalorder %s65, 0
      %s68 = sadd.s32 %s67, 1
      %s69 = scalar_select %p66, %s67, %s68
      %p72 = pneg %p66
      %p73 = scmp.eq.s32.totalorder %s15, 1
      %p74 = por %p72, %p73
      %p75 = scmp.ne.s32.totalorder %s67, %s70
      %p76 = scmp.eq.s32.totalorder %s15, 0
      %p77 = por %p75, %p76
      %p78 = scmp.ne.s32.totalorder %s67, %s70
      %p79 = scmp.eq.s32.totalorder %s20, 1
      %p80 = por %p78, %p79
      %p81 = scmp.ne.s32.totalorder %s70, %s71
      %p82 = scmp.eq.s32.totalorder %s20, 0
      %p83 = por %p81, %p82
      %p84 = scmp.ne.s32.totalorder %s70, %s71
      %p85 = scmp.eq.s32.totalorder %s21, 1
      %p86 = por %p84, %p85
      %p88 = scmp.ne.s32.totalorder %s71, %s87
      %p89 = scmp.eq.s32.totalorder %s21, 0
      %p90 = por %p88, %p89
      %s91 = ssub.s32 %s15, %s22
      %p92 = scmp.eq.s32.totalorder %s91, 0
      %s94 = sadd.s32 %s93, 1
      %s95 = scalar_select %p92, %s93, %s94
      %p98 = pneg %p92
      %p99 = scmp.eq.s32.totalorder %s15, 1
      %p100 = por %p98, %p99
      %p101 = scmp.ne.s32.totalorder %s93, %s96
      %p102 = scmp.eq.s32.totalorder %s15, 0
      %p103 = por %p101, %p102
      %p104 = scmp.ne.s32.totalorder %s93, %s96
      %p105 = scmp.eq.s32.totalorder %s20, 1
      %p106 = por %p104, %p105
      %p107 = scmp.ne.s32.totalorder %s96, %s97
      %p108 = scmp.eq.s32.totalorder %s20, 0
      %p109 = por %p107, %p108
      %p110 = scmp.ne.s32.totalorder %s96, %s97
      %p111 = scmp.eq.s32.totalorder %s21, 1
      %p112 = por %p110, %p111
      %p114 = scmp.ne.s32.totalorder %s97, %s113
      %p115 = scmp.eq.s32.totalorder %s21, 0
      %p116 = por %p114, %p115
      %s117 = ssub.s32 %s15, %s22
      %p118 = scmp.eq.s32.totalorder %s117, 0
      %s120 = sadd.s32 %s119, 1
      %s121 = scalar_select %p118, %s119, %s120
      %p124 = pneg %p118
      %p125 = scmp.eq.s32.totalorder %s15, 1
      %p126 = por %p124, %p125
      %p127 = scmp.ne.s32.totalorder %s119, %s122
      %p128 = scmp.eq.s32.totalorder %s15, 0
      %p129 = por %p127, %p128
      %p130 = scmp.ne.s32.totalorder %s119, %s122
      %p131 = scmp.eq.s32.totalorder %s20, 1
      %p132 = por %p130, %p131
      %p133 = scmp.ne.s32.totalorder %s122, %s123
      %p134 = scmp.eq.s32.totalorder %s20, 0
      %p135 = por %p133, %p134
      %p136 = scmp.ne.s32.totalorder %s122, %s123
      %p137 = scmp.eq.s32.totalorder %s21, 1
      %p138 = por %p136, %p137
      %p140 = scmp.ne.s32.totalorder %s123, %s139
      %p141 = scmp.eq.s32.totalorder %s21, 0
      %p142 = por %p140, %p141
      %s143 = ssub.s32 %s15, %s22
      %p144 = scmp.eq.s32.totalorder %s143, 0
      %s146 = sadd.s32 %s145, 1
      %s147 = scalar_select %p144, %s145, %s146
      %p150 = pneg %p144
      %p151 = scmp.eq.s32.totalorder %s15, 1
      %p152 = por %p150, %p151
      %p153 = scmp.ne.s32.totalorder %s145, %s148
      %p154 = scmp.eq.s32.totalorder %s15, 0
      %p155 = por %p153, %p154
      %p156 = scmp.ne.s32.totalorder %s145, %s148
      %p157 = scmp.eq.s32.totalorder %s20, 1
      %p158 = por %p156, %p157
      %p159 = scmp.ne.s32.totalorder %s148, %s149
      %p160 = scmp.eq.s32.totalorder %s20, 0
      %p161 = por %p159, %p160
      %p162 = scmp.ne.s32.totalorder %s148, %s149
      %p163 = scmp.eq.s32.totalorder %s21, 1
      %p164 = por %p162, %p163
      %p166 = scmp.ne.s32.totalorder %s149, %s165
      %p167 = scmp.eq.s32.totalorder %s21, 0
      %p168 = por %p166, %p167
      %s169 = ssub.s32 %s15, %s22
      %p170 = scmp.eq.s32.totalorder %s169, 0
      %s172 = sadd.s32 %s171, 1
      %s173 = scalar_select %p170, %s171, %s172
      %p176 = pneg %p170
      %p177 = scmp.eq.s32.totalorder %s15, 1
      %p178 = por %p176, %p177
      %p179 = scmp.ne.s32.totalorder %s171, %s174
      %p180 = scmp.eq.s32.totalorder %s15, 0
      %p181 = por %p179, %p180
      %p182 = scmp.ne.s32.totalorder %s171, %s174
      %p183 = scmp.eq.s32.totalorder %s20, 1
      %p184 = por %p182, %p183
      %p185 = scmp.ne.s32.totalorder %s174, %s175
      %p186 = scmp.eq.s32.totalorder %s20, 0
      %p187 = por %p185, %p186
      %p188 = scmp.ne.s32.totalorder %s174, %s175
      %p189 = scmp.eq.s32.totalorder %s21, 1
      %p190 = por %p188, %p189
      %p192 = scmp.ne.s32.totalorder %s175, %s191
      %p193 = scmp.eq.s32.totalorder %s21, 0
      %p194 = por %p192, %p193
      %s195 = ssub.s32 %s15, %s22
      %p196 = scmp.eq.s32.totalorder %s195, 0
      %s198 = sadd.s32 %s197, 1
      %s199 = scalar_select %p196, %s197, %s198
      %p202 = pneg %p196
      %p203 = scmp.eq.s32.totalorder %s15, 1
      %p204 = por %p202, %p203
      %p205 = scmp.ne.s32.totalorder %s197, %s200
      %p206 = scmp.eq.s32.totalorder %s15, 0
      %p207 = por %p205, %p206
      %p208 = scmp.ne.s32.totalorder %s197, %s200
      %p209 = scmp.eq.s32.totalorder %s20, 1
      %p210 = por %p208, %p209
      %p211 = scmp.ne.s32.totalorder %s200, %s201
      %p212 = scmp.eq.s32.totalorder %s20, 0
      %p213 = por %p211, %p212
      %p214 = scmp.ne.s32.totalorder %s200, %s201
      %p215 = scmp.eq.s32.totalorder %s21, 1
      %p216 = por %p214, %p215
      %p218 = scmp.ne.s32.totalorder %s201, %s217
      %p219 = scmp.eq.s32.totalorder %s21, 0
      %p220 = por %p218, %p219
      %s222 = sadd.s32 %s221, 1
      %p225 = scmp.eq.s32.totalorder %s15, 1
      %p226 = scmp.ne.s32.totalorder %s221, %s223
      %p227 = scmp.eq.s32.totalorder %s15, 0
      %p228 = por %p226, %p227
      %p229 = scmp.ne.s32.totalorder %s221, %s223
      %p230 = scmp.eq.s32.totalorder %s20, 1
      %p231 = por %p229, %p230
      %p232 = scmp.ne.s32.totalorder %s223, %s224
      %p233 = scmp.eq.s32.totalorder %s20, 0
      %p234 = por %p232, %p233
      %p235 = scmp.ne.s32.totalorder %s223, %s224
      %p236 = scmp.eq.s32.totalorder %s21, 1
      %p237 = por %p235, %p236
      %p239 = scmp.ne.s32.totalorder %s224, %s238
      %p240 = scmp.eq.s32.totalorder %s21, 0
      %p241 = por %p239, %p240
      %p242 = scmp.le.s32.totalorder 1, %s15
      %p243 = scmp.lt.s32.totalorder %s15, 3
      %p244 = pnand %p242, %p243
      %p245 = pneg %p244
      // Predicated region
      $region9: #{net_forward.5} parent=5 // pred_check
        _
      $region10: #{net_forward.5} parent=5 // pred_check_branch
        %247 = sbr.rel (%p244) target = $region12
      $region11: #{net_forward.5} parent=5 // pred_region
        %s248 = ssub.s32 %s15, 1
        // Predicated region
        $region13: #{net_forward.5} parent=11 // pred_check
          %p249 = pneg %p36
        $region14: #{net_forward.5} parent=11 // pred_check_branch
          %251 = sbr.rel (%p249) target = $region16
        $region15: #{net_forward.5} parent=11 // pred_region
          _
        $region16: #{net_forward.5} parent=11 // pred_fallthru
          _
        // Predicated region
        $region17: #{net_forward.5} parent=11 // pred_check
          %p252 = pneg %p57
        $region18: #{net_forward.5} parent=11 // pred_check_branch
          %254 = sbr.rel (%p252) target = $region20
        $region19: #{net_forward.5} parent=11 // pred_region
          _
        $region20: #{net_forward.5} parent=11 // pred_fallthru
          _
      $region12: #{net_forward.5} parent=5 // pred_fallthru
        _
      %p255 = scmp.lt.s32.totalorder %s15, 2
      // Predicated region
      $region21: #{net_forward.5} parent=5 // pred_check
        %p256 = pneg %p255
      $region22: #{net_forward.5} parent=5 // pred_check_branch
        %258 = sbr.rel (%p256) target = $region24
      $region23: #{net_forward.5} parent=5 // pred_region
        // Predicated region
        $region25: #{net_forward.5} parent=23 // pred_check
          %p259 = pneg %p77
        $region26: #{net_forward.5} parent=23 // pred_check_branch
          %261 = sbr.rel (%p259) target = $region28
        $region27: #{net_forward.5} parent=23 // pred_region
          %s262 = smul.u32 16, %s15
          %p263 = scmp.lt.s32.totalorder %s262, 31
          %s264 = scalar_select %p263, %s262, 31
          %s265 = smul.addr %s264, 8
          %s266 = scalar_lea.vmem %s2, %s265
          %s267 = smul.u32 16, %s15
        $region28: #{net_forward.5} parent=23 // pred_fallthru
          _
        // Predicated region
        $region29: #{net_forward.5} parent=23 // pred_check
          %p268 = pneg %p103
        $region30: #{net_forward.5} parent=23 // pred_check_branch
          %270 = sbr.rel (%p268) target = $region32
        $region31: #{net_forward.5} parent=23 // pred_region
          %s271 = smul.u32 16, %s15
          %p272 = scmp.lt.s32.totalorder %s271, 31
          %s273 = scalar_select %p272, %s271, 31
          %s274 = smul.addr %s273, 8
          %s275 = scalar_lea.vmem %s3, %s274
          %s276 = smul.u32 16, %s15
        $region32: #{net_forward.5} parent=23 // pred_fallthru
          _
        // Predicated region
        $region33: #{net_forward.5} parent=23 // pred_check
          %p277 = pneg %p129
        $region34: #{net_forward.5} parent=23 // pred_check_branch
          %279 = sbr.rel (%p277) target = $region36
        $region35: #{net_forward.5} parent=23 // pred_region
          %s280 = smul.u32 16, %s15
          %p281 = scmp.lt.s32.totalorder %s280, 31
          %s282 = scalar_select %p281, %s280, 31
          %s283 = smul.addr %s282, 8
          %s284 = scalar_lea.vmem %s4, %s283
          %s285 = smul.u32 16, %s15
        $region36: #{net_forward.5} parent=23 // pred_fallthru
          _
        // Predicated region
        $region37: #{net_forward.5} parent=23 // pred_check
          %p286 = pneg %p155
        $region38: #{net_forward.5} parent=23 // pred_check_branch
          %288 = sbr.rel (%p286) target = $region40
        $region39: #{net_forward.5} parent=23 // pred_region
          %s289 = smul.u32 16, %s15
          %p290 = scmp.lt.s32.totalorder %s289, 31
          %s291 = scalar_select %p290, %s289, 31
          %s292 = smul.addr %s291, 8
          %s293 = scalar_lea.vmem %s5, %s292
          %s294 = smul.u32 16, %s15
        $region40: #{net_forward.5} parent=23 // pred_fallthru
          _
        // Predicated region
        $region41: #{net_forward.5} parent=23 // pred_check
          %p295 = pneg %p181
        $region42: #{net_forward.5} parent=23 // pred_check_branch
          %297 = sbr.rel (%p295) target = $region44
        $region43: #{net_forward.5} parent=23 // pred_region
          %s298 = smul.u32 16, %s15
          %p299 = scmp.lt.s32.totalorder %s298, 31
          %s300 = scalar_select %p299, %s298, 31
          %s301 = smul.addr %s300, 8
          %s302 = scalar_lea.vmem %s6, %s301
          %s303 = smul.u32 16, %s15
        $region44: #{net_forward.5} parent=23 // pred_fallthru
          _
        // Predicated region
        $region45: #{net_forward.5} parent=23 // pred_check
          %p304 = pneg %p207
        $region46: #{net_forward.5} parent=23 // pred_check_branch
          %306 = sbr.rel (%p304) target = $region48
        $region47: #{net_forward.5} parent=23 // pred_region
          %s307 = smul.u32 16, %s15
          %p308 = scmp.lt.s32.totalorder %s307, 31
          %s309 = scalar_select %p308, %s307, 31
          %s310 = smul.addr %s309, 8
          %s311 = scalar_lea.vmem %s7, %s310
          %s312 = smul.u32 16, %s15
        $region48: #{net_forward.5} parent=23 // pred_fallthru
          _
      $region24: #{net_forward.5} parent=5 // pred_fallthru
        _
      %p313 = scmp.le.s32.totalorder 1, %s15
      %p314 = scmp.lt.s32.totalorder %s15, 3
      %p315 = pnand %p313, %p314
      %p316 = pneg %p315
      // Predicated region
      $region49: #{net_forward.5} parent=5 // pred_check
        _
      $region50: #{net_forward.5} parent=5 // pred_check_branch
        %318 = sbr.rel (%p315) target = $region52
      $region51: #{net_forward.5} parent=5 // pred_region
        %s319 = ssub.s32 %s15, 1
        %p320 = pneg %p36
        %p321 = pneg %p33
        %p322 = pneg %p57
        %p323 = pneg %p54
        %s324 = smul.u32 16, %s20
        %p325 = scmp.lt.s32.totalorder %s324, 31
        %s326 = scalar_select %p325, %s324, 31
        %s327 = smul.addr %s326, 8
        %s328 = scalar_lea.vmem %s2, %s327
        %p329 = pneg %p83
        %p330 = pneg %p80
        %s331 = smul.u32 16, %s20
        %p332 = scmp.lt.s32.totalorder %s331, 31
        %s333 = scalar_select %p332, %s331, 31
        %s334 = smul.addr %s333, 8
        %s335 = scalar_lea.vmem %s3, %s334
        %p336 = pneg %p109
        %p337 = pneg %p106
        %s338 = smul.u32 16, %s20
        %p339 = scmp.lt.s32.totalorder %s338, 31
        %s340 = scalar_select %p339, %s338, 31
        %s341 = smul.addr %s340, 8
        %s342 = scalar_lea.vmem %s4, %s341
        %p343 = pneg %p135
        %p344 = pneg %p132
        %s345 = smul.u32 16, %s20
        %p346 = scmp.lt.s32.totalorder %s345, 31
        %s347 = scalar_select %p346, %s345, 31
        %s348 = smul.addr %s347, 8
        %s349 = scalar_lea.vmem %s5, %s348
        %p350 = pneg %p161
        %p351 = pneg %p158
        %s352 = smul.u32 16, %s20
        %p353 = scmp.lt.s32.totalorder %s352, 31
        %s354 = scalar_select %p353, %s352, 31
        %s355 = smul.addr %s354, 8
        %s356 = scalar_lea.vmem %s6, %s355
        %p357 = pneg %p187
        %p358 = pneg %p184
        %s359 = smul.u32 16, %s20
        %p360 = scmp.lt.s32.totalorder %s359, 31
        %s361 = scalar_select %p360, %s359, 31
        %s362 = smul.addr %s361, 8
        %s363 = scalar_lea.vmem %s7, %s362
        %p364 = pneg %p213
        %p365 = pneg %p210
        %p366 = pneg %p234
        %p367 = pneg %p231
        %s368 = smul.u32 16, %s20
        %p369 = scmp.lt.s32.totalorder %s368, 31
        %s370 = scalar_select %p369, %s368, 31
        %s371 = smul.addr %s370, 8
        %s372 = scalar_lea.vmem %s2, %s371
        %s373 = smul.u32 16, %s20
        %s374 = smul.u32 16, %s20
        %p375 = scmp.lt.s32.totalorder %s374, 31
        %s376 = scalar_select %p375, %s374, 31
        %s377 = smul.addr %s376, 8
        %s378 = scalar_lea.vmem %s3, %s377
        %s379 = smul.u32 16, %s20
        %s380 = smul.u32 16, %s20
        %p381 = scmp.lt.s32.totalorder %s380, 31
        %s382 = scalar_select %p381, %s380, 31
        %s383 = smul.addr %s382, 8
        %s384 = scalar_lea.vmem %s4, %s383
        %s385 = smul.u32 16, %s20
        %s386 = smul.u32 16, %s20
        %p387 = scmp.lt.s32.totalorder %s386, 31
        %s388 = scalar_select %p387, %s386, 31
        %s389 = smul.addr %s388, 8
        %s390 = scalar_lea.vmem %s5, %s389
        %s391 = smul.u32 16, %s20
        %s392 = smul.u32 16, %s20
        %p393 = scmp.lt.s32.totalorder %s392, 31
        %s394 = scalar_select %p393, %s392, 31
        %s395 = smul.addr %s394, 8
        %s396 = scalar_lea.vmem %s6, %s395
        %s397 = smul.u32 16, %s20
        %s398 = smul.u32 16, %s20
        %p399 = scmp.lt.s32.totalorder %s398, 31
        %s400 = scalar_select %p399, %s398, 31
        %s401 = smul.addr %s400, 8
        %s402 = scalar_lea.vmem %s7, %s401
        %s403 = smul.u32 16, %s20
        %p404 = scmp.eq.s32.totalorder %s20, 0
        // Predicated region
        $region53: #{net_forward.5} parent=51 // pred_check
          %p405 = pneg %p404
        $region54: #{net_forward.5} parent=51 // pred_check_branch
          %407 = sbr.rel (%p405) target = $region56
        $region55: #{net_forward.5} parent=51 // pred_region
          %vm408 = vcmask 0
          %409 = vst.msk [vmem:[#allocation2] sm:$0x1] %vm408, 0.0
        $region56: #{net_forward.5} parent=51 // pred_fallthru
          _
        %v410 = vld [vmem:[%s372] sm:$0xff]
        %v411 = vld [vmem:[%s372 + $0x8] sm:$0xff]
        %v412 = vld [vmem:[%s372 + $0x10] sm:$0xff]
        %v413 = vld [vmem:[%s372 + $0x18] sm:$0xff]
        %v414 = vld [vmem:[%s372 + $0x20] sm:$0xff]
        %v415 = vld [vmem:[%s372 + $0x28] sm:$0xff]
        %v416 = vld [vmem:[%s372 + $0x30] sm:$0xff]
        %v417 = vld [vmem:[%s372 + $0x38] sm:$0xff]
        %v418 = vld [vmem:[%s372 + $0x40] sm:$0xff]
        %v419 = vld [vmem:[%s372 + $0x48] sm:$0xff]
        %v420 = vld [vmem:[%s372 + $0x50] sm:$0xff]
        %v421 = vld [vmem:[%s372 + $0x58] sm:$0xff]
        %v422 = vld [vmem:[%s372 + $0x60] sm:$0xff]
        %v423 = vld [vmem:[%s372 + $0x68] sm:$0xff]
        %v424 = vld [vmem:[%s372 + $0x70] sm:$0xff]
        %v425 = vld [vmem:[%s372 + $0x78] sm:$0xff]
        %v426 = vlaneseq
        %v427 = vand.u32 %v426, 127
        %v428 = vadd.s32 %v427, 128
        %429 = vset.pattern.permute.xlu0 0
        %430 = vperm.xlu0 %429, %v410
        %v431 = vpop.permute.xlu0 %430
        %432 = vset.pattern.permute.xlu0 0
        %433 = vperm.xlu0 %432, %v411
        %v434 = vpop.permute.xlu0 %433
        %435 = vset.pattern.permute.xlu0 0
        %436 = vperm.xlu0 %435, %v412
        %v437 = vpop.permute.xlu0 %436
        %438 = vset.pattern.permute.xlu0 0
        %439 = vperm.xlu0 %438, %v413
        %v440 = vpop.permute.xlu0 %439
        %441 = vset.pattern.permute.xlu0 0
        %442 = vperm.xlu0 %441, %v414
        %v443 = vpop.permute.xlu0 %442
        %444 = vset.pattern.permute.xlu0 0
        %445 = vperm.xlu0 %444, %v415
        %v446 = vpop.permute.xlu0 %445
        %447 = vset.pattern.permute.xlu0 0
        %448 = vperm.xlu0 %447, %v416
        %v449 = vpop.permute.xlu0 %448
        %450 = vset.pattern.permute.xlu0 0
        %451 = vperm.xlu0 %450, %v417
        %v452 = vpop.permute.xlu0 %451
        %453 = vset.pattern.permute.xlu0 0
        %454 = vperm.xlu0 %453, %v418
        %v455 = vpop.permute.xlu0 %454
        %456 = vset.pattern.permute.xlu0 0
        %457 = vperm.xlu0 %456, %v419
        %v458 = vpop.permute.xlu0 %457
        %459 = vset.pattern.permute.xlu0 0
        %460 = vperm.xlu0 %459, %v420
        %v461 = vpop.permute.xlu0 %460
        %462 = vset.pattern.permute.xlu0 0
        %463 = vperm.xlu0 %462, %v421
        %v464 = vpop.permute.xlu0 %463
        %465 = vset.pattern.permute.xlu0 0
        %466 = vperm.xlu0 %465, %v422
        %v467 = vpop.permute.xlu0 %466
        %468 = vset.pattern.permute.xlu0 0
        %469 = vperm.xlu0 %468, %v423
        %v470 = vpop.permute.xlu0 %469
        %471 = vset.pattern.permute.xlu0 0
        %472 = vperm.xlu0 %471, %v424
        %v473 = vpop.permute.xlu0 %472
        %474 = vset.pattern.permute.xlu0 0
        %475 = vperm.xlu0 %474, %v425
        %v476 = vpop.permute.xlu0 %475
        %vm477 = vcmp.eq.s32.totalorder %v431, %v427
        %vm478 = vcmp.eq.s32.totalorder %v431, %v428
        %vm479 = vcmp.eq.s32.totalorder %v434, %v427
        %vm480 = vcmp.eq.s32.totalorder %v434, %v428
        %vm481 = vcmp.eq.s32.totalorder %v437, %v427
        %vm482 = vcmp.eq.s32.totalorder %v437, %v428
        %vm483 = vcmp.eq.s32.totalorder %v440, %v427
        %vm484 = vcmp.eq.s32.totalorder %v440, %v428
        %vm485 = vcmp.eq.s32.totalorder %v443, %v427
        %vm486 = vcmp.eq.s32.totalorder %v443, %v428
        %vm487 = vcmp.eq.s32.totalorder %v446, %v427
        %vm488 = vcmp.eq.s32.totalorder %v446, %v428
        %vm489 = vcmp.eq.s32.totalorder %v449, %v427
        %vm490 = vcmp.eq.s32.totalorder %v449, %v428
        %vm491 = vcmp.eq.s32.totalorder %v452, %v427
        %vm492 = vcmp.eq.s32.totalorder %v452, %v428
        %vm493 = vcmp.eq.s32.totalorder %v455, %v427
        %vm494 = vcmp.eq.s32.totalorder %v455, %v428
        %vm495 = vcmp.eq.s32.totalorder %v458, %v427
        %vm496 = vcmp.eq.s32.totalorder %v458, %v428
        %vm497 = vcmp.eq.s32.totalorder %v461, %v427
        %vm498 = vcmp.eq.s32.totalorder %v461, %v428
        %vm499 = vcmp.eq.s32.totalorder %v464, %v427
        %vm500 = vcmp.eq.s32.totalorder %v464, %v428
        %vm501 = vcmp.eq.s32.totalorder %v467, %v427
        %vm502 = vcmp.eq.s32.totalorder %v467, %v428
        %vm503 = vcmp.eq.s32.totalorder %v470, %v427
        %vm504 = vcmp.eq.s32.totalorder %v470, %v428
        %vm505 = vcmp.eq.s32.totalorder %v473, %v427
        %vm506 = vcmp.eq.s32.totalorder %v473, %v428
        %vm507 = vcmp.eq.s32.totalorder %v476, %v427
        %vm508 = vcmp.eq.s32.totalorder %v476, %v428
        %v509 = vsel %vm477, 1, 0
        %v510 = vsel %vm478, 1, 0
        %v511 = vsel %vm479, 1, 0
        %v512 = vsel %vm480, 1, 0
        %v513 = vsel %vm481, 1, 0
        %v514 = vsel %vm482, 1, 0
        %v515 = vsel %vm483, 1, 0
        %v516 = vsel %vm484, 1, 0
        %v517 = vsel %vm485, 1, 0
        %v518 = vsel %vm486, 1, 0
        %v519 = vsel %vm487, 1, 0
        %v520 = vsel %vm488, 1, 0
        %v521 = vsel %vm489, 1, 0
        %v522 = vsel %vm490, 1, 0
        %v523 = vsel %vm491, 1, 0
        %v524 = vsel %vm492, 1, 0
        %v525 = vsel %vm493, 1, 0
        %v526 = vsel %vm494, 1, 0
        %v527 = vsel %vm495, 1, 0
        %v528 = vsel %vm496, 1, 0
        %v529 = vsel %vm497, 1, 0
        %v530 = vsel %vm498, 1, 0
        %v531 = vsel %vm499, 1, 0
        %v532 = vsel %vm500, 1, 0
        %v533 = vsel %vm501, 1, 0
        %v534 = vsel %vm502, 1, 0
        %v535 = vsel %vm503, 1, 0
        %v536 = vsel %vm504, 1, 0
        %v537 = vsel %vm505, 1, 0
        %v538 = vsel %vm506, 1, 0
        %v539 = vsel %vm507, 1, 0
        %v540 = vsel %vm508, 1, 0
        %v541 = vcvt.s32.f32 %v509
        %v542 = vcvt.s32.f32 %v510
        %v543 = vcvt.s32.f32 %v511
        %v544 = vcvt.s32.f32 %v512
        %v545 = vcvt.s32.f32 %v513
        %v546 = vcvt.s32.f32 %v514
        %v547 = vcvt.s32.f32 %v515
        %v548 = vcvt.s32.f32 %v516
        %v549 = vcvt.s32.f32 %v517
        %v550 = vcvt.s32.f32 %v518
        %v551 = vcvt.s32.f32 %v519
        %v552 = vcvt.s32.f32 %v520
        %v553 = vcvt.s32.f32 %v521
        %v554 = vcvt.s32.f32 %v522
        %v555 = vcvt.s32.f32 %v523
        %v556 = vcvt.s32.f32 %v524
        %v557 = vcvt.s32.f32 %v525
        %v558 = vcvt.s32.f32 %v526
        %v559 = vcvt.s32.f32 %v527
        %v560 = vcvt.s32.f32 %v528
        %v561 = vcvt.s32.f32 %v529
        %v562 = vcvt.s32.f32 %v530
        %v563 = vcvt.s32.f32 %v531
        %v564 = vcvt.s32.f32 %v532
        %v565 = vcvt.s32.f32 %v533
        %v566 = vcvt.s32.f32 %v534
        %v567 = vcvt.s32.f32 %v535
        %v568 = vcvt.s32.f32 %v536
        %v569 = vcvt.s32.f32 %v537
        %v570 = vcvt.s32.f32 %v538
        %v571 = vcvt.s32.f32 %v539
        %v572 = vcvt.s32.f32 %v540
        %v573 = vld [vmem:[%s0] sm:$0xff]
        %v574 = vld [vmem:[%s0 + $0x8] sm:$0xff]
        %v575 = vld [vmem:[%s0 + $0x10] sm:$0xff]
        %v576 = vld [vmem:[%s0 + $0x18] sm:$0xff]
        %v577 = vld [vmem:[%s0 + $0x20] sm:$0xff]
        %v578 = vld [vmem:[%s0 + $0x28] sm:$0xff]
        %v579 = vld [vmem:[%s0 + $0x30] sm:$0xff]
        %v580 = vld [vmem:[%s0 + $0x38] sm:$0xff]
        %v581 = vld [vmem:[%s0 + $0x40] sm:$0xff]
        %v582 = vld [vmem:[%s0 + $0x48] sm:$0xff]
        %v583 = vld [vmem:[%s0 + $0x50] sm:$0xff]
        %v584 = vld [vmem:[%s0 + $0x58] sm:$0xff]
        %v585 = vld [vmem:[%s0 + $0x60] sm:$0xff]
        %v586 = vld [vmem:[%s0 + $0x68] sm:$0xff]
        %v587 = vld [vmem:[%s0 + $0x70] sm:$0xff]
        %v588 = vld [vmem:[%s0 + $0x78] sm:$0xff]
        %v589 = vld [vmem:[%s0 + $0x80] sm:$0xff]
        %v590 = vld [vmem:[%s0 + $0x88] sm:$0xff]
        %v591 = vld [vmem:[%s0 + $0x90] sm:$0xff]
        %v592 = vld [vmem:[%s0 + $0x98] sm:$0xff]
        %v593 = vld [vmem:[%s0 + $0xa0] sm:$0xff]
        %v594 = vld [vmem:[%s0 + $0xa8] sm:$0xff]
        %v595 = vld [vmem:[%s0 + $0xb0] sm:$0xff]
        %v596 = vld [vmem:[%s0 + $0xb8] sm:$0xff]
        %v597 = vld [vmem:[%s0 + $0xc0] sm:$0xff]
        %v598 = vld [vmem:[%s0 + $0xc8] sm:$0xff]
        %v599 = vld [vmem:[%s0 + $0xd0] sm:$0xff]
        %v600 = vld [vmem:[%s0 + $0xd8] sm:$0xff]
        %v601 = vld [vmem:[%s0 + $0xe0] sm:$0xff]
        %v602 = vld [vmem:[%s0 + $0xe8] sm:$0xff]
        %v603 = vld [vmem:[%s0 + $0xf0] sm:$0xff]
        %v604 = vld [vmem:[%s0 + $0xf8] sm:$0xff]
        %v605 = vld [vmem:[%s378] sm:$0xff]
        %v606 = vld [vmem:[%s378 + $0x8] sm:$0xff]
        %v607 = vld [vmem:[%s378 + $0x10] sm:$0xff]
        %v608 = vld [vmem:[%s378 + $0x18] sm:$0xff]
        %v609 = vld [vmem:[%s378 + $0x20] sm:$0xff]
        %v610 = vld [vmem:[%s378 + $0x28] sm:$0xff]
        %v611 = vld [vmem:[%s378 + $0x30] sm:$0xff]
        %v612 = vld [vmem:[%s378 + $0x38] sm:$0xff]
        %v613 = vld [vmem:[%s378 + $0x40] sm:$0xff]
        %v614 = vld [vmem:[%s378 + $0x48] sm:$0xff]
        %v615 = vld [vmem:[%s378 + $0x50] sm:$0xff]
        %v616 = vld [vmem:[%s378 + $0x58] sm:$0xff]
        %v617 = vld [vmem:[%s378 + $0x60] sm:$0xff]
        %v618 = vld [vmem:[%s378 + $0x68] sm:$0xff]
        %v619 = vld [vmem:[%s378 + $0x70] sm:$0xff]
        %v620 = vld [vmem:[%s378 + $0x78] sm:$0xff]
        %621 = vset.pattern.permute.xlu0 0
        %622 = vperm.xlu0 %621, %v605
        %v623 = vpop.permute.xlu0 %622
        %624 = vset.pattern.permute.xlu0 0
        %625 = vperm.xlu0 %624, %v606
        %v626 = vpop.permute.xlu0 %625
        %627 = vset.pattern.permute.xlu0 0
        %628 = vperm.xlu0 %627, %v607
        %v629 = vpop.permute.xlu0 %628
        %630 = vset.pattern.permute.xlu0 0
        %631 = vperm.xlu0 %630, %v608
        %v632 = vpop.permute.xlu0 %631
        %633 = vset.pattern.permute.xlu0 0
        %634 = vperm.xlu0 %633, %v609
        %v635 = vpop.permute.xlu0 %634
        %636 = vset.pattern.permute.xlu0 0
        %637 = vperm.xlu0 %636, %v610
        %v638 = vpop.permute.xlu0 %637
        %639 = vset.pattern.permute.xlu0 0
        %640 = vperm.xlu0 %639, %v611
        %v641 = vpop.permute.xlu0 %640
        %642 = vset.pattern.permute.xlu0 0
        %643 = vperm.xlu0 %642, %v612
        %v644 = vpop.permute.xlu0 %643
        %645 = vset.pattern.permute.xlu0 0
        %646 = vperm.xlu0 %645, %v613
        %v647 = vpop.permute.xlu0 %646
        %648 = vset.pattern.permute.xlu0 0
        %649 = vperm.xlu0 %648, %v614
        %v650 = vpop.permute.xlu0 %649
        %651 = vset.pattern.permute.xlu0 0
        %652 = vperm.xlu0 %651, %v615
        %v653 = vpop.permute.xlu0 %652
        %654 = vset.pattern.permute.xlu0 0
        %655 = vperm.xlu0 %654, %v616
        %v656 = vpop.permute.xlu0 %655
        %657 = vset.pattern.permute.xlu0 0
        %658 = vperm.xlu0 %657, %v617
        %v659 = vpop.permute.xlu0 %658
        %660 = vset.pattern.permute.xlu0 0
        %661 = vperm.xlu0 %660, %v618
        %v662 = vpop.permute.xlu0 %661
        %663 = vset.pattern.permute.xlu0 0
        %664 = vperm.xlu0 %663, %v619
        %v665 = vpop.permute.xlu0 %664
        %666 = vset.pattern.permute.xlu0 0
        %667 = vperm.xlu0 %666, %v620
        %v668 = vpop.permute.xlu0 %667
        %vm669 = vcmp.eq.s32.totalorder %v623, %v427
        %vm670 = vcmp.eq.s32.totalorder %v626, %v427
        %vm671 = vcmp.eq.s32.totalorder %v629, %v427
        %vm672 = vcmp.eq.s32.totalorder %v632, %v427
        %vm673 = vcmp.eq.s32.totalorder %v635, %v427
        %vm674 = vcmp.eq.s32.totalorder %v638, %v427
        %vm675 = vcmp.eq.s32.totalorder %v641, %v427
        %vm676 = vcmp.eq.s32.totalorder %v644, %v427
        %vm677 = vcmp.eq.s32.totalorder %v647, %v427
        %vm678 = vcmp.eq.s32.totalorder %v650, %v427
        %vm679 = vcmp.eq.s32.totalorder %v653, %v427
        %vm680 = vcmp.eq.s32.totalorder %v656, %v427
        %vm681 = vcmp.eq.s32.totalorder %v659, %v427
        %vm682 = vcmp.eq.s32.totalorder %v662, %v427
        %vm683 = vcmp.eq.s32.totalorder %v665, %v427
        %vm684 = vcmp.eq.s32.totalorder %v668, %v427
        %v685 = vsel %vm669, 1, 0
        %v686 = vsel %vm670, 1, 0
        %v687 = vsel %vm671, 1, 0
        %v688 = vsel %vm672, 1, 0
        %v689 = vsel %vm673, 1, 0
        %v690 = vsel %vm674, 1, 0
        %v691 = vsel %vm675, 1, 0
        %v692 = vsel %vm676, 1, 0
        %v693 = vsel %vm677, 1, 0
        %v694 = vsel %vm678, 1, 0
        %v695 = vsel %vm679, 1, 0
        %v696 = vsel %vm680, 1, 0
        %v697 = vsel %vm681, 1, 0
        %v698 = vsel %vm682, 1, 0
        %v699 = vsel %vm683, 1, 0
        %v700 = vsel %vm684, 1, 0
        %v701 = vcvt.s32.f32 %v685
        %v702 = vcvt.s32.f32 %v686
        %v703 = vcvt.s32.f32 %v687
        %v704 = vcvt.s32.f32 %v688
        %v705 = vcvt.s32.f32 %v689
        %v706 = vcvt.s32.f32 %v690
        %v707 = vcvt.s32.f32 %v691
        %v708 = vcvt.s32.f32 %v692
        %v709 = vcvt.s32.f32 %v693
        %v710 = vcvt.s32.f32 %v694
        %v711 = vcvt.s32.f32 %v695
        %v712 = vcvt.s32.f32 %v696
        %v713 = vcvt.s32.f32 %v697
        %v714 = vcvt.s32.f32 %v698
        %v715 = vcvt.s32.f32 %v699
        %v716 = vcvt.s32.f32 %v700
        %v717 = vld [vmem:[%s1] sm:$0xff]
        %vm718 = vcmask 64512
        %v720 = vsel %vm718, %v701, 0
        %v723 = vsel %vm718, %v702, 0
        %v726 = vsel %vm718, %v703, 0
        %v729 = vsel %vm718, %v704, 0
        %v732 = vsel %vm718, %v705, 0
        %v735 = vsel %vm718, %v706, 0
        %v738 = vsel %vm718, %v707, 0
        %v741 = vsel %vm718, %v708, 0
        %v744 = vsel %vm718, %v709, 0
        %v747 = vsel %vm718, %v710, 0
        %v750 = vsel %vm718, %v711, 0
        %v753 = vsel %vm718, %v712, 0
        %v756 = vsel %vm718, %v713, 0
        %v759 = vsel %vm718, %v714, 0
        %v762 = vsel %vm718, %v715, 0
        %v765 = vsel %vm718, %v716, 0
        %767 = vmatpush.msra.mxu0 0.0
        %768 = vmatpush.msra.mxu0 0.0
        %769 = vmatpush.msra.mxu0 0.0
        %770 = vmatpush.msra.mxu0 0.0
        %771 = vmatpush.msra.mxu0 0.0
        %772 = vmatpush.msra.mxu0 0.0
        %773 = vmatpush.msra.mxu0 0.0
        %774 = vmatpush.msra.mxu0 0.0
        %775 = vmatpush.msra.mxu0 0.0
        %776 = vmatpush.msra.mxu0 0.0
        %777 = vmatpush.msra.mxu0 0.0
        %778 = vmatpush.msra.mxu0 0.0
        %779 = vmatpush.msra.mxu0 0.0
        %780 = vmatpush.msra.mxu0 0.0
        %781 = vmatpush.msra.mxu0 0.0
        %782 = vmatpush.msra.mxu0 %v717
        %783 = vmatmul.f32.gmra.mxu0 %v720
        %v784 = vpop.f32.mrf.mxu0
        %v785 = vadd.f32 0.0, %v784
        %786 = vmatmul.f32.gmra.mxu0 %v723
        %v787 = vpop.f32.mrf.mxu0
        %v788 = vadd.f32 0.0, %v787
        %789 = vmatmul.f32.gmra.mxu0 %v726
        %v790 = vpop.f32.mrf.mxu0
        %v791 = vadd.f32 0.0, %v790
        %792 = vmatmul.f32.gmra.mxu0 %v729
        %v793 = vpop.f32.mrf.mxu0
        %v794 = vadd.f32 0.0, %v793
        %795 = vmatmul.f32.gmra.mxu0 %v732
        %v796 = vpop.f32.mrf.mxu0
        %v797 = vadd.f32 0.0, %v796
        %798 = vmatmul.f32.gmra.mxu0 %v735
        %v799 = vpop.f32.mrf.mxu0
        %v800 = vadd.f32 0.0, %v799
        %801 = vmatmul.f32.gmra.mxu0 %v738
        %v802 = vpop.f32.mrf.mxu0
        %v803 = vadd.f32 0.0, %v802
        %804 = vmatmul.f32.gmra.mxu0 %v741
        %v805 = vpop.f32.mrf.mxu0
        %v806 = vadd.f32 0.0, %v805
        %807 = vmatmul.f32.gmra.mxu0 %v744
        %v808 = vpop.f32.mrf.mxu0
        %v809 = vadd.f32 0.0, %v808
        %810 = vmatmul.f32.gmra.mxu0 %v747
        %v811 = vpop.f32.mrf.mxu0
        %v812 = vadd.f32 0.0, %v811
        %813 = vmatmul.f32.gmra.mxu0 %v750
        %v814 = vpop.f32.mrf.mxu0
        %v815 = vadd.f32 0.0, %v814
        %816 = vmatmul.f32.gmra.mxu0 %v753
        %v817 = vpop.f32.mrf.mxu0
        %v818 = vadd.f32 0.0, %v817
        %819 = vmatmul.f32.gmra.mxu0 %v756
        %v820 = vpop.f32.mrf.mxu0
        %v821 = vadd.f32 0.0, %v820
        %822 = vmatmul.f32.gmra.mxu0 %v759
        %v823 = vpop.f32.mrf.mxu0
        %v824 = vadd.f32 0.0, %v823
        %825 = vmatmul.f32.gmra.mxu0 %v762
        %v826 = vpop.f32.mrf.mxu0
        %v827 = vadd.f32 0.0, %v826
        %828 = vmatmul.f32.gmra.mxu0 %v765
        %v829 = vpop.f32.mrf.mxu0
        %v830 = vadd.f32 0.0, %v829
        %831 = vdwg.mxu0
        %832 = vmatpush.msra.mxu0 %v588
        %833 = vmatpush.msra.mxu0 %v587
        %834 = vmatpush.msra.mxu0 %v586
        %835 = vmatpush.msra.mxu0 %v585
        %836 = vmatpush.msra.mxu0 %v584
        %837 = vmatpush.msra.mxu0 %v583
        %838 = vmatpush.msra.mxu0 %v582
        %839 = vmatpush.msra.mxu0 %v581
        %840 = vmatpush.msra.mxu0 %v580
        %841 = vmatpush.msra.mxu0 %v579
        %842 = vmatpush.msra.mxu0 %v578
        %843 = vmatpush.msra.mxu0 %v577
        %844 = vmatpush.msra.mxu0 %v576
        %845 = vmatpush.msra.mxu0 %v575
        %846 = vmatpush.msra.mxu0 %v574
        %847 = vmatpush.msra.mxu0 %v573
        %848 = vmatmul.f32.gmra.mxu0 %v541
        %v849 = vpop.f32.mrf.mxu0
        %v850 = vadd.f32 %v785, %v849
        %851 = vmatmul.f32.gmra.mxu0 %v543
        %v852 = vpop.f32.mrf.mxu0
        %v853 = vadd.f32 %v788, %v852
        %854 = vmatmul.f32.gmra.mxu0 %v545
        %v855 = vpop.f32.mrf.mxu0
        %v856 = vadd.f32 %v791, %v855
        %857 = vmatmul.f32.gmra.mxu0 %v547
        %v858 = vpop.f32.mrf.mxu0
        %v859 = vadd.f32 %v794, %v858
        %860 = vmatmul.f32.gmra.mxu0 %v549
        %v861 = vpop.f32.mrf.mxu0
        %v862 = vadd.f32 %v797, %v861
        %863 = vmatmul.f32.gmra.mxu0 %v551
        %v864 = vpop.f32.mrf.mxu0
        %v865 = vadd.f32 %v800, %v864
        %866 = vmatmul.f32.gmra.mxu0 %v553
        %v867 = vpop.f32.mrf.mxu0
        %v868 = vadd.f32 %v803, %v867
        %869 = vmatmul.f32.gmra.mxu0 %v555
        %v870 = vpop.f32.mrf.mxu0
        %v871 = vadd.f32 %v806, %v870
        %872 = vmatmul.f32.gmra.mxu0 %v557
        %v873 = vpop.f32.mrf.mxu0
        %v874 = vadd.f32 %v809, %v873
        %875 = vmatmul.f32.gmra.mxu0 %v559
        %v876 = vpop.f32.mrf.mxu0
        %v877 = vadd.f32 %v812, %v876
        %878 = vmatmul.f32.gmra.mxu0 %v561
        %v879 = vpop.f32.mrf.mxu0
        %v880 = vadd.f32 %v815, %v879
        %881 = vmatmul.f32.gmra.mxu0 %v563
        %v882 = vpop.f32.mrf.mxu0
        %v883 = vadd.f32 %v818, %v882
        %884 = vmatmul.f32.gmra.mxu0 %v565
        %v885 = vpop.f32.mrf.mxu0
        %v886 = vadd.f32 %v821, %v885
        %887 = vmatmul.f32.gmra.mxu0 %v567
        %v888 = vpop.f32.mrf.mxu0
        %v889 = vadd.f32 %v824, %v888
        %890 = vmatmul.f32.gmra.mxu0 %v569
        %v891 = vpop.f32.mrf.mxu0
        %v892 = vadd.f32 %v827, %v891
        %893 = vmatmul.f32.gmra.mxu0 %v571
        %v894 = vpop.f32.mrf.mxu0
        %v895 = vadd.f32 %v830, %v894
        %896 = vdwg.mxu0
        %897 = vmatpush.msra.mxu0 %v604
        %898 = vmatpush.msra.mxu0 %v603
        %899 = vmatpush.msra.mxu0 %v602
        %900 = vmatpush.msra.mxu0 %v601
        %901 = vmatpush.msra.mxu0 %v600
        %902 = vmatpush.msra.mxu0 %v599
        %903 = vmatpush.msra.mxu0 %v598
        %904 = vmatpush.msra.mxu0 %v597
        %905 = vmatpush.msra.mxu0 %v596
        %906 = vmatpush.msra.mxu0 %v595
        %907 = vmatpush.msra.mxu0 %v594
        %908 = vmatpush.msra.mxu0 %v593
        %909 = vmatpush.msra.mxu0 %v592
        %910 = vmatpush.msra.mxu0 %v591
        %911 = vmatpush.msra.mxu0 %v590
        %912 = vmatpush.msra.mxu0 %v589
        %913 = vmatmul.f32.gmra.mxu0 %v542
        %v914 = vpop.f32.mrf.mxu0
        %v915 = vadd.f32 %v850, %v914
        %916 = vmatmul.f32.gmra.mxu0 %v544
        %v917 = vpop.f32.mrf.mxu0
        %v918 = vadd.f32 %v853, %v917
        %919 = vmatmul.f32.gmra.mxu0 %v546
        %v920 = vpop.f32.mrf.mxu0
        %v921 = vadd.f32 %v856, %v920
        %922 = vmatmul.f32.gmra.mxu0 %v548
        %v923 = vpop.f32.mrf.mxu0
        %v924 = vadd.f32 %v859, %v923
        %925 = vmatmul.f32.gmra.mxu0 %v550
        %v926 = vpop.f32.mrf.mxu0
        %v927 = vadd.f32 %v862, %v926
        %928 = vmatmul.f32.gmra.mxu0 %v552
        %v929 = vpop.f32.mrf.mxu0
        %v930 = vadd.f32 %v865, %v929
        %931 = vmatmul.f32.gmra.mxu0 %v554
        %v932 = vpop.f32.mrf.mxu0
        %v933 = vadd.f32 %v868, %v932
        %934 = vmatmul.f32.gmra.mxu0 %v556
        %v935 = vpop.f32.mrf.mxu0
        %v936 = vadd.f32 %v871, %v935
        %937 = vmatmul.f32.gmra.mxu0 %v558
        %v938 = vpop.f32.mrf.mxu0
        %v939 = vadd.f32 %v874, %v938
        %940 = vmatmul.f32.gmra.mxu0 %v560
        %v941 = vpop.f32.mrf.mxu0
        %v942 = vadd.f32 %v877, %v941
        %943 = vmatmul.f32.gmra.mxu0 %v562
        %v944 = vpop.f32.mrf.mxu0
        %v945 = vadd.f32 %v880, %v944
        %946 = vmatmul.f32.gmra.mxu0 %v564
        %v947 = vpop.f32.mrf.mxu0
        %v948 = vadd.f32 %v883, %v947
        %949 = vmatmul.f32.gmra.mxu0 %v566
        %v950 = vpop.f32.mrf.mxu0
        %v951 = vadd.f32 %v886, %v950
        %952 = vmatmul.f32.gmra.mxu0 %v568
        %v953 = vpop.f32.mrf.mxu0
        %v954 = vadd.f32 %v889, %v953
        %955 = vmatmul.f32.gmra.mxu0 %v570
        %v956 = vpop.f32.mrf.mxu0
        %v957 = vadd.f32 %v892, %v956
        %958 = vmatmul.f32.gmra.mxu0 %v572
        %v959 = vpop.f32.mrf.mxu0
        %v960 = vadd.f32 %v895, %v959
        %961 = vdwg.mxu0
        %v962 = vld [vmem:[%s384] sm:$0xff]
        %v963 = vld [vmem:[%s384 + $0x8] sm:$0xff]
        %v964 = vld [vmem:[%s384 + $0x10] sm:$0xff]
        %v965 = vld [vmem:[%s384 + $0x18] sm:$0xff]
        %v966 = vld [vmem:[%s384 + $0x20] sm:$0xff]
        %v967 = vld [vmem:[%s384 + $0x28] sm:$0xff]
        %v968 = vld [vmem:[%s384 + $0x30] sm:$0xff]
        %v969 = vld [vmem:[%s384 + $0x38] sm:$0xff]
        %v970 = vld [vmem:[%s384 + $0x40] sm:$0xff]
        %v971 = vld [vmem:[%s384 + $0x48] sm:$0xff]
        %v972 = vld [vmem:[%s384 + $0x50] sm:$0xff]
        %v973 = vld [vmem:[%s384 + $0x58] sm:$0xff]
        %v974 = vld [vmem:[%s384 + $0x60] sm:$0xff]
        %v975 = vld [vmem:[%s384 + $0x68] sm:$0xff]
        %v976 = vld [vmem:[%s384 + $0x70] sm:$0xff]
        %v977 = vld [vmem:[%s384 + $0x78] sm:$0xff]
        %978 = vset.pattern.permute.xlu0 0
        %979 = vperm.xlu0 %978, %v962
        %v980 = vpop.permute.xlu0 %979
        %981 = vset.pattern.permute.xlu0 0
        %982 = vperm.xlu0 %981, %v963
        %v983 = vpop.permute.xlu0 %982
        %984 = vset.pattern.permute.xlu0 0
        %985 = vperm.xlu0 %984, %v964
        %v986 = vpop.permute.xlu0 %985
        %987 = vset.pattern.permute.xlu0 0
        %988 = vperm.xlu0 %987, %v965
        %v989 = vpop.permute.xlu0 %988
        %990 = vset.pattern.permute.xlu0 0
        %991 = vperm.xlu0 %990, %v966
        %v992 = vpop.permute.xlu0 %991
        %993 = vset.pattern.permute.xlu0 0
        %994 = vperm.xlu0 %993, %v967
        %v995 = vpop.permute.xlu0 %994
        %996 = vset.pattern.permute.xlu0 0
        %997 = vperm.xlu0 %996, %v968
        %v998 = vpop.permute.xlu0 %997
        %999 = vset.pattern.permute.xlu0 0
        %1000 = vperm.xlu0 %999, %v969
        %v1001 = vpop.permute.xlu0 %1000
        %1002 = vset.pattern.permute.xlu0 0
        %1003 = vperm.xlu0 %1002, %v970
        %v1004 = vpop.permute.xlu0 %1003
        %1005 = vset.pattern.permute.xlu0 0
        %1006 = vperm.xlu0 %1005, %v971
        %v1007 = vpop.permute.xlu0 %1006
        %1008 = vset.pattern.permute.xlu0 0
        %1009 = vperm.xlu0 %1008, %v972
        %v1010 = vpop.permute.xlu0 %1009
        %1011 = vset.pattern.permute.xlu0 0
        %1012 = vperm.xlu0 %1011, %v973
        %v1013 = vpop.permute.xlu0 %1012
        %1014 = vset.pattern.permute.xlu0 0
        %1015 = vperm.xlu0 %1014, %v974
        %v1016 = vpop.permute.xlu0 %1015
        %1017 = vset.pattern.permute.xlu0 0
        %1018 = vperm.xlu0 %1017, %v975
        %v1019 = vpop.permute.xlu0 %1018
        %1020 = vset.pattern.permute.xlu0 0
        %1021 = vperm.xlu0 %1020, %v976
        %v1022 = vpop.permute.xlu0 %1021
        %1023 = vset.pattern.permute.xlu0 0
        %1024 = vperm.xlu0 %1023, %v977
        %v1025 = vpop.permute.xlu0 %1024
        %vm1026 = vcmp.eq.s32.totalorder %v980, %v427
        %vm1027 = vcmp.eq.s32.totalorder %v980, %v428
        %vm1028 = vcmp.eq.s32.totalorder %v983, %v427
        %vm1029 = vcmp.eq.s32.totalorder %v983, %v428
        %vm1030 = vcmp.eq.s32.totalorder %v986, %v427
        %vm1031 = vcmp.eq.s32.totalorder %v986, %v428
        %vm1032 = vcmp.eq.s32.totalorder %v989, %v427
        %vm1033 = vcmp.eq.s32.totalorder %v989, %v428
        %vm1034 = vcmp.eq.s32.totalorder %v992, %v427
        %vm1035 = vcmp.eq.s32.totalorder %v992, %v428
        %vm1036 = vcmp.eq.s32.totalorder %v995, %v427
        %vm1037 = vcmp.eq.s32.totalorder %v995, %v428
        %vm1038 = vcmp.eq.s32.totalorder %v998, %v427
        %vm1039 = vcmp.eq.s32.totalorder %v998, %v428
        %vm1040 = vcmp.eq.s32.totalorder %v1001, %v427
        %vm1041 = vcmp.eq.s32.totalorder %v1001, %v428
        %vm1042 = vcmp.eq.s32.totalorder %v1004, %v427
        %vm1043 = vcmp.eq.s32.totalorder %v1004, %v428
        %vm1044 = vcmp.eq.s32.totalorder %v1007, %v427
        %vm1045 = vcmp.eq.s32.totalorder %v1007, %v428
        %vm1046 = vcmp.eq.s32.totalorder %v1010, %v427
        %vm1047 = vcmp.eq.s32.totalorder %v1010, %v428
        %vm1048 = vcmp.eq.s32.totalorder %v1013, %v427
        %vm1049 = vcmp.eq.s32.totalorder %v1013, %v428
        %vm1050 = vcmp.eq.s32.totalorder %v1016, %v427
        %vm1051 = vcmp.eq.s32.totalorder %v1016, %v428
        %vm1052 = vcmp.eq.s32.totalorder %v1019, %v427
        %vm1053 = vcmp.eq.s32.totalorder %v1019, %v428
        %vm1054 = vcmp.eq.s32.totalorder %v1022, %v427
        %vm1055 = vcmp.eq.s32.totalorder %v1022, %v428
        %vm1056 = vcmp.eq.s32.totalorder %v1025, %v427
        %vm1057 = vcmp.eq.s32.totalorder %v1025, %v428
        %v1058 = vsel %vm1026, 1, 0
        %v1059 = vsel %vm1027, 1, 0
        %v1060 = vsel %vm1028, 1, 0
        %v1061 = vsel %vm1029, 1, 0
        %v1062 = vsel %vm1030, 1, 0
        %v1063 = vsel %vm1031, 1, 0
        %v1064 = vsel %vm1032, 1, 0
        %v1065 = vsel %vm1033, 1, 0
        %v1066 = vsel %vm1034, 1, 0
        %v1067 = vsel %vm1035, 1, 0
        %v1068 = vsel %vm1036, 1, 0
        %v1069 = vsel %vm1037, 1, 0
        %v1070 = vsel %vm1038, 1, 0
        %v1071 = vsel %vm1039, 1, 0
        %v1072 = vsel %vm1040, 1, 0
        %v1073 = vsel %vm1041, 1, 0
        %v1074 = vsel %vm1042, 1, 0
        %v1075 = vsel %vm1043, 1, 0
        %v1076 = vsel %vm1044, 1, 0
        %v1077 = vsel %vm1045, 1, 0
        %v1078 = vsel %vm1046, 1, 0
        %v1079 = vsel %vm1047, 1, 0
        %v1080 = vsel %vm1048, 1, 0
        %v1081 = vsel %vm1049, 1, 0
        %v1082 = vsel %vm1050, 1, 0
        %v1083 = vsel %vm1051, 1, 0
        %v1084 = vsel %vm1052, 1, 0
        %v1085 = vsel %vm1053, 1, 0
        %v1086 = vsel %vm1054, 1, 0
        %v1087 = vsel %vm1055, 1, 0
        %v1088 = vsel %vm1056, 1, 0
        %v1089 = vsel %vm1057, 1, 0
        %v1090 = vcvt.s32.f32 %v1058
        %v1091 = vcvt.s32.f32 %v1059
        %v1092 = vcvt.s32.f32 %v1060
        %v1093 = vcvt.s32.f32 %v1061
        %v1094 = vcvt.s32.f32 %v1062
        %v1095 = vcvt.s32.f32 %v1063
        %v1096 = vcvt.s32.f32 %v1064
        %v1097 = vcvt.s32.f32 %v1065
        %v1098 = vcvt.s32.f32 %v1066
        %v1099 = vcvt.s32.f32 %v1067
        %v1100 = vcvt.s32.f32 %v1068
        %v1101 = vcvt.s32.f32 %v1069
        %v1102 = vcvt.s32.f32 %v1070
        %v1103 = vcvt.s32.f32 %v1071
        %v1104 = vcvt.s32.f32 %v1072
        %v1105 = vcvt.s32.f32 %v1073
        %v1106 = vcvt.s32.f32 %v1074
        %v1107 = vcvt.s32.f32 %v1075
        %v1108 = vcvt.s32.f32 %v1076
        %v1109 = vcvt.s32.f32 %v1077
        %v1110 = vcvt.s32.f32 %v1078
        %v1111 = vcvt.s32.f32 %v1079
        %v1112 = vcvt.s32.f32 %v1080
        %v1113 = vcvt.s32.f32 %v1081
        %v1114 = vcvt.s32.f32 %v1082
        %v1115 = vcvt.s32.f32 %v1083
        %v1116 = vcvt.s32.f32 %v1084
        %v1117 = vcvt.s32.f32 %v1085
        %v1118 = vcvt.s32.f32 %v1086
        %v1119 = vcvt.s32.f32 %v1087
        %v1120 = vcvt.s32.f32 %v1088
        %v1121 = vcvt.s32.f32 %v1089
        %1122 = vmatpush.msra.mxu0 %v588
        %1123 = vmatpush.msra.mxu0 %v587
        %1124 = vmatpush.msra.mxu0 %v586
        %1125 = vmatpush.msra.mxu0 %v585
        %1126 = vmatpush.msra.mxu0 %v584
        %1127 = vmatpush.msra.mxu0 %v583
        %1128 = vmatpush.msra.mxu0 %v582
        %1129 = vmatpush.msra.mxu0 %v581
        %1130 = vmatpush.msra.mxu0 %v580
        %1131 = vmatpush.msra.mxu0 %v579
        %1132 = vmatpush.msra.mxu0 %v578
        %1133 = vmatpush.msra.mxu0 %v577
        %1134 = vmatpush.msra.mxu0 %v576
        %1135 = vmatpush.msra.mxu0 %v575
        %1136 = vmatpush.msra.mxu0 %v574
        %1137 = vmatpush.msra.mxu0 %v573
        %1138 = vmatmul.f32.gmra.mxu0 %v1090
        %v1139 = vpop.f32.mrf.mxu0
        %v1140 = vadd.f32 0.0, %v1139
        %1141 = vmatmul.f32.gmra.mxu0 %v1092
        %v1142 = vpop.f32.mrf.mxu0
        %v1143 = vadd.f32 0.0, %v1142
        %1144 = vmatmul.f32.gmra.mxu0 %v1094
        %v1145 = vpop.f32.mrf.mxu0
        %v1146 = vadd.f32 0.0, %v1145
        %1147 = vmatmul.f32.gmra.mxu0 %v1096
        %v1148 = vpop.f32.mrf.mxu0
        %v1149 = vadd.f32 0.0, %v1148
        %1150 = vmatmul.f32.gmra.mxu0 %v1098
        %v1151 = vpop.f32.mrf.mxu0
        %v1152 = vadd.f32 0.0, %v1151
        %1153 = vmatmul.f32.gmra.mxu0 %v1100
        %v1154 = vpop.f32.mrf.mxu0
        %v1155 = vadd.f32 0.0, %v1154
        %1156 = vmatmul.f32.gmra.mxu0 %v1102
        %v1157 = vpop.f32.mrf.mxu0
        %v1158 = vadd.f32 0.0, %v1157
        %1159 = vmatmul.f32.gmra.mxu0 %v1104
        %v1160 = vpop.f32.mrf.mxu0
        %v1161 = vadd.f32 0.0, %v1160
        %1162 = vmatmul.f32.gmra.mxu0 %v1106
        %v1163 = vpop.f32.mrf.mxu0
        %v1164 = vadd.f32 0.0, %v1163
        %1165 = vmatmul.f32.gmra.mxu0 %v1108
        %v1166 = vpop.f32.mrf.mxu0
        %v1167 = vadd.f32 0.0, %v1166
        %1168 = vmatmul.f32.gmra.mxu0 %v1110
        %v1169 = vpop.f32.mrf.mxu0
        %v1170 = vadd.f32 0.0, %v1169
        %1171 = vmatmul.f32.gmra.mxu0 %v1112
        %v1172 = vpop.f32.mrf.mxu0
        %v1173 = vadd.f32 0.0, %v1172
        %1174 = vmatmul.f32.gmra.mxu0 %v1114
        %v1175 = vpop.f32.mrf.mxu0
        %v1176 = vadd.f32 0.0, %v1175
        %1177 = vmatmul.f32.gmra.mxu0 %v1116
        %v1178 = vpop.f32.mrf.mxu0
        %v1179 = vadd.f32 0.0, %v1178
        %1180 = vmatmul.f32.gmra.mxu0 %v1118
        %v1181 = vpop.f32.mrf.mxu0
        %v1182 = vadd.f32 0.0, %v1181
        %1183 = vmatmul.f32.gmra.mxu0 %v1120
        %v1184 = vpop.f32.mrf.mxu0
        %v1185 = vadd.f32 0.0, %v1184
        %1186 = vdwg.mxu0
        %1187 = vmatpush.msra.mxu0 %v604
        %1188 = vmatpush.msra.mxu0 %v603
        %1189 = vmatpush.msra.mxu0 %v602
        %1190 = vmatpush.msra.mxu0 %v601
        %1191 = vmatpush.msra.mxu0 %v600
        %1192 = vmatpush.msra.mxu0 %v599
        %1193 = vmatpush.msra.mxu0 %v598
        %1194 = vmatpush.msra.mxu0 %v597
        %1195 = vmatpush.msra.mxu0 %v596
        %1196 = vmatpush.msra.mxu0 %v595
        %1197 = vmatpush.msra.mxu0 %v594
        %1198 = vmatpush.msra.mxu0 %v593
        %1199 = vmatpush.msra.mxu0 %v592
        %1200 = vmatpush.msra.mxu0 %v591
        %1201 = vmatpush.msra.mxu0 %v590
        %1202 = vmatpush.msra.mxu0 %v589
        %1203 = vmatmul.f32.gmra.mxu0 %v1091
        %v1204 = vpop.f32.mrf.mxu0
        %v1205 = vadd.f32 %v1140, %v1204
        %1206 = vmatmul.f32.gmra.mxu0 %v1093
        %v1207 = vpop.f32.mrf.mxu0
        %v1208 = vadd.f32 %v1143, %v1207
        %1209 = vmatmul.f32.gmra.mxu0 %v1095
        %v1210 = vpop.f32.mrf.mxu0
        %v1211 = vadd.f32 %v1146, %v1210
        %1212 = vmatmul.f32.gmra.mxu0 %v1097
        %v1213 = vpop.f32.mrf.mxu0
        %v1214 = vadd.f32 %v1149, %v1213
        %1215 = vmatmul.f32.gmra.mxu0 %v1099
        %v1216 = vpop.f32.mrf.mxu0
        %v1217 = vadd.f32 %v1152, %v1216
        %1218 = vmatmul.f32.gmra.mxu0 %v1101
        %v1219 = vpop.f32.mrf.mxu0
        %v1220 = vadd.f32 %v1155, %v1219
        %1221 = vmatmul.f32.gmra.mxu0 %v1103
        %v1222 = vpop.f32.mrf.mxu0
        %v1223 = vadd.f32 %v1158, %v1222
        %1224 = vmatmul.f32.gmra.mxu0 %v1105
        %v1225 = vpop.f32.mrf.mxu0
        %v1226 = vadd.f32 %v1161, %v1225
        %1227 = vmatmul.f32.gmra.mxu0 %v1107
        %v1228 = vpop.f32.mrf.mxu0
        %v1229 = vadd.f32 %v1164, %v1228
        %1230 = vmatmul.f32.gmra.mxu0 %v1109
        %v1231 = vpop.f32.mrf.mxu0
        %v1232 = vadd.f32 %v1167, %v1231
        %1233 = vmatmul.f32.gmra.mxu0 %v1111
        %v1234 = vpop.f32.mrf.mxu0
        %v1235 = vadd.f32 %v1170, %v1234
        %1236 = vmatmul.f32.gmra.mxu0 %v1113
        %v1237 = vpop.f32.mrf.mxu0
        %v1238 = vadd.f32 %v1173, %v1237
        %1239 = vmatmul.f32.gmra.mxu0 %v1115
        %v1240 = vpop.f32.mrf.mxu0
        %v1241 = vadd.f32 %v1176, %v1240
        %1242 = vmatmul.f32.gmra.mxu0 %v1117
        %v1243 = vpop.f32.mrf.mxu0
        %v1244 = vadd.f32 %v1179, %v1243
        %1245 = vmatmul.f32.gmra.mxu0 %v1119
        %v1246 = vpop.f32.mrf.mxu0
        %v1247 = vadd.f32 %v1182, %v1246
        %1248 = vmatmul.f32.gmra.mxu0 %v1121
        %v1249 = vpop.f32.mrf.mxu0
        %v1250 = vadd.f32 %v1185, %v1249
        %1251 = vdwg.mxu0
        %v1252 = vsub.f32 %v915, %v1205
        %v1253 = vsub.f32 %v918, %v1208
        %v1254 = vsub.f32 %v921, %v1211
        %v1255 = vsub.f32 %v924, %v1214
        %v1256 = vsub.f32 %v927, %v1217
        %v1257 = vsub.f32 %v930, %v1220
        %v1258 = vsub.f32 %v933, %v1223
        %v1259 = vsub.f32 %v936, %v1226
        %v1260 = vsub.f32 %v939, %v1229
        %v1261 = vsub.f32 %v942, %v1232
        %v1262 = vsub.f32 %v945, %v1235
        %v1263 = vsub.f32 %v948, %v1238
        %v1264 = vsub.f32 %v951, %v1241
        %v1265 = vsub.f32 %v954, %v1244
        %v1266 = vsub.f32 %v957, %v1247
        %v1267 = vsub.f32 %v960, %v1250
        %v1268 = vld [vmem:[%s390] sm:$0xff]
        %v1269 = vld [vmem:[%s390 + $0x8] sm:$0xff]
        %v1270 = vld [vmem:[%s390 + $0x10] sm:$0xff]
        %v1271 = vld [vmem:[%s390 + $0x18] sm:$0xff]
        %v1272 = vld [vmem:[%s390 + $0x20] sm:$0xff]
        %v1273 = vld [vmem:[%s390 + $0x28] sm:$0xff]
        %v1274 = vld [vmem:[%s390 + $0x30] sm:$0xff]
        %v1275 = vld [vmem:[%s390 + $0x38] sm:$0xff]
        %v1276 = vld [vmem:[%s390 + $0x40] sm:$0xff]
        %v1277 = vld [vmem:[%s390 + $0x48] sm:$0xff]
        %v1278 = vld [vmem:[%s390 + $0x50] sm:$0xff]
        %v1279 = vld [vmem:[%s390 + $0x58] sm:$0xff]
        %v1280 = vld [vmem:[%s390 + $0x60] sm:$0xff]
        %v1281 = vld [vmem:[%s390 + $0x68] sm:$0xff]
        %v1282 = vld [vmem:[%s390 + $0x70] sm:$0xff]
        %v1283 = vld [vmem:[%s390 + $0x78] sm:$0xff]
        %1284 = vset.pattern.permute.xlu0 0
        %1285 = vperm.xlu0 %1284, %v1268
        %v1286 = vpop.permute.xlu0 %1285
        %1287 = vset.pattern.permute.xlu0 0
        %1288 = vperm.xlu0 %1287, %v1269
        %v1289 = vpop.permute.xlu0 %1288
        %1290 = vset.pattern.permute.xlu0 0
        %1291 = vperm.xlu0 %1290, %v1270
        %v1292 = vpop.permute.xlu0 %1291
        %1293 = vset.pattern.permute.xlu0 0
        %1294 = vperm.xlu0 %1293, %v1271
        %v1295 = vpop.permute.xlu0 %1294
        %1296 = vset.pattern.permute.xlu0 0
        %1297 = vperm.xlu0 %1296, %v1272
        %v1298 = vpop.permute.xlu0 %1297
        %1299 = vset.pattern.permute.xlu0 0
        %1300 = vperm.xlu0 %1299, %v1273
        %v1301 = vpop.permute.xlu0 %1300
        %1302 = vset.pattern.permute.xlu0 0
        %1303 = vperm.xlu0 %1302, %v1274
        %v1304 = vpop.permute.xlu0 %1303
        %1305 = vset.pattern.permute.xlu0 0
        %1306 = vperm.xlu0 %1305, %v1275
        %v1307 = vpop.permute.xlu0 %1306
        %1308 = vset.pattern.permute.xlu0 0
        %1309 = vperm.xlu0 %1308, %v1276
        %v1310 = vpop.permute.xlu0 %1309
        %1311 = vset.pattern.permute.xlu0 0
        %1312 = vperm.xlu0 %1311, %v1277
        %v1313 = vpop.permute.xlu0 %1312
        %1314 = vset.pattern.permute.xlu0 0
        %1315 = vperm.xlu0 %1314, %v1278
        %v1316 = vpop.permute.xlu0 %1315
        %1317 = vset.pattern.permute.xlu0 0
        %1318 = vperm.xlu0 %1317, %v1279
        %v1319 = vpop.permute.xlu0 %1318
        %1320 = vset.pattern.permute.xlu0 0
        %1321 = vperm.xlu0 %1320, %v1280
        %v1322 = vpop.permute.xlu0 %1321
        %1323 = vset.pattern.permute.xlu0 0
        %1324 = vperm.xlu0 %1323, %v1281
        %v1325 = vpop.permute.xlu0 %1324
        %1326 = vset.pattern.permute.xlu0 0
        %1327 = vperm.xlu0 %1326, %v1282
        %v1328 = vpop.permute.xlu0 %1327
        %1329 = vset.pattern.permute.xlu0 0
        %1330 = vperm.xlu0 %1329, %v1283
        %v1331 = vpop.permute.xlu0 %1330
        %vm1332 = vcmp.eq.s32.totalorder %v1286, %v427
        %vm1333 = vcmp.eq.s32.totalorder %v1286, %v428
        %vm1334 = vcmp.eq.s32.totalorder %v1289, %v427
        %vm1335 = vcmp.eq.s32.totalorder %v1289, %v428
        %vm1336 = vcmp.eq.s32.totalorder %v1292, %v427
        %vm1337 = vcmp.eq.s32.totalorder %v1292, %v428
        %vm1338 = vcmp.eq.s32.totalorder %v1295, %v427
        %vm1339 = vcmp.eq.s32.totalorder %v1295, %v428
        %vm1340 = vcmp.eq.s32.totalorder %v1298, %v427
        %vm1341 = vcmp.eq.s32.totalorder %v1298, %v428
        %vm1342 = vcmp.eq.s32.totalorder %v1301, %v427
        %vm1343 = vcmp.eq.s32.totalorder %v1301, %v428
        %vm1344 = vcmp.eq.s32.totalorder %v1304, %v427
        %vm1345 = vcmp.eq.s32.totalorder %v1304, %v428
        %vm1346 = vcmp.eq.s32.totalorder %v1307, %v427
        %vm1347 = vcmp.eq.s32.totalorder %v1307, %v428
        %vm1348 = vcmp.eq.s32.totalorder %v1310, %v427
        %vm1349 = vcmp.eq.s32.totalorder %v1310, %v428
        %vm1350 = vcmp.eq.s32.totalorder %v1313, %v427
        %vm1351 = vcmp.eq.s32.totalorder %v1313, %v428
        %vm1352 = vcmp.eq.s32.totalorder %v1316, %v427
        %vm1353 = vcmp.eq.s32.totalorder %v1316, %v428
        %vm1354 = vcmp.eq.s32.totalorder %v1319, %v427
        %vm1355 = vcmp.eq.s32.totalorder %v1319, %v428
        %vm1356 = vcmp.eq.s32.totalorder %v1322, %v427
        %vm1357 = vcmp.eq.s32.totalorder %v1322, %v428
        %vm1358 = vcmp.eq.s32.totalorder %v1325, %v427
        %vm1359 = vcmp.eq.s32.totalorder %v1325, %v428
        %vm1360 = vcmp.eq.s32.totalorder %v1328, %v427
        %vm1361 = vcmp.eq.s32.totalorder %v1328, %v428
        %vm1362 = vcmp.eq.s32.totalorder %v1331, %v427
        %vm1363 = vcmp.eq.s32.totalorder %v1331, %v428
        %v1364 = vsel %vm1332, 1, 0
        %v1365 = vsel %vm1333, 1, 0
        %v1366 = vsel %vm1334, 1, 0
        %v1367 = vsel %vm1335, 1, 0
        %v1368 = vsel %vm1336, 1, 0
        %v1369 = vsel %vm1337, 1, 0
        %v1370 = vsel %vm1338, 1, 0
        %v1371 = vsel %vm1339, 1, 0
        %v1372 = vsel %vm1340, 1, 0
        %v1373 = vsel %vm1341, 1, 0
        %v1374 = vsel %vm1342, 1, 0
        %v1375 = vsel %vm1343, 1, 0
        %v1376 = vsel %vm1344, 1, 0
        %v1377 = vsel %vm1345, 1, 0
        %v1378 = vsel %vm1346, 1, 0
        %v1379 = vsel %vm1347, 1, 0
        %v1380 = vsel %vm1348, 1, 0
        %v1381 = vsel %vm1349, 1, 0
        %v1382 = vsel %vm1350, 1, 0
        %v1383 = vsel %vm1351, 1, 0
        %v1384 = vsel %vm1352, 1, 0
        %v1385 = vsel %vm1353, 1, 0
        %v1386 = vsel %vm1354, 1, 0
        %v1387 = vsel %vm1355, 1, 0
        %v1388 = vsel %vm1356, 1, 0
        %v1389 = vsel %vm1357, 1, 0
        %v1390 = vsel %vm1358, 1, 0
        %v1391 = vsel %vm1359, 1, 0
        %v1392 = vsel %vm1360, 1, 0
        %v1393 = vsel %vm1361, 1, 0
        %v1394 = vsel %vm1362, 1, 0
        %v1395 = vsel %vm1363, 1, 0
        %v1396 = vcvt.s32.f32 %v1364
        %v1397 = vcvt.s32.f32 %v1365
        %v1398 = vcvt.s32.f32 %v1366
        %v1399 = vcvt.s32.f32 %v1367
        %v1400 = vcvt.s32.f32 %v1368
        %v1401 = vcvt.s32.f32 %v1369
        %v1402 = vcvt.s32.f32 %v1370
        %v1403 = vcvt.s32.f32 %v1371
        %v1404 = vcvt.s32.f32 %v1372
        %v1405 = vcvt.s32.f32 %v1373
        %v1406 = vcvt.s32.f32 %v1374
        %v1407 = vcvt.s32.f32 %v1375
        %v1408 = vcvt.s32.f32 %v1376
        %v1409 = vcvt.s32.f32 %v1377
        %v1410 = vcvt.s32.f32 %v1378
        %v1411 = vcvt.s32.f32 %v1379
        %v1412 = vcvt.s32.f32 %v1380
        %v1413 = vcvt.s32.f32 %v1381
        %v1414 = vcvt.s32.f32 %v1382
        %v1415 = vcvt.s32.f32 %v1383
        %v1416 = vcvt.s32.f32 %v1384
        %v1417 = vcvt.s32.f32 %v1385
        %v1418 = vcvt.s32.f32 %v1386
        %v1419 = vcvt.s32.f32 %v1387
        %v1420 = vcvt.s32.f32 %v1388
        %v1421 = vcvt.s32.f32 %v1389
        %v1422 = vcvt.s32.f32 %v1390
        %v1423 = vcvt.s32.f32 %v1391
        %v1424 = vcvt.s32.f32 %v1392
        %v1425 = vcvt.s32.f32 %v1393
        %v1426 = vcvt.s32.f32 %v1394
        %v1427 = vcvt.s32.f32 %v1395
        %v1428 = vld [vmem:[%s396] sm:$0xff]
        %v1429 = vld [vmem:[%s396 + $0x8] sm:$0xff]
        %v1430 = vld [vmem:[%s396 + $0x10] sm:$0xff]
        %v1431 = vld [vmem:[%s396 + $0x18] sm:$0xff]
        %v1432 = vld [vmem:[%s396 + $0x20] sm:$0xff]
        %v1433 = vld [vmem:[%s396 + $0x28] sm:$0xff]
        %v1434 = vld [vmem:[%s396 + $0x30] sm:$0xff]
        %v1435 = vld [vmem:[%s396 + $0x38] sm:$0xff]
        %v1436 = vld [vmem:[%s396 + $0x40] sm:$0xff]
        %v1437 = vld [vmem:[%s396 + $0x48] sm:$0xff]
        %v1438 = vld [vmem:[%s396 + $0x50] sm:$0xff]
        %v1439 = vld [vmem:[%s396 + $0x58] sm:$0xff]
        %v1440 = vld [vmem:[%s396 + $0x60] sm:$0xff]
        %v1441 = vld [vmem:[%s396 + $0x68] sm:$0xff]
        %v1442 = vld [vmem:[%s396 + $0x70] sm:$0xff]
        %v1443 = vld [vmem:[%s396 + $0x78] sm:$0xff]
        %1444 = vset.pattern.permute.xlu0 0
        %1445 = vperm.xlu0 %1444, %v1428
        %v1446 = vpop.permute.xlu0 %1445
        %1447 = vset.pattern.permute.xlu0 0
        %1448 = vperm.xlu0 %1447, %v1429
        %v1449 = vpop.permute.xlu0 %1448
        %1450 = vset.pattern.permute.xlu0 0
        %1451 = vperm.xlu0 %1450, %v1430
        %v1452 = vpop.permute.xlu0 %1451
        %1453 = vset.pattern.permute.xlu0 0
        %1454 = vperm.xlu0 %1453, %v1431
        %v1455 = vpop.permute.xlu0 %1454
        %1456 = vset.pattern.permute.xlu0 0
        %1457 = vperm.xlu0 %1456, %v1432
        %v1458 = vpop.permute.xlu0 %1457
        %1459 = vset.pattern.permute.xlu0 0
        %1460 = vperm.xlu0 %1459, %v1433
        %v1461 = vpop.permute.xlu0 %1460
        %1462 = vset.pattern.permute.xlu0 0
        %1463 = vperm.xlu0 %1462, %v1434
        %v1464 = vpop.permute.xlu0 %1463
        %1465 = vset.pattern.permute.xlu0 0
        %1466 = vperm.xlu0 %1465, %v1435
        %v1467 = vpop.permute.xlu0 %1466
        %1468 = vset.pattern.permute.xlu0 0
        %1469 = vperm.xlu0 %1468, %v1436
        %v1470 = vpop.permute.xlu0 %1469
        %1471 = vset.pattern.permute.xlu0 0
        %1472 = vperm.xlu0 %1471, %v1437
        %v1473 = vpop.permute.xlu0 %1472
        %1474 = vset.pattern.permute.xlu0 0
        %1475 = vperm.xlu0 %1474, %v1438
        %v1476 = vpop.permute.xlu0 %1475
        %1477 = vset.pattern.permute.xlu0 0
        %1478 = vperm.xlu0 %1477, %v1439
        %v1479 = vpop.permute.xlu0 %1478
        %1480 = vset.pattern.permute.xlu0 0
        %1481 = vperm.xlu0 %1480, %v1440
        %v1482 = vpop.permute.xlu0 %1481
        %1483 = vset.pattern.permute.xlu0 0
        %1484 = vperm.xlu0 %1483, %v1441
        %v1485 = vpop.permute.xlu0 %1484
        %1486 = vset.pattern.permute.xlu0 0
        %1487 = vperm.xlu0 %1486, %v1442
        %v1488 = vpop.permute.xlu0 %1487
        %1489 = vset.pattern.permute.xlu0 0
        %1490 = vperm.xlu0 %1489, %v1443
        %v1491 = vpop.permute.xlu0 %1490
        %vm1492 = vcmp.eq.s32.totalorder %v1446, %v427
        %vm1493 = vcmp.eq.s32.totalorder %v1449, %v427
        %vm1494 = vcmp.eq.s32.totalorder %v1452, %v427
        %vm1495 = vcmp.eq.s32.totalorder %v1455, %v427
        %vm1496 = vcmp.eq.s32.totalorder %v1458, %v427
        %vm1497 = vcmp.eq.s32.totalorder %v1461, %v427
        %vm1498 = vcmp.eq.s32.totalorder %v1464, %v427
        %vm1499 = vcmp.eq.s32.totalorder %v1467, %v427
        %vm1500 = vcmp.eq.s32.totalorder %v1470, %v427
        %vm1501 = vcmp.eq.s32.totalorder %v1473, %v427
        %vm1502 = vcmp.eq.s32.totalorder %v1476, %v427
        %vm1503 = vcmp.eq.s32.totalorder %v1479, %v427
        %vm1504 = vcmp.eq.s32.totalorder %v1482, %v427
        %vm1505 = vcmp.eq.s32.totalorder %v1485, %v427
        %vm1506 = vcmp.eq.s32.totalorder %v1488, %v427
        %vm1507 = vcmp.eq.s32.totalorder %v1491, %v427
        %v1508 = vsel %vm1492, 1, 0
        %v1509 = vsel %vm1493, 1, 0
        %v1510 = vsel %vm1494, 1, 0
        %v1511 = vsel %vm1495, 1, 0
        %v1512 = vsel %vm1496, 1, 0
        %v1513 = vsel %vm1497, 1, 0
        %v1514 = vsel %vm1498, 1, 0
        %v1515 = vsel %vm1499, 1, 0
        %v1516 = vsel %vm1500, 1, 0
        %v1517 = vsel %vm1501, 1, 0
        %v1518 = vsel %vm1502, 1, 0
        %v1519 = vsel %vm1503, 1, 0
        %v1520 = vsel %vm1504, 1, 0
        %v1521 = vsel %vm1505, 1, 0
        %v1522 = vsel %vm1506, 1, 0
        %v1523 = vsel %vm1507, 1, 0
        %v1524 = vcvt.s32.f32 %v1508
        %v1525 = vcvt.s32.f32 %v1509
        %v1526 = vcvt.s32.f32 %v1510
        %v1527 = vcvt.s32.f32 %v1511
        %v1528 = vcvt.s32.f32 %v1512
        %v1529 = vcvt.s32.f32 %v1513
        %v1530 = vcvt.s32.f32 %v1514
        %v1531 = vcvt.s32.f32 %v1515
        %v1532 = vcvt.s32.f32 %v1516
        %v1533 = vcvt.s32.f32 %v1517
        %v1534 = vcvt.s32.f32 %v1518
        %v1535 = vcvt.s32.f32 %v1519
        %v1536 = vcvt.s32.f32 %v1520
        %v1537 = vcvt.s32.f32 %v1521
        %v1538 = vcvt.s32.f32 %v1522
        %v1539 = vcvt.s32.f32 %v1523
        %v1541 = vsel %vm718, %v1524, 0
        %v1544 = vsel %vm718, %v1525, 0
        %v1547 = vsel %vm718, %v1526, 0
        %v1550 = vsel %vm718, %v1527, 0
        %v1553 = vsel %vm718, %v1528, 0
        %v1556 = vsel %vm718, %v1529, 0
        %v1559 = vsel %vm718, %v1530, 0
        %v1562 = vsel %vm718, %v1531, 0
        %v1565 = vsel %vm718, %v1532, 0
        %v1568 = vsel %vm718, %v1533, 0
        %v1571 = vsel %vm718, %v1534, 0
        %v1574 = vsel %vm718, %v1535, 0
        %v1577 = vsel %vm718, %v1536, 0
        %v1580 = vsel %vm718, %v1537, 0
        %v1583 = vsel %vm718, %v1538, 0
        %v1586 = vsel %vm718, %v1539, 0
        %1588 = vmatpush.msra.mxu0 0.0
        %1589 = vmatpush.msra.mxu0 0.0
        %1590 = vmatpush.msra.mxu0 0.0
        %1591 = vmatpush.msra.mxu0 0.0
        %1592 = vmatpush.msra.mxu0 0.0
        %1593 = vmatpush.msra.mxu0 0.0
        %1594 = vmatpush.msra.mxu0 0.0
        %1595 = vmatpush.msra.mxu0 0.0
        %1596 = vmatpush.msra.mxu0 0.0
        %1597 = vmatpush.msra.mxu0 0.0
        %1598 = vmatpush.msra.mxu0 0.0
        %1599 = vmatpush.msra.mxu0 0.0
        %1600 = vmatpush.msra.mxu0 0.0
        %1601 = vmatpush.msra.mxu0 0.0
        %1602 = vmatpush.msra.mxu0 0.0
        %1603 = vmatpush.msra.mxu0 %v717
        %1604 = vmatmul.f32.gmra.mxu0 %v1541
        %v1605 = vpop.f32.mrf.mxu0
        %v1606 = vadd.f32 0.0, %v1605
        %1607 = vmatmul.f32.gmra.mxu0 %v1544
        %v1608 = vpop.f32.mrf.mxu0
        %v1609 = vadd.f32 0.0, %v1608
        %1610 = vmatmul.f32.gmra.mxu0 %v1547
        %v1611 = vpop.f32.mrf.mxu0
        %v1612 = vadd.f32 0.0, %v1611
        %1613 = vmatmul.f32.gmra.mxu0 %v1550
        %v1614 = vpop.f32.mrf.mxu0
        %v1615 = vadd.f32 0.0, %v1614
        %1616 = vmatmul.f32.gmra.mxu0 %v1553
        %v1617 = vpop.f32.mrf.mxu0
        %v1618 = vadd.f32 0.0, %v1617
        %1619 = vmatmul.f32.gmra.mxu0 %v1556
        %v1620 = vpop.f32.mrf.mxu0
        %v1621 = vadd.f32 0.0, %v1620
        %1622 = vmatmul.f32.gmra.mxu0 %v1559
        %v1623 = vpop.f32.mrf.mxu0
        %v1624 = vadd.f32 0.0, %v1623
        %1625 = vmatmul.f32.gmra.mxu0 %v1562
        %v1626 = vpop.f32.mrf.mxu0
        %v1627 = vadd.f32 0.0, %v1626
        %1628 = vmatmul.f32.gmra.mxu0 %v1565
        %v1629 = vpop.f32.mrf.mxu0
        %v1630 = vadd.f32 0.0, %v1629
        %1631 = vmatmul.f32.gmra.mxu0 %v1568
        %v1632 = vpop.f32.mrf.mxu0
        %v1633 = vadd.f32 0.0, %v1632
        %1634 = vmatmul.f32.gmra.mxu0 %v1571
        %v1635 = vpop.f32.mrf.mxu0
        %v1636 = vadd.f32 0.0, %v1635
        %1637 = vmatmul.f32.gmra.mxu0 %v1574
        %v1638 = vpop.f32.mrf.mxu0
        %v1639 = vadd.f32 0.0, %v1638
        %1640 = vmatmul.f32.gmra.mxu0 %v1577
        %v1641 = vpop.f32.mrf.mxu0
        %v1642 = vadd.f32 0.0, %v1641
        %1643 = vmatmul.f32.gmra.mxu0 %v1580
        %v1644 = vpop.f32.mrf.mxu0
        %v1645 = vadd.f32 0.0, %v1644
        %1646 = vmatmul.f32.gmra.mxu0 %v1583
        %v1647 = vpop.f32.mrf.mxu0
        %v1648 = vadd.f32 0.0, %v1647
        %1649 = vmatmul.f32.gmra.mxu0 %v1586
        %v1650 = vpop.f32.mrf.mxu0
        %v1651 = vadd.f32 0.0, %v1650
        %1652 = vdwg.mxu0
        %1653 = vmatpush.msra.mxu0 %v588
        %1654 = vmatpush.msra.mxu0 %v587
        %1655 = vmatpush.msra.mxu0 %v586
        %1656 = vmatpush.msra.mxu0 %v585
        %1657 = vmatpush.msra.mxu0 %v584
        %1658 = vmatpush.msra.mxu0 %v583
        %1659 = vmatpush.msra.mxu0 %v582
        %1660 = vmatpush.msra.mxu0 %v581
        %1661 = vmatpush.msra.mxu0 %v580
        %1662 = vmatpush.msra.mxu0 %v579
        %1663 = vmatpush.msra.mxu0 %v578
        %1664 = vmatpush.msra.mxu0 %v577
        %1665 = vmatpush.msra.mxu0 %v576
        %1666 = vmatpush.msra.mxu0 %v575
        %1667 = vmatpush.msra.mxu0 %v574
        %1668 = vmatpush.msra.mxu0 %v573
        %1669 = vmatmul.f32.gmra.mxu0 %v1396
        %v1670 = vpop.f32.mrf.mxu0
        %v1671 = vadd.f32 %v1606, %v1670
        %1672 = vmatmul.f32.gmra.mxu0 %v1398
        %v1673 = vpop.f32.mrf.mxu0
        %v1674 = vadd.f32 %v1609, %v1673
        %1675 = vmatmul.f32.gmra.mxu0 %v1400
        %v1676 = vpop.f32.mrf.mxu0
        %v1677 = vadd.f32 %v1612, %v1676
        %1678 = vmatmul.f32.gmra.mxu0 %v1402
        %v1679 = vpop.f32.mrf.mxu0
        %v1680 = vadd.f32 %v1615, %v1679
        %1681 = vmatmul.f32.gmra.mxu0 %v1404
        %v1682 = vpop.f32.mrf.mxu0
        %v1683 = vadd.f32 %v1618, %v1682
        %1684 = vmatmul.f32.gmra.mxu0 %v1406
        %v1685 = vpop.f32.mrf.mxu0
        %v1686 = vadd.f32 %v1621, %v1685
        %1687 = vmatmul.f32.gmra.mxu0 %v1408
        %v1688 = vpop.f32.mrf.mxu0
        %v1689 = vadd.f32 %v1624, %v1688
        %1690 = vmatmul.f32.gmra.mxu0 %v1410
        %v1691 = vpop.f32.mrf.mxu0
        %v1692 = vadd.f32 %v1627, %v1691
        %1693 = vmatmul.f32.gmra.mxu0 %v1412
        %v1694 = vpop.f32.mrf.mxu0
        %v1695 = vadd.f32 %v1630, %v1694
        %1696 = vmatmul.f32.gmra.mxu0 %v1414
        %v1697 = vpop.f32.mrf.mxu0
        %v1698 = vadd.f32 %v1633, %v1697
        %1699 = vmatmul.f32.gmra.mxu0 %v1416
        %v1700 = vpop.f32.mrf.mxu0
        %v1701 = vadd.f32 %v1636, %v1700
        %1702 = vmatmul.f32.gmra.mxu0 %v1418
        %v1703 = vpop.f32.mrf.mxu0
        %v1704 = vadd.f32 %v1639, %v1703
        %1705 = vmatmul.f32.gmra.mxu0 %v1420
        %v1706 = vpop.f32.mrf.mxu0
        %v1707 = vadd.f32 %v1642, %v1706
        %1708 = vmatmul.f32.gmra.mxu0 %v1422
        %v1709 = vpop.f32.mrf.mxu0
        %v1710 = vadd.f32 %v1645, %v1709
        %1711 = vmatmul.f32.gmra.mxu0 %v1424
        %v1712 = vpop.f32.mrf.mxu0
        %v1713 = vadd.f32 %v1648, %v1712
        %1714 = vmatmul.f32.gmra.mxu0 %v1426
        %v1715 = vpop.f32.mrf.mxu0
        %v1716 = vadd.f32 %v1651, %v1715
        %1717 = vdwg.mxu0
        %1718 = vmatpush.msra.mxu0 %v604
        %1719 = vmatpush.msra.mxu0 %v603
        %1720 = vmatpush.msra.mxu0 %v602
        %1721 = vmatpush.msra.mxu0 %v601
        %1722 = vmatpush.msra.mxu0 %v600
        %1723 = vmatpush.msra.mxu0 %v599
        %1724 = vmatpush.msra.mxu0 %v598
        %1725 = vmatpush.msra.mxu0 %v597
        %1726 = vmatpush.msra.mxu0 %v596
        %1727 = vmatpush.msra.mxu0 %v595
        %1728 = vmatpush.msra.mxu0 %v594
        %1729 = vmatpush.msra.mxu0 %v593
        %1730 = vmatpush.msra.mxu0 %v592
        %1731 = vmatpush.msra.mxu0 %v591
        %1732 = vmatpush.msra.mxu0 %v590
        %1733 = vmatpush.msra.mxu0 %v589
        %1734 = vmatmul.f32.gmra.mxu0 %v1397
        %v1735 = vpop.f32.mrf.mxu0
        %v1736 = vadd.f32 %v1671, %v1735
        %1737 = vmatmul.f32.gmra.mxu0 %v1399
        %v1738 = vpop.f32.mrf.mxu0
        %v1739 = vadd.f32 %v1674, %v1738
        %1740 = vmatmul.f32.gmra.mxu0 %v1401
        %v1741 = vpop.f32.mrf.mxu0
        %v1742 = vadd.f32 %v1677, %v1741
        %1743 = vmatmul.f32.gmra.mxu0 %v1403
        %v1744 = vpop.f32.mrf.mxu0
        %v1745 = vadd.f32 %v1680, %v1744
        %1746 = vmatmul.f32.gmra.mxu0 %v1405
        %v1747 = vpop.f32.mrf.mxu0
        %v1748 = vadd.f32 %v1683, %v1747
        %1749 = vmatmul.f32.gmra.mxu0 %v1407
        %v1750 = vpop.f32.mrf.mxu0
        %v1751 = vadd.f32 %v1686, %v1750
        %1752 = vmatmul.f32.gmra.mxu0 %v1409
        %v1753 = vpop.f32.mrf.mxu0
        %v1754 = vadd.f32 %v1689, %v1753
        %1755 = vmatmul.f32.gmra.mxu0 %v1411
        %v1756 = vpop.f32.mrf.mxu0
        %v1757 = vadd.f32 %v1692, %v1756
        %1758 = vmatmul.f32.gmra.mxu0 %v1413
        %v1759 = vpop.f32.mrf.mxu0
        %v1760 = vadd.f32 %v1695, %v1759
        %1761 = vmatmul.f32.gmra.mxu0 %v1415
        %v1762 = vpop.f32.mrf.mxu0
        %v1763 = vadd.f32 %v1698, %v1762
        %1764 = vmatmul.f32.gmra.mxu0 %v1417
        %v1765 = vpop.f32.mrf.mxu0
        %v1766 = vadd.f32 %v1701, %v1765
        %1767 = vmatmul.f32.gmra.mxu0 %v1419
        %v1768 = vpop.f32.mrf.mxu0
        %v1769 = vadd.f32 %v1704, %v1768
        %1770 = vmatmul.f32.gmra.mxu0 %v1421
        %v1771 = vpop.f32.mrf.mxu0
        %v1772 = vadd.f32 %v1707, %v1771
        %1773 = vmatmul.f32.gmra.mxu0 %v1423
        %v1774 = vpop.f32.mrf.mxu0
        %v1775 = vadd.f32 %v1710, %v1774
        %1776 = vmatmul.f32.gmra.mxu0 %v1425
        %v1777 = vpop.f32.mrf.mxu0
        %v1778 = vadd.f32 %v1713, %v1777
        %1779 = vmatmul.f32.gmra.mxu0 %v1427
        %v1780 = vpop.f32.mrf.mxu0
        %v1781 = vadd.f32 %v1716, %v1780
        %1782 = vdwg.mxu0
        %v1783 = vld [vmem:[%s402] sm:$0xff]
        %v1784 = vld [vmem:[%s402 + $0x8] sm:$0xff]
        %v1785 = vld [vmem:[%s402 + $0x10] sm:$0xff]
        %v1786 = vld [vmem:[%s402 + $0x18] sm:$0xff]
        %v1787 = vld [vmem:[%s402 + $0x20] sm:$0xff]
        %v1788 = vld [vmem:[%s402 + $0x28] sm:$0xff]
        %v1789 = vld [vmem:[%s402 + $0x30] sm:$0xff]
        %v1790 = vld [vmem:[%s402 + $0x38] sm:$0xff]
        %v1791 = vld [vmem:[%s402 + $0x40] sm:$0xff]
        %v1792 = vld [vmem:[%s402 + $0x48] sm:$0xff]
        %v1793 = vld [vmem:[%s402 + $0x50] sm:$0xff]
        %v1794 = vld [vmem:[%s402 + $0x58] sm:$0xff]
        %v1795 = vld [vmem:[%s402 + $0x60] sm:$0xff]
        %v1796 = vld [vmem:[%s402 + $0x68] sm:$0xff]
        %v1797 = vld [vmem:[%s402 + $0x70] sm:$0xff]
        %v1798 = vld [vmem:[%s402 + $0x78] sm:$0xff]
        %1799 = vset.pattern.permute.xlu0 0
        %1800 = vperm.xlu0 %1799, %v1783
        %v1801 = vpop.permute.xlu0 %1800
        %1802 = vset.pattern.permute.xlu0 0
        %1803 = vperm.xlu0 %1802, %v1784
        %v1804 = vpop.permute.xlu0 %1803
        %1805 = vset.pattern.permute.xlu0 0
        %1806 = vperm.xlu0 %1805, %v1785
        %v1807 = vpop.permute.xlu0 %1806
        %1808 = vset.pattern.permute.xlu0 0
        %1809 = vperm.xlu0 %1808, %v1786
        %v1810 = vpop.permute.xlu0 %1809
        %1811 = vset.pattern.permute.xlu0 0
        %1812 = vperm.xlu0 %1811, %v1787
        %v1813 = vpop.permute.xlu0 %1812
        %1814 = vset.pattern.permute.xlu0 0
        %1815 = vperm.xlu0 %1814, %v1788
        %v1816 = vpop.permute.xlu0 %1815
        %1817 = vset.pattern.permute.xlu0 0
        %1818 = vperm.xlu0 %1817, %v1789
        %v1819 = vpop.permute.xlu0 %1818
        %1820 = vset.pattern.permute.xlu0 0
        %1821 = vperm.xlu0 %1820, %v1790
        %v1822 = vpop.permute.xlu0 %1821
        %1823 = vset.pattern.permute.xlu0 0
        %1824 = vperm.xlu0 %1823, %v1791
        %v1825 = vpop.permute.xlu0 %1824
        %1826 = vset.pattern.permute.xlu0 0
        %1827 = vperm.xlu0 %1826, %v1792
        %v1828 = vpop.permute.xlu0 %1827
        %1829 = vset.pattern.permute.xlu0 0
        %1830 = vperm.xlu0 %1829, %v1793
        %v1831 = vpop.permute.xlu0 %1830
        %1832 = vset.pattern.permute.xlu0 0
        %1833 = vperm.xlu0 %1832, %v1794
        %v1834 = vpop.permute.xlu0 %1833
        %1835 = vset.pattern.permute.xlu0 0
        %1836 = vperm.xlu0 %1835, %v1795
        %v1837 = vpop.permute.xlu0 %1836
        %1838 = vset.pattern.permute.xlu0 0
        %1839 = vperm.xlu0 %1838, %v1796
        %v1840 = vpop.permute.xlu0 %1839
        %1841 = vset.pattern.permute.xlu0 0
        %1842 = vperm.xlu0 %1841, %v1797
        %v1843 = vpop.permute.xlu0 %1842
        %1844 = vset.pattern.permute.xlu0 0
        %1845 = vperm.xlu0 %1844, %v1798
        %v1846 = vpop.permute.xlu0 %1845
        %vm1847 = vcmp.eq.s32.totalorder %v1801, %v427
        %vm1848 = vcmp.eq.s32.totalorder %v1801, %v428
        %vm1849 = vcmp.eq.s32.totalorder %v1804, %v427
        %vm1850 = vcmp.eq.s32.totalorder %v1804, %v428
        %vm1851 = vcmp.eq.s32.totalorder %v1807, %v427
        %vm1852 = vcmp.eq.s32.totalorder %v1807, %v428
        %vm1853 = vcmp.eq.s32.totalorder %v1810, %v427
        %vm1854 = vcmp.eq.s32.totalorder %v1810, %v428
        %vm1855 = vcmp.eq.s32.totalorder %v1813, %v427
        %vm1856 = vcmp.eq.s32.totalorder %v1813, %v428
        %vm1857 = vcmp.eq.s32.totalorder %v1816, %v427
        %vm1858 = vcmp.eq.s32.totalorder %v1816, %v428
        %vm1859 = vcmp.eq.s32.totalorder %v1819, %v427
        %vm1860 = vcmp.eq.s32.totalorder %v1819, %v428
        %vm1861 = vcmp.eq.s32.totalorder %v1822, %v427
        %vm1862 = vcmp.eq.s32.totalorder %v1822, %v428
        %vm1863 = vcmp.eq.s32.totalorder %v1825, %v427
        %vm1864 = vcmp.eq.s32.totalorder %v1825, %v428
        %vm1865 = vcmp.eq.s32.totalorder %v1828, %v427
        %vm1866 = vcmp.eq.s32.totalorder %v1828, %v428
        %vm1867 = vcmp.eq.s32.totalorder %v1831, %v427
        %vm1868 = vcmp.eq.s32.totalorder %v1831, %v428
        %vm1869 = vcmp.eq.s32.totalorder %v1834, %v427
        %vm1870 = vcmp.eq.s32.totalorder %v1834, %v428
        %vm1871 = vcmp.eq.s32.totalorder %v1837, %v427
        %vm1872 = vcmp.eq.s32.totalorder %v1837, %v428
        %vm1873 = vcmp.eq.s32.totalorder %v1840, %v427
        %vm1874 = vcmp.eq.s32.totalorder %v1840, %v428
        %vm1875 = vcmp.eq.s32.totalorder %v1843, %v427
        %vm1876 = vcmp.eq.s32.totalorder %v1843, %v428
        %vm1877 = vcmp.eq.s32.totalorder %v1846, %v427
        %vm1878 = vcmp.eq.s32.totalorder %v1846, %v428
        %v1879 = vsel %vm1847, 1, 0
        %v1880 = vsel %vm1848, 1, 0
        %v1881 = vsel %vm1849, 1, 0
        %v1882 = vsel %vm1850, 1, 0
        %v1883 = vsel %vm1851, 1, 0
        %v1884 = vsel %vm1852, 1, 0
        %v1885 = vsel %vm1853, 1, 0
        %v1886 = vsel %vm1854, 1, 0
        %v1887 = vsel %vm1855, 1, 0
        %v1888 = vsel %vm1856, 1, 0
        %v1889 = vsel %vm1857, 1, 0
        %v1890 = vsel %vm1858, 1, 0
        %v1891 = vsel %vm1859, 1, 0
        %v1892 = vsel %vm1860, 1, 0
        %v1893 = vsel %vm1861, 1, 0
        %v1894 = vsel %vm1862, 1, 0
        %v1895 = vsel %vm1863, 1, 0
        %v1896 = vsel %vm1864, 1, 0
        %v1897 = vsel %vm1865, 1, 0
        %v1898 = vsel %vm1866, 1, 0
        %v1899 = vsel %vm1867, 1, 0
        %v1900 = vsel %vm1868, 1, 0
        %v1901 = vsel %vm1869, 1, 0
        %v1902 = vsel %vm1870, 1, 0
        %v1903 = vsel %vm1871, 1, 0
        %v1904 = vsel %vm1872, 1, 0
        %v1905 = vsel %vm1873, 1, 0
        %v1906 = vsel %vm1874, 1, 0
        %v1907 = vsel %vm1875, 1, 0
        %v1908 = vsel %vm1876, 1, 0
        %v1909 = vsel %vm1877, 1, 0
        %v1910 = vsel %vm1878, 1, 0
        %v1911 = vcvt.s32.f32 %v1879
        %v1912 = vcvt.s32.f32 %v1880
        %v1913 = vcvt.s32.f32 %v1881
        %v1914 = vcvt.s32.f32 %v1882
        %v1915 = vcvt.s32.f32 %v1883
        %v1916 = vcvt.s32.f32 %v1884
        %v1917 = vcvt.s32.f32 %v1885
        %v1918 = vcvt.s32.f32 %v1886
        %v1919 = vcvt.s32.f32 %v1887
        %v1920 = vcvt.s32.f32 %v1888
        %v1921 = vcvt.s32.f32 %v1889
        %v1922 = vcvt.s32.f32 %v1890
        %v1923 = vcvt.s32.f32 %v1891
        %v1924 = vcvt.s32.f32 %v1892
        %v1925 = vcvt.s32.f32 %v1893
        %v1926 = vcvt.s32.f32 %v1894
        %v1927 = vcvt.s32.f32 %v1895
        %v1928 = vcvt.s32.f32 %v1896
        %v1929 = vcvt.s32.f32 %v1897
        %v1930 = vcvt.s32.f32 %v1898
        %v1931 = vcvt.s32.f32 %v1899
        %v1932 = vcvt.s32.f32 %v1900
        %v1933 = vcvt.s32.f32 %v1901
        %v1934 = vcvt.s32.f32 %v1902
        %v1935 = vcvt.s32.f32 %v1903
        %v1936 = vcvt.s32.f32 %v1904
        %v1937 = vcvt.s32.f32 %v1905
        %v1938 = vcvt.s32.f32 %v1906
        %v1939 = vcvt.s32.f32 %v1907
        %v1940 = vcvt.s32.f32 %v1908
        %v1941 = vcvt.s32.f32 %v1909
        %v1942 = vcvt.s32.f32 %v1910
        %1943 = vmatpush.msra.mxu0 %v588
        %1944 = vmatpush.msra.mxu0 %v587
        %1945 = vmatpush.msra.mxu0 %v586
        %1946 = vmatpush.msra.mxu0 %v585
        %1947 = vmatpush.msra.mxu0 %v584
        %1948 = vmatpush.msra.mxu0 %v583
        %1949 = vmatpush.msra.mxu0 %v582
        %1950 = vmatpush.msra.mxu0 %v581
        %1951 = vmatpush.msra.mxu0 %v580
        %1952 = vmatpush.msra.mxu0 %v579
        %1953 = vmatpush.msra.mxu0 %v578
        %1954 = vmatpush.msra.mxu0 %v577
        %1955 = vmatpush.msra.mxu0 %v576
        %1956 = vmatpush.msra.mxu0 %v575
        %1957 = vmatpush.msra.mxu0 %v574
        %1958 = vmatpush.msra.mxu0 %v573
        %1959 = vmatmul.f32.gmra.mxu0 %v1911
        %v1960 = vpop.f32.mrf.mxu0
        %v1961 = vadd.f32 0.0, %v1960
        %1962 = vmatmul.f32.gmra.mxu0 %v1913
        %v1963 = vpop.f32.mrf.mxu0
        %v1964 = vadd.f32 0.0, %v1963
        %1965 = vmatmul.f32.gmra.mxu0 %v1915
        %v1966 = vpop.f32.mrf.mxu0
        %v1967 = vadd.f32 0.0, %v1966
        %1968 = vmatmul.f32.gmra.mxu0 %v1917
        %v1969 = vpop.f32.mrf.mxu0
        %v1970 = vadd.f32 0.0, %v1969
        %1971 = vmatmul.f32.gmra.mxu0 %v1919
        %v1972 = vpop.f32.mrf.mxu0
        %v1973 = vadd.f32 0.0, %v1972
        %1974 = vmatmul.f32.gmra.mxu0 %v1921
        %v1975 = vpop.f32.mrf.mxu0
        %v1976 = vadd.f32 0.0, %v1975
        %1977 = vmatmul.f32.gmra.mxu0 %v1923
        %v1978 = vpop.f32.mrf.mxu0
        %v1979 = vadd.f32 0.0, %v1978
        %1980 = vmatmul.f32.gmra.mxu0 %v1925
        %v1981 = vpop.f32.mrf.mxu0
        %v1982 = vadd.f32 0.0, %v1981
        %1983 = vmatmul.f32.gmra.mxu0 %v1927
        %v1984 = vpop.f32.mrf.mxu0
        %v1985 = vadd.f32 0.0, %v1984
        %1986 = vmatmul.f32.gmra.mxu0 %v1929
        %v1987 = vpop.f32.mrf.mxu0
        %v1988 = vadd.f32 0.0, %v1987
        %1989 = vmatmul.f32.gmra.mxu0 %v1931
        %v1990 = vpop.f32.mrf.mxu0
        %v1991 = vadd.f32 0.0, %v1990
        %1992 = vmatmul.f32.gmra.mxu0 %v1933
        %v1993 = vpop.f32.mrf.mxu0
        %v1994 = vadd.f32 0.0, %v1993
        %1995 = vmatmul.f32.gmra.mxu0 %v1935
        %v1996 = vpop.f32.mrf.mxu0
        %v1997 = vadd.f32 0.0, %v1996
        %1998 = vmatmul.f32.gmra.mxu0 %v1937
        %v1999 = vpop.f32.mrf.mxu0
        %v2000 = vadd.f32 0.0, %v1999
        %2001 = vmatmul.f32.gmra.mxu0 %v1939
        %v2002 = vpop.f32.mrf.mxu0
        %v2003 = vadd.f32 0.0, %v2002
        %2004 = vmatmul.f32.gmra.mxu0 %v1941
        %v2005 = vpop.f32.mrf.mxu0
        %v2006 = vadd.f32 0.0, %v2005
        %2007 = vdwg.mxu0
        %2008 = vmatpush.msra.mxu0 %v604
        %2009 = vmatpush.msra.mxu0 %v603
        %2010 = vmatpush.msra.mxu0 %v602
        %2011 = vmatpush.msra.mxu0 %v601
        %2012 = vmatpush.msra.mxu0 %v600
        %2013 = vmatpush.msra.mxu0 %v599
        %2014 = vmatpush.msra.mxu0 %v598
        %2015 = vmatpush.msra.mxu0 %v597
        %2016 = vmatpush.msra.mxu0 %v596
        %2017 = vmatpush.msra.mxu0 %v595
        %2018 = vmatpush.msra.mxu0 %v594
        %2019 = vmatpush.msra.mxu0 %v593
        %2020 = vmatpush.msra.mxu0 %v592
        %2021 = vmatpush.msra.mxu0 %v591
        %2022 = vmatpush.msra.mxu0 %v590
        %2023 = vmatpush.msra.mxu0 %v589
        %2024 = vmatmul.f32.gmra.mxu0 %v1912
        %v2025 = vpop.f32.mrf.mxu0
        %v2026 = vadd.f32 %v1961, %v2025
        %2027 = vmatmul.f32.gmra.mxu0 %v1914
        %v2028 = vpop.f32.mrf.mxu0
        %v2029 = vadd.f32 %v1964, %v2028
        %2030 = vmatmul.f32.gmra.mxu0 %v1916
        %v2031 = vpop.f32.mrf.mxu0
        %v2032 = vadd.f32 %v1967, %v2031
        %2033 = vmatmul.f32.gmra.mxu0 %v1918
        %v2034 = vpop.f32.mrf.mxu0
        %v2035 = vadd.f32 %v1970, %v2034
        %2036 = vmatmul.f32.gmra.mxu0 %v1920
        %v2037 = vpop.f32.mrf.mxu0
        %v2038 = vadd.f32 %v1973, %v2037
        %2039 = vmatmul.f32.gmra.mxu0 %v1922
        %v2040 = vpop.f32.mrf.mxu0
        %v2041 = vadd.f32 %v1976, %v2040
        %2042 = vmatmul.f32.gmra.mxu0 %v1924
        %v2043 = vpop.f32.mrf.mxu0
        %v2044 = vadd.f32 %v1979, %v2043
        %2045 = vmatmul.f32.gmra.mxu0 %v1926
        %v2046 = vpop.f32.mrf.mxu0
        %v2047 = vadd.f32 %v1982, %v2046
        %2048 = vmatmul.f32.gmra.mxu0 %v1928
        %v2049 = vpop.f32.mrf.mxu0
        %v2050 = vadd.f32 %v1985, %v2049
        %2051 = vmatmul.f32.gmra.mxu0 %v1930
        %v2052 = vpop.f32.mrf.mxu0
        %v2053 = vadd.f32 %v1988, %v2052
        %2054 = vmatmul.f32.gmra.mxu0 %v1932
        %v2055 = vpop.f32.mrf.mxu0
        %v2056 = vadd.f32 %v1991, %v2055
        %2057 = vmatmul.f32.gmra.mxu0 %v1934
        %v2058 = vpop.f32.mrf.mxu0
        %v2059 = vadd.f32 %v1994, %v2058
        %2060 = vmatmul.f32.gmra.mxu0 %v1936
        %v2061 = vpop.f32.mrf.mxu0
        %v2062 = vadd.f32 %v1997, %v2061
        %2063 = vmatmul.f32.gmra.mxu0 %v1938
        %v2064 = vpop.f32.mrf.mxu0
        %v2065 = vadd.f32 %v2000, %v2064
        %2066 = vmatmul.f32.gmra.mxu0 %v1940
        %v2067 = vpop.f32.mrf.mxu0
        %v2068 = vadd.f32 %v2003, %v2067
        %2069 = vmatmul.f32.gmra.mxu0 %v1942
        %v2070 = vpop.f32.mrf.mxu0
        %v2071 = vadd.f32 %v2006, %v2070
        %2072 = vdwg.mxu0
        %v2073 = vsub.f32 %v1736, %v2026
        %v2074 = vsub.f32 %v1739, %v2029
        %v2075 = vsub.f32 %v1742, %v2032
        %v2076 = vsub.f32 %v1745, %v2035
        %v2077 = vsub.f32 %v1748, %v2038
        %v2078 = vsub.f32 %v1751, %v2041
        %v2079 = vsub.f32 %v1754, %v2044
        %v2080 = vsub.f32 %v1757, %v2047
        %v2081 = vsub.f32 %v1760, %v2050
        %v2082 = vsub.f32 %v1763, %v2053
        %v2083 = vsub.f32 %v1766, %v2056
        %v2084 = vsub.f32 %v1769, %v2059
        %v2085 = vsub.f32 %v1772, %v2062
        %v2086 = vsub.f32 %v1775, %v2065
        %v2087 = vsub.f32 %v1778, %v2068
        %v2088 = vsub.f32 %v1781, %v2071
        %v2089 = vmul.f32 %v1252, %v1252
        %v2090 = vmul.f32 %v1253, %v1253
        %v2091 = vmul.f32 %v1254, %v1254
        %v2092 = vmul.f32 %v1255, %v1255
        %v2093 = vmul.f32 %v1256, %v1256
        %v2094 = vmul.f32 %v1257, %v1257
        %v2095 = vmul.f32 %v1258, %v1258
        %v2096 = vmul.f32 %v1259, %v1259
        %v2097 = vmul.f32 %v1260, %v1260
        %v2098 = vmul.f32 %v1261, %v1261
        %v2099 = vmul.f32 %v1262, %v1262
        %v2100 = vmul.f32 %v1263, %v1263
        %v2101 = vmul.f32 %v1264, %v1264
        %v2102 = vmul.f32 %v1265, %v1265
        %v2103 = vmul.f32 %v1266, %v1266
        %v2104 = vmul.f32 %v1267, %v1267
        %2105 = vadd.xlane.f32.xlu0 %v2089
        %v2106 = vpop.xlane.xlu0 %2105
        %2107 = vadd.xlane.f32.xlu0 %v2090
        %v2108 = vpop.xlane.xlu0 %2107
        %2109 = vadd.xlane.f32.xlu0 %v2091
        %v2110 = vpop.xlane.xlu0 %2109
        %2111 = vadd.xlane.f32.xlu0 %v2092
        %v2112 = vpop.xlane.xlu0 %2111
        %2113 = vadd.xlane.f32.xlu0 %v2093
        %v2114 = vpop.xlane.xlu0 %2113
        %2115 = vadd.xlane.f32.xlu0 %v2094
        %v2116 = vpop.xlane.xlu0 %2115
        %2117 = vadd.xlane.f32.xlu0 %v2095
        %v2118 = vpop.xlane.xlu0 %2117
        %2119 = vadd.xlane.f32.xlu0 %v2096
        %v2120 = vpop.xlane.xlu0 %2119
        %2121 = vadd.xlane.f32.xlu0 %v2097
        %v2122 = vpop.xlane.xlu0 %2121
        %2123 = vadd.xlane.f32.xlu0 %v2098
        %v2124 = vpop.xlane.xlu0 %2123
        %2125 = vadd.xlane.f32.xlu0 %v2099
        %v2126 = vpop.xlane.xlu0 %2125
        %2127 = vadd.xlane.f32.xlu0 %v2100
        %v2128 = vpop.xlane.xlu0 %2127
        %2129 = vadd.xlane.f32.xlu0 %v2101
        %v2130 = vpop.xlane.xlu0 %2129
        %2131 = vadd.xlane.f32.xlu0 %v2102
        %v2132 = vpop.xlane.xlu0 %2131
        %2133 = vadd.xlane.f32.xlu0 %v2103
        %v2134 = vpop.xlane.xlu0 %2133
        %2135 = vadd.xlane.f32.xlu0 %v2104
        %v2136 = vpop.xlane.xlu0 %2135
        %v2137 = vrsqrt.pop %v2106
        %v2138 = vmul.f32 %v2137, %v2106
        %v2139 = vmul.f32 %v2138, %v2137
        %v2140 = vmul.f32 0.5, %v2139
        %v2141 = vsub.f32 1.5, %v2140
        %v2142 = vmul.f32 %v2137, %v2141
        %v2143 = vmul.f32 %v2106, %v2142
        %vm2144 = vcmp.eq.f32.partialorder %v2106, inf
        %v2145 = vsel %vm2144, %v2106, %v2143
        %vm2146 = vcmp.eq.f32.partialorder %v2106, 0.0
        %v2147 = vand.u32 %v2106, 2147483648
        %v2148 = vsel %vm2146, %v2147, %v2145
        %v2149 = vrsqrt.pop %v2108
        %v2150 = vmul.f32 %v2149, %v2108
        %v2151 = vmul.f32 %v2150, %v2149
        %v2152 = vmul.f32 0.5, %v2151
        %v2153 = vsub.f32 1.5, %v2152
        %v2154 = vmul.f32 %v2149, %v2153
        %v2155 = vmul.f32 %v2108, %v2154
        %vm2156 = vcmp.eq.f32.partialorder %v2108, inf
        %v2157 = vsel %vm2156, %v2108, %v2155
        %vm2158 = vcmp.eq.f32.partialorder %v2108, 0.0
        %v2159 = vand.u32 %v2108, 2147483648
        %v2160 = vsel %vm2158, %v2159, %v2157
        %v2161 = vrsqrt.pop %v2110
        %v2162 = vmul.f32 %v2161, %v2110
        %v2163 = vmul.f32 %v2162, %v2161
        %v2164 = vmul.f32 0.5, %v2163
        %v2165 = vsub.f32 1.5, %v2164
        %v2166 = vmul.f32 %v2161, %v2165
        %v2167 = vmul.f32 %v2110, %v2166
        %vm2168 = vcmp.eq.f32.partialorder %v2110, inf
        %v2169 = vsel %vm2168, %v2110, %v2167
        %vm2170 = vcmp.eq.f32.partialorder %v2110, 0.0
        %v2171 = vand.u32 %v2110, 2147483648
        %v2172 = vsel %vm2170, %v2171, %v2169
        %v2173 = vrsqrt.pop %v2112
        %v2174 = vmul.f32 %v2173, %v2112
        %v2175 = vmul.f32 %v2174, %v2173
        %v2176 = vmul.f32 0.5, %v2175
        %v2177 = vsub.f32 1.5, %v2176
        %v2178 = vmul.f32 %v2173, %v2177
        %v2179 = vmul.f32 %v2112, %v2178
        %vm2180 = vcmp.eq.f32.partialorder %v2112, inf
        %v2181 = vsel %vm2180, %v2112, %v2179
        %vm2182 = vcmp.eq.f32.partialorder %v2112, 0.0
        %v2183 = vand.u32 %v2112, 2147483648
        %v2184 = vsel %vm2182, %v2183, %v2181
        %v2185 = vrsqrt.pop %v2114
        %v2186 = vmul.f32 %v2185, %v2114
        %v2187 = vmul.f32 %v2186, %v2185
        %v2188 = vmul.f32 0.5, %v2187
        %v2189 = vsub.f32 1.5, %v2188
        %v2190 = vmul.f32 %v2185, %v2189
        %v2191 = vmul.f32 %v2114, %v2190
        %vm2192 = vcmp.eq.f32.partialorder %v2114, inf
        %v2193 = vsel %vm2192, %v2114, %v2191
        %vm2194 = vcmp.eq.f32.partialorder %v2114, 0.0
        %v2195 = vand.u32 %v2114, 2147483648
        %v2196 = vsel %vm2194, %v2195, %v2193
        %v2197 = vrsqrt.pop %v2116
        %v2198 = vmul.f32 %v2197, %v2116
        %v2199 = vmul.f32 %v2198, %v2197
        %v2200 = vmul.f32 0.5, %v2199
        %v2201 = vsub.f32 1.5, %v2200
        %v2202 = vmul.f32 %v2197, %v2201
        %v2203 = vmul.f32 %v2116, %v2202
        %vm2204 = vcmp.eq.f32.partialorder %v2116, inf
        %v2205 = vsel %vm2204, %v2116, %v2203
        %vm2206 = vcmp.eq.f32.partialorder %v2116, 0.0
        %v2207 = vand.u32 %v2116, 2147483648
        %v2208 = vsel %vm2206, %v2207, %v2205
        %v2209 = vrsqrt.pop %v2118
        %v2210 = vmul.f32 %v2209, %v2118
        %v2211 = vmul.f32 %v2210, %v2209
        %v2212 = vmul.f32 0.5, %v2211
        %v2213 = vsub.f32 1.5, %v2212
        %v2214 = vmul.f32 %v2209, %v2213
        %v2215 = vmul.f32 %v2118, %v2214
        %vm2216 = vcmp.eq.f32.partialorder %v2118, inf
        %v2217 = vsel %vm2216, %v2118, %v2215
        %vm2218 = vcmp.eq.f32.partialorder %v2118, 0.0
        %v2219 = vand.u32 %v2118, 2147483648
        %v2220 = vsel %vm2218, %v2219, %v2217
        %v2221 = vrsqrt.pop %v2120
        %v2222 = vmul.f32 %v2221, %v2120
        %v2223 = vmul.f32 %v2222, %v2221
        %v2224 = vmul.f32 0.5, %v2223
        %v2225 = vsub.f32 1.5, %v2224
        %v2226 = vmul.f32 %v2221, %v2225
        %v2227 = vmul.f32 %v2120, %v2226
        %vm2228 = vcmp.eq.f32.partialorder %v2120, inf
        %v2229 = vsel %vm2228, %v2120, %v2227
        %vm2230 = vcmp.eq.f32.partialorder %v2120, 0.0
        %v2231 = vand.u32 %v2120, 2147483648
        %v2232 = vsel %vm2230, %v2231, %v2229
        %v2233 = vrsqrt.pop %v2122
        %v2234 = vmul.f32 %v2233, %v2122
        %v2235 = vmul.f32 %v2234, %v2233
        %v2236 = vmul.f32 0.5, %v2235
        %v2237 = vsub.f32 1.5, %v2236
        %v2238 = vmul.f32 %v2233, %v2237
        %v2239 = vmul.f32 %v2122, %v2238
        %vm2240 = vcmp.eq.f32.partialorder %v2122, inf
        %v2241 = vsel %vm2240, %v2122, %v2239
        %vm2242 = vcmp.eq.f32.partialorder %v2122, 0.0
        %v2243 = vand.u32 %v2122, 2147483648
        %v2244 = vsel %vm2242, %v2243, %v2241
        %v2245 = vrsqrt.pop %v2124
        %v2246 = vmul.f32 %v2245, %v2124
        %v2247 = vmul.f32 %v2246, %v2245
        %v2248 = vmul.f32 0.5, %v2247
        %v2249 = vsub.f32 1.5, %v2248
        %v2250 = vmul.f32 %v2245, %v2249
        %v2251 = vmul.f32 %v2124, %v2250
        %vm2252 = vcmp.eq.f32.partialorder %v2124, inf
        %v2253 = vsel %vm2252, %v2124, %v2251
        %vm2254 = vcmp.eq.f32.partialorder %v2124, 0.0
        %v2255 = vand.u32 %v2124, 2147483648
        %v2256 = vsel %vm2254, %v2255, %v2253
        %v2257 = vrsqrt.pop %v2126
        %v2258 = vmul.f32 %v2257, %v2126
        %v2259 = vmul.f32 %v2258, %v2257
        %v2260 = vmul.f32 0.5, %v2259
        %v2261 = vsub.f32 1.5, %v2260
        %v2262 = vmul.f32 %v2257, %v2261
        %v2263 = vmul.f32 %v2126, %v2262
        %vm2264 = vcmp.eq.f32.partialorder %v2126, inf
        %v2265 = vsel %vm2264, %v2126, %v2263
        %vm2266 = vcmp.eq.f32.partialorder %v2126, 0.0
        %v2267 = vand.u32 %v2126, 2147483648
        %v2268 = vsel %vm2266, %v2267, %v2265
        %v2269 = vrsqrt.pop %v2128
        %v2270 = vmul.f32 %v2269, %v2128
        %v2271 = vmul.f32 %v2270, %v2269
        %v2272 = vmul.f32 0.5, %v2271
        %v2273 = vsub.f32 1.5, %v2272
        %v2274 = vmul.f32 %v2269, %v2273
        %v2275 = vmul.f32 %v2128, %v2274
        %vm2276 = vcmp.eq.f32.partialorder %v2128, inf
        %v2277 = vsel %vm2276, %v2128, %v2275
        %vm2278 = vcmp.eq.f32.partialorder %v2128, 0.0
        %v2279 = vand.u32 %v2128, 2147483648
        %v2280 = vsel %vm2278, %v2279, %v2277
        %v2281 = vrsqrt.pop %v2130
        %v2282 = vmul.f32 %v2281, %v2130
        %v2283 = vmul.f32 %v2282, %v2281
        %v2284 = vmul.f32 0.5, %v2283
        %v2285 = vsub.f32 1.5, %v2284
        %v2286 = vmul.f32 %v2281, %v2285
        %v2287 = vmul.f32 %v2130, %v2286
        %vm2288 = vcmp.eq.f32.partialorder %v2130, inf
        %v2289 = vsel %vm2288, %v2130, %v2287
        %vm2290 = vcmp.eq.f32.partialorder %v2130, 0.0
        %v2291 = vand.u32 %v2130, 2147483648
        %v2292 = vsel %vm2290, %v2291, %v2289
        %v2293 = vrsqrt.pop %v2132
        %v2294 = vmul.f32 %v2293, %v2132
        %v2295 = vmul.f32 %v2294, %v2293
        %v2296 = vmul.f32 0.5, %v2295
        %v2297 = vsub.f32 1.5, %v2296
        %v2298 = vmul.f32 %v2293, %v2297
        %v2299 = vmul.f32 %v2132, %v2298
        %vm2300 = vcmp.eq.f32.partialorder %v2132, inf
        %v2301 = vsel %vm2300, %v2132, %v2299
        %vm2302 = vcmp.eq.f32.partialorder %v2132, 0.0
        %v2303 = vand.u32 %v2132, 2147483648
        %v2304 = vsel %vm2302, %v2303, %v2301
        %v2305 = vrsqrt.pop %v2134
        %v2306 = vmul.f32 %v2305, %v2134
        %v2307 = vmul.f32 %v2306, %v2305
        %v2308 = vmul.f32 0.5, %v2307
        %v2309 = vsub.f32 1.5, %v2308
        %v2310 = vmul.f32 %v2305, %v2309
        %v2311 = vmul.f32 %v2134, %v2310
        %vm2312 = vcmp.eq.f32.partialorder %v2134, inf
        %v2313 = vsel %vm2312, %v2134, %v2311
        %vm2314 = vcmp.eq.f32.partialorder %v2134, 0.0
        %v2315 = vand.u32 %v2134, 2147483648
        %v2316 = vsel %vm2314, %v2315, %v2313
        %v2317 = vrsqrt.pop %v2136
        %v2318 = vmul.f32 %v2317, %v2136
        %v2319 = vmul.f32 %v2318, %v2317
        %v2320 = vmul.f32 0.5, %v2319
        %v2321 = vsub.f32 1.5, %v2320
        %v2322 = vmul.f32 %v2317, %v2321
        %v2323 = vmul.f32 %v2136, %v2322
        %vm2324 = vcmp.eq.f32.partialorder %v2136, inf
        %v2325 = vsel %vm2324, %v2136, %v2323
        %vm2326 = vcmp.eq.f32.partialorder %v2136, 0.0
        %v2327 = vand.u32 %v2136, 2147483648
        %v2328 = vsel %vm2326, %v2327, %v2325
        %v2329 = vmul.f32 %v2073, %v2073
        %v2330 = vmul.f32 %v2074, %v2074
        %v2331 = vmul.f32 %v2075, %v2075
        %v2332 = vmul.f32 %v2076, %v2076
        %v2333 = vmul.f32 %v2077, %v2077
        %v2334 = vmul.f32 %v2078, %v2078
        %v2335 = vmul.f32 %v2079, %v2079
        %v2336 = vmul.f32 %v2080, %v2080
        %v2337 = vmul.f32 %v2081, %v2081
        %v2338 = vmul.f32 %v2082, %v2082
        %v2339 = vmul.f32 %v2083, %v2083
        %v2340 = vmul.f32 %v2084, %v2084
        %v2341 = vmul.f32 %v2085, %v2085
        %v2342 = vmul.f32 %v2086, %v2086
        %v2343 = vmul.f32 %v2087, %v2087
        %v2344 = vmul.f32 %v2088, %v2088
        %2345 = vadd.xlane.f32.xlu0 %v2329
        %v2346 = vpop.xlane.xlu0 %2345
        %2347 = vadd.xlane.f32.xlu0 %v2330
        %v2348 = vpop.xlane.xlu0 %2347
        %2349 = vadd.xlane.f32.xlu0 %v2331
        %v2350 = vpop.xlane.xlu0 %2349
        %2351 = vadd.xlane.f32.xlu0 %v2332
        %v2352 = vpop.xlane.xlu0 %2351
        %2353 = vadd.xlane.f32.xlu0 %v2333
        %v2354 = vpop.xlane.xlu0 %2353
        %2355 = vadd.xlane.f32.xlu0 %v2334
        %v2356 = vpop.xlane.xlu0 %2355
        %2357 = vadd.xlane.f32.xlu0 %v2335
        %v2358 = vpop.xlane.xlu0 %2357
        %2359 = vadd.xlane.f32.xlu0 %v2336
        %v2360 = vpop.xlane.xlu0 %2359
        %2361 = vadd.xlane.f32.xlu0 %v2337
        %v2362 = vpop.xlane.xlu0 %2361
        %2363 = vadd.xlane.f32.xlu0 %v2338
        %v2364 = vpop.xlane.xlu0 %2363
        %2365 = vadd.xlane.f32.xlu0 %v2339
        %v2366 = vpop.xlane.xlu0 %2365
        %2367 = vadd.xlane.f32.xlu0 %v2340
        %v2368 = vpop.xlane.xlu0 %2367
        %2369 = vadd.xlane.f32.xlu0 %v2341
        %v2370 = vpop.xlane.xlu0 %2369
        %2371 = vadd.xlane.f32.xlu0 %v2342
        %v2372 = vpop.xlane.xlu0 %2371
        %2373 = vadd.xlane.f32.xlu0 %v2343
        %v2374 = vpop.xlane.xlu0 %2373
        %2375 = vadd.xlane.f32.xlu0 %v2344
        %v2376 = vpop.xlane.xlu0 %2375
        %v2377 = vrsqrt.pop %v2346
        %v2378 = vmul.f32 %v2377, %v2346
        %v2379 = vmul.f32 %v2378, %v2377
        %v2380 = vmul.f32 0.5, %v2379
        %v2381 = vsub.f32 1.5, %v2380
        %v2382 = vmul.f32 %v2377, %v2381
        %v2383 = vmul.f32 %v2346, %v2382
        %vm2384 = vcmp.eq.f32.partialorder %v2346, inf
        %v2385 = vsel %vm2384, %v2346, %v2383
        %vm2386 = vcmp.eq.f32.partialorder %v2346, 0.0
        %v2387 = vand.u32 %v2346, 2147483648
        %v2388 = vsel %vm2386, %v2387, %v2385
        %v2389 = vrsqrt.pop %v2348
        %v2390 = vmul.f32 %v2389, %v2348
        %v2391 = vmul.f32 %v2390, %v2389
        %v2392 = vmul.f32 0.5, %v2391
        %v2393 = vsub.f32 1.5, %v2392
        %v2394 = vmul.f32 %v2389, %v2393
        %v2395 = vmul.f32 %v2348, %v2394
        %vm2396 = vcmp.eq.f32.partialorder %v2348, inf
        %v2397 = vsel %vm2396, %v2348, %v2395
        %vm2398 = vcmp.eq.f32.partialorder %v2348, 0.0
        %v2399 = vand.u32 %v2348, 2147483648
        %v2400 = vsel %vm2398, %v2399, %v2397
        %v2401 = vrsqrt.pop %v2350
        %v2402 = vmul.f32 %v2401, %v2350
        %v2403 = vmul.f32 %v2402, %v2401
        %v2404 = vmul.f32 0.5, %v2403
        %v2405 = vsub.f32 1.5, %v2404
        %v2406 = vmul.f32 %v2401, %v2405
        %v2407 = vmul.f32 %v2350, %v2406
        %vm2408 = vcmp.eq.f32.partialorder %v2350, inf
        %v2409 = vsel %vm2408, %v2350, %v2407
        %vm2410 = vcmp.eq.f32.partialorder %v2350, 0.0
        %v2411 = vand.u32 %v2350, 2147483648
        %v2412 = vsel %vm2410, %v2411, %v2409
        %v2413 = vrsqrt.pop %v2352
        %v2414 = vmul.f32 %v2413, %v2352
        %v2415 = vmul.f32 %v2414, %v2413
        %v2416 = vmul.f32 0.5, %v2415
        %v2417 = vsub.f32 1.5, %v2416
        %v2418 = vmul.f32 %v2413, %v2417
        %v2419 = vmul.f32 %v2352, %v2418
        %vm2420 = vcmp.eq.f32.partialorder %v2352, inf
        %v2421 = vsel %vm2420, %v2352, %v2419
        %vm2422 = vcmp.eq.f32.partialorder %v2352, 0.0
        %v2423 = vand.u32 %v2352, 2147483648
        %v2424 = vsel %vm2422, %v2423, %v2421
        %v2425 = vrsqrt.pop %v2354
        %v2426 = vmul.f32 %v2425, %v2354
        %v2427 = vmul.f32 %v2426, %v2425
        %v2428 = vmul.f32 0.5, %v2427
        %v2429 = vsub.f32 1.5, %v2428
        %v2430 = vmul.f32 %v2425, %v2429
        %v2431 = vmul.f32 %v2354, %v2430
        %vm2432 = vcmp.eq.f32.partialorder %v2354, inf
        %v2433 = vsel %vm2432, %v2354, %v2431
        %vm2434 = vcmp.eq.f32.partialorder %v2354, 0.0
        %v2435 = vand.u32 %v2354, 2147483648
        %v2436 = vsel %vm2434, %v2435, %v2433
        %v2437 = vrsqrt.pop %v2356
        %v2438 = vmul.f32 %v2437, %v2356
        %v2439 = vmul.f32 %v2438, %v2437
        %v2440 = vmul.f32 0.5, %v2439
        %v2441 = vsub.f32 1.5, %v2440
        %v2442 = vmul.f32 %v2437, %v2441
        %v2443 = vmul.f32 %v2356, %v2442
        %vm2444 = vcmp.eq.f32.partialorder %v2356, inf
        %v2445 = vsel %vm2444, %v2356, %v2443
        %vm2446 = vcmp.eq.f32.partialorder %v2356, 0.0
        %v2447 = vand.u32 %v2356, 2147483648
        %v2448 = vsel %vm2446, %v2447, %v2445
        %v2449 = vrsqrt.pop %v2358
        %v2450 = vmul.f32 %v2449, %v2358
        %v2451 = vmul.f32 %v2450, %v2449
        %v2452 = vmul.f32 0.5, %v2451
        %v2453 = vsub.f32 1.5, %v2452
        %v2454 = vmul.f32 %v2449, %v2453
        %v2455 = vmul.f32 %v2358, %v2454
        %vm2456 = vcmp.eq.f32.partialorder %v2358, inf
        %v2457 = vsel %vm2456, %v2358, %v2455
        %vm2458 = vcmp.eq.f32.partialorder %v2358, 0.0
        %v2459 = vand.u32 %v2358, 2147483648
        %v2460 = vsel %vm2458, %v2459, %v2457
        %v2461 = vrsqrt.pop %v2360
        %v2462 = vmul.f32 %v2461, %v2360
        %v2463 = vmul.f32 %v2462, %v2461
        %v2464 = vmul.f32 0.5, %v2463
        %v2465 = vsub.f32 1.5, %v2464
        %v2466 = vmul.f32 %v2461, %v2465
        %v2467 = vmul.f32 %v2360, %v2466
        %vm2468 = vcmp.eq.f32.partialorder %v2360, inf
        %v2469 = vsel %vm2468, %v2360, %v2467
        %vm2470 = vcmp.eq.f32.partialorder %v2360, 0.0
        %v2471 = vand.u32 %v2360, 2147483648
        %v2472 = vsel %vm2470, %v2471, %v2469
        %v2473 = vrsqrt.pop %v2362
        %v2474 = vmul.f32 %v2473, %v2362
        %v2475 = vmul.f32 %v2474, %v2473
        %v2476 = vmul.f32 0.5, %v2475
        %v2477 = vsub.f32 1.5, %v2476
        %v2478 = vmul.f32 %v2473, %v2477
        %v2479 = vmul.f32 %v2362, %v2478
        %vm2480 = vcmp.eq.f32.partialorder %v2362, inf
        %v2481 = vsel %vm2480, %v2362, %v2479
        %vm2482 = vcmp.eq.f32.partialorder %v2362, 0.0
        %v2483 = vand.u32 %v2362, 2147483648
        %v2484 = vsel %vm2482, %v2483, %v2481
        %v2485 = vrsqrt.pop %v2364
        %v2486 = vmul.f32 %v2485, %v2364
        %v2487 = vmul.f32 %v2486, %v2485
        %v2488 = vmul.f32 0.5, %v2487
        %v2489 = vsub.f32 1.5, %v2488
        %v2490 = vmul.f32 %v2485, %v2489
        %v2491 = vmul.f32 %v2364, %v2490
        %vm2492 = vcmp.eq.f32.partialorder %v2364, inf
        %v2493 = vsel %vm2492, %v2364, %v2491
        %vm2494 = vcmp.eq.f32.partialorder %v2364, 0.0
        %v2495 = vand.u32 %v2364, 2147483648
        %v2496 = vsel %vm2494, %v2495, %v2493
        %v2497 = vrsqrt.pop %v2366
        %v2498 = vmul.f32 %v2497, %v2366
        %v2499 = vmul.f32 %v2498, %v2497
        %v2500 = vmul.f32 0.5, %v2499
        %v2501 = vsub.f32 1.5, %v2500
        %v2502 = vmul.f32 %v2497, %v2501
        %v2503 = vmul.f32 %v2366, %v2502
        %vm2504 = vcmp.eq.f32.partialorder %v2366, inf
        %v2505 = vsel %vm2504, %v2366, %v2503
        %vm2506 = vcmp.eq.f32.partialorder %v2366, 0.0
        %v2507 = vand.u32 %v2366, 2147483648
        %v2508 = vsel %vm2506, %v2507, %v2505
        %v2509 = vrsqrt.pop %v2368
        %v2510 = vmul.f32 %v2509, %v2368
        %v2511 = vmul.f32 %v2510, %v2509
        %v2512 = vmul.f32 0.5, %v2511
        %v2513 = vsub.f32 1.5, %v2512
        %v2514 = vmul.f32 %v2509, %v2513
        %v2515 = vmul.f32 %v2368, %v2514
        %vm2516 = vcmp.eq.f32.partialorder %v2368, inf
        %v2517 = vsel %vm2516, %v2368, %v2515
        %vm2518 = vcmp.eq.f32.partialorder %v2368, 0.0
        %v2519 = vand.u32 %v2368, 2147483648
        %v2520 = vsel %vm2518, %v2519, %v2517
        %v2521 = vrsqrt.pop %v2370
        %v2522 = vmul.f32 %v2521, %v2370
        %v2523 = vmul.f32 %v2522, %v2521
        %v2524 = vmul.f32 0.5, %v2523
        %v2525 = vsub.f32 1.5, %v2524
        %v2526 = vmul.f32 %v2521, %v2525
        %v2527 = vmul.f32 %v2370, %v2526
        %vm2528 = vcmp.eq.f32.partialorder %v2370, inf
        %v2529 = vsel %vm2528, %v2370, %v2527
        %vm2530 = vcmp.eq.f32.partialorder %v2370, 0.0
        %v2531 = vand.u32 %v2370, 2147483648
        %v2532 = vsel %vm2530, %v2531, %v2529
        %v2533 = vrsqrt.pop %v2372
        %v2534 = vmul.f32 %v2533, %v2372
        %v2535 = vmul.f32 %v2534, %v2533
        %v2536 = vmul.f32 0.5, %v2535
        %v2537 = vsub.f32 1.5, %v2536
        %v2538 = vmul.f32 %v2533, %v2537
        %v2539 = vmul.f32 %v2372, %v2538
        %vm2540 = vcmp.eq.f32.partialorder %v2372, inf
        %v2541 = vsel %vm2540, %v2372, %v2539
        %vm2542 = vcmp.eq.f32.partialorder %v2372, 0.0
        %v2543 = vand.u32 %v2372, 2147483648
        %v2544 = vsel %vm2542, %v2543, %v2541
        %v2545 = vrsqrt.pop %v2374
        %v2546 = vmul.f32 %v2545, %v2374
        %v2547 = vmul.f32 %v2546, %v2545
        %v2548 = vmul.f32 0.5, %v2547
        %v2549 = vsub.f32 1.5, %v2548
        %v2550 = vmul.f32 %v2545, %v2549
        %v2551 = vmul.f32 %v2374, %v2550
        %vm2552 = vcmp.eq.f32.partialorder %v2374, inf
        %v2553 = vsel %vm2552, %v2374, %v2551
        %vm2554 = vcmp.eq.f32.partialorder %v2374, 0.0
        %v2555 = vand.u32 %v2374, 2147483648
        %v2556 = vsel %vm2554, %v2555, %v2553
        %v2557 = vrsqrt.pop %v2376
        %v2558 = vmul.f32 %v2557, %v2376
        %v2559 = vmul.f32 %v2558, %v2557
        %v2560 = vmul.f32 0.5, %v2559
        %v2561 = vsub.f32 1.5, %v2560
        %v2562 = vmul.f32 %v2557, %v2561
        %v2563 = vmul.f32 %v2376, %v2562
        %vm2564 = vcmp.eq.f32.partialorder %v2376, inf
        %v2565 = vsel %vm2564, %v2376, %v2563
        %vm2566 = vcmp.eq.f32.partialorder %v2376, 0.0
        %v2567 = vand.u32 %v2376, 2147483648
        %v2568 = vsel %vm2566, %v2567, %v2565
        %s2569 = smul.u32 %s20, 128
        %v2570 = vlaneseq
        %v2571 = vshrl.u32 %v2570, 7
        %v2572 = vadd.s32 %v2571, 8
        %v2573 = vadd.s32 %v2571, 16
        %v2574 = vadd.s32 %v2571, 24
        %v2575 = vadd.s32 %v2571, 32
        %v2576 = vadd.s32 %v2571, 40
        %v2577 = vadd.s32 %v2571, 48
        %v2578 = vadd.s32 %v2571, 56
        %v2579 = vadd.s32 %v2571, 64
        %v2580 = vadd.s32 %v2571, 72
        %v2581 = vadd.s32 %v2571, 80
        %v2582 = vadd.s32 %v2571, 88
        %v2583 = vadd.s32 %v2571, 96
        %v2584 = vadd.s32 %v2571, 104
        %v2585 = vadd.s32 %v2571, 112
        %v2586 = vadd.s32 %v2571, 120
        %v2587 = vstv %s2569
        %v2588 = vadd.s32 %v2587, %v2571
        %v2589 = vadd.s32 %v2587, %v2572
        %v2590 = vadd.s32 %v2587, %v2573
        %v2591 = vadd.s32 %v2587, %v2574
        %v2592 = vadd.s32 %v2587, %v2575
        %v2593 = vadd.s32 %v2587, %v2576
        %v2594 = vadd.s32 %v2587, %v2577
        %v2595 = vadd.s32 %v2587, %v2578
        %v2596 = vadd.s32 %v2587, %v2579
        %v2597 = vadd.s32 %v2587, %v2580
        %v2598 = vadd.s32 %v2587, %v2581
        %v2599 = vadd.s32 %v2587, %v2582
        %v2600 = vadd.s32 %v2587, %v2583
        %v2601 = vadd.s32 %v2587, %v2584
        %v2602 = vadd.s32 %v2587, %v2585
        %v2603 = vadd.s32 %v2587, %v2586
        %vm2604 = vcmp.lt.s32.totalorder %v2588, 256
        %vm2605 = vcmp.lt.s32.totalorder %v2589, 256
        %vm2606 = vcmp.lt.s32.totalorder %v2590, 256
        %vm2607 = vcmp.lt.s32.totalorder %v2591, 256
        %vm2608 = vcmp.lt.s32.totalorder %v2592, 256
        %vm2609 = vcmp.lt.s32.totalorder %v2593, 256
        %vm2610 = vcmp.lt.s32.totalorder %v2594, 256
        %vm2611 = vcmp.lt.s32.totalorder %v2595, 256
        %vm2612 = vcmp.lt.s32.totalorder %v2596, 256
        %vm2613 = vcmp.lt.s32.totalorder %v2597, 256
        %vm2614 = vcmp.lt.s32.totalorder %v2598, 256
        %vm2615 = vcmp.lt.s32.totalorder %v2599, 256
        %vm2616 = vcmp.lt.s32.totalorder %v2600, 256
        %vm2617 = vcmp.lt.s32.totalorder %v2601, 256
        %vm2618 = vcmp.lt.s32.totalorder %v2602, 256
        %vm2619 = vcmp.lt.s32.totalorder %v2603, 256
        %v2620 = vsel %vm2604, 1, 0
        %v2621 = vsel %vm2605, 1, 0
        %v2622 = vsel %vm2606, 1, 0
        %v2623 = vsel %vm2607, 1, 0
        %v2624 = vsel %vm2608, 1, 0
        %v2625 = vsel %vm2609, 1, 0
        %v2626 = vsel %vm2610, 1, 0
        %v2627 = vsel %vm2611, 1, 0
        %v2628 = vsel %vm2612, 1, 0
        %v2629 = vsel %vm2613, 1, 0
        %v2630 = vsel %vm2614, 1, 0
        %v2631 = vsel %vm2615, 1, 0
        %v2632 = vsel %vm2616, 1, 0
        %v2633 = vsel %vm2617, 1, 0
        %v2634 = vsel %vm2618, 1, 0
        %v2635 = vsel %vm2619, 1, 0
        %v2636 = vcvt.s32.f32 %v2620
        %v2637 = vcvt.s32.f32 %v2621
        %v2638 = vcvt.s32.f32 %v2622
        %v2639 = vcvt.s32.f32 %v2623
        %v2640 = vcvt.s32.f32 %v2624
        %v2641 = vcvt.s32.f32 %v2625
        %v2642 = vcvt.s32.f32 %v2626
        %v2643 = vcvt.s32.f32 %v2627
        %v2644 = vcvt.s32.f32 %v2628
        %v2645 = vcvt.s32.f32 %v2629
        %v2646 = vcvt.s32.f32 %v2630
        %v2647 = vcvt.s32.f32 %v2631
        %v2648 = vcvt.s32.f32 %v2632
        %v2649 = vcvt.s32.f32 %v2633
        %v2650 = vcvt.s32.f32 %v2634
        %v2651 = vcvt.s32.f32 %v2635
        %v2652 = vsub.f32 %v2148, %v2388
        %v2653 = vsub.f32 %v2160, %v2400
        %v2654 = vsub.f32 %v2172, %v2412
        %v2655 = vsub.f32 %v2184, %v2424
        %v2656 = vsub.f32 %v2196, %v2436
        %v2657 = vsub.f32 %v2208, %v2448
        %v2658 = vsub.f32 %v2220, %v2460
        %v2659 = vsub.f32 %v2232, %v2472
        %v2660 = vsub.f32 %v2244, %v2484
        %v2661 = vsub.f32 %v2256, %v2496
        %v2662 = vsub.f32 %v2268, %v2508
        %v2663 = vsub.f32 %v2280, %v2520
        %v2664 = vsub.f32 %v2292, %v2532
        %v2665 = vsub.f32 %v2304, %v2544
        %v2666 = vsub.f32 %v2316, %v2556
        %v2667 = vsub.f32 %v2328, %v2568
        %v2668 = vadd.f32 %v2652, 1.0
        %v2669 = vadd.f32 %v2653, 1.0
        %v2670 = vadd.f32 %v2654, 1.0
        %v2671 = vadd.f32 %v2655, 1.0
        %v2672 = vadd.f32 %v2656, 1.0
        %v2673 = vadd.f32 %v2657, 1.0
        %v2674 = vadd.f32 %v2658, 1.0
        %v2675 = vadd.f32 %v2659, 1.0
        %v2676 = vadd.f32 %v2660, 1.0
        %v2677 = vadd.f32 %v2661, 1.0
        %v2678 = vadd.f32 %v2662, 1.0
        %v2679 = vadd.f32 %v2663, 1.0
        %v2680 = vadd.f32 %v2664, 1.0
        %v2681 = vadd.f32 %v2665, 1.0
        %v2682 = vadd.f32 %v2666, 1.0
        %v2683 = vadd.f32 %v2667, 1.0
        %v2684 = vmax.f32 %v2668, 0.0
        %v2685 = vmax.f32 %v2669, 0.0
        %v2686 = vmax.f32 %v2670, 0.0
        %v2687 = vmax.f32 %v2671, 0.0
        %v2688 = vmax.f32 %v2672, 0.0
        %v2689 = vmax.f32 %v2673, 0.0
        %v2690 = vmax.f32 %v2674, 0.0
        %v2691 = vmax.f32 %v2675, 0.0
        %v2692 = vmax.f32 %v2676, 0.0
        %v2693 = vmax.f32 %v2677, 0.0
        %v2694 = vmax.f32 %v2678, 0.0
        %v2695 = vmax.f32 %v2679, 0.0
        %v2696 = vmax.f32 %v2680, 0.0
        %v2697 = vmax.f32 %v2681, 0.0
        %v2698 = vmax.f32 %v2682, 0.0
        %v2699 = vmax.f32 %v2683, 0.0
        %v2700 = vmul.f32 %v2684, %v2636
        %v2701 = vmul.f32 %v2685, %v2637
        %v2702 = vmul.f32 %v2686, %v2638
        %v2703 = vmul.f32 %v2687, %v2639
        %v2704 = vmul.f32 %v2688, %v2640
        %v2705 = vmul.f32 %v2689, %v2641
        %v2706 = vmul.f32 %v2690, %v2642
        %v2707 = vmul.f32 %v2691, %v2643
        %v2708 = vmul.f32 %v2692, %v2644
        %v2709 = vmul.f32 %v2693, %v2645
        %v2710 = vmul.f32 %v2694, %v2646
        %v2711 = vmul.f32 %v2695, %v2647
        %v2712 = vmul.f32 %v2696, %v2648
        %v2713 = vmul.f32 %v2697, %v2649
        %v2714 = vmul.f32 %v2698, %v2650
        %v2715 = vmul.f32 %v2699, %v2651
        %v2716 = vld [vmem:[#allocation2] sm:$0x1]
        %v2717 = vadd.f32 %v2700, %v2701
        %v2718 = vadd.f32 %v2717, %v2702
        %v2719 = vadd.f32 %v2718, %v2703
        %v2720 = vadd.f32 %v2719, %v2704
        %v2721 = vadd.f32 %v2720, %v2705
        %v2722 = vadd.f32 %v2721, %v2706
        %v2723 = vadd.f32 %v2722, %v2707
        %v2724 = vadd.f32 %v2723, %v2708
        %v2725 = vadd.f32 %v2724, %v2709
        %v2726 = vadd.f32 %v2725, %v2710
        %v2727 = vadd.f32 %v2726, %v2711
        %v2728 = vadd.f32 %v2727, %v2712
        %v2729 = vadd.f32 %v2728, %v2713
        %v2730 = vadd.f32 %v2729, %v2714
        %v2731 = vadd.f32 %v2730, %v2715
        %v2732 = vrot.slane %v2731, 4
        %v2733 = vadd.f32 %v2731, %v2732
        %v2734 = vrot.slane %v2733, 2
        %v2735 = vadd.f32 %v2733, %v2734
        %v2736 = vrot.slane %v2735, 1
        %v2737 = vadd.f32 %v2735, %v2736
        %v2738 = vadd.f32 %v2716, %v2737
        %vm2739 = vcmask 0
        %2740 = vst.msk [vmem:[#allocation2] sm:$0x1] %vm2739, %v2738
        %p2741 = scmp.eq.s32.totalorder %s20, 1
        // Predicated region
        $region57: #{net_forward.5} parent=51 // pred_check
          %p2742 = pneg %p2741
        $region58: #{net_forward.5} parent=51 // pred_check_branch
          %2744 = sbr.rel (%p2742) target = $region60
        $region59: #{net_forward.5} parent=51 // pred_region
          %v2745 = vld [vmem:[#allocation2] sm:$0x1]
          %v2746 = vmul.f32 %v2745, 0.00390625
          %2747 = vst.msk [vmem:[#allocation3] sm:$0x1] %vm2739, %v2746
        $region60: #{net_forward.5} parent=51 // pred_fallthru
          _
        // Predicated region
        $region61: #{net_forward.5} parent=51 // pred_check
          %p2748 = pneg %p231
        $region62: #{net_forward.5} parent=51 // pred_check_branch
          %2750 = sbr.rel (%p2748) target = $region64
        $region63: #{net_forward.5} parent=51 // pred_region
          %2752 = vsyncadd [#allocation4], 0
          %s2754 = sshll.u32 [#allocation3], 4
          %s2755 = int_to_ptr.vmem [resolvable:$true] %s2754
          %s2756 = sshll.u32 %s8, 4
          %s2757 = int_to_ptr.hbm [resolvable:$true] %s2756
          %2759 = dma.vmem_to_hbm [thread:$0]  %s2755, 16, %s2757, [#allocation4]
        $region64: #{net_forward.5} parent=51 // pred_fallthru
          _
        // Predicated region
        $region65: #{net_forward.5} parent=51 // pred_check
          %p2760 = pneg %p231
        $region66: #{net_forward.5} parent=51 // pred_check_branch
          %2762 = sbr.rel (%p2760) target = $region68
        $region67: #{net_forward.5} parent=51 // pred_region
          %2764 = dma.done [#allocation4], 16
        $region68: #{net_forward.5} parent=51 // pred_fallthru
          _
      $region52: #{net_forward.5} parent=5 // pred_fallthru
        _
      %p2765 = scmp.le.s32.totalorder 2, %s15
      // Predicated region
      $region69: #{net_forward.5} parent=5 // pred_check
        %p2766 = pneg %p2765
      $region70: #{net_forward.5} parent=5 // pred_check_branch
        %2768 = sbr.rel (%p2766) target = $region72
      $region71: #{net_forward.5} parent=5 // pred_region
        %s2769 = ssub.s32 %s15, 2
      $region72: #{net_forward.5} parent=5 // pred_fallthru
        _
    $region6: #{net_forward.5} parent=1 // loop_footer
      %s19 = sadd.s32 1, %s15
    $region7: #{net_forward.5} parent=1 // loop_footer_branch
      %14 = sbr.rel target = $region3
    $region8: #{net_forward.5} parent=1 // loop_exit
      _
    %2770 = vsyncpa [#allocation4], 1
    %s2771 = scalar_lea.sflag [#allocation4], 1
    %2772 = vsyncpa %s2771, 1

</llo_original>
